<compile_context>
chip_gen: v6e
topology: v6e:2x2x1
jax: 0.10.0
libtpu: 0.0.40
codegen_flags: <defaults>
</compile_context>

<pallas_src>
import functools

import jax
import jax.numpy as jnp
from jax.experimental import pallas as pl
from jax.experimental.pallas import tpu as pltpu


def _routing_kernel(x_ref, w_ref, o_ref, *, J, K, D):
    # x_ref : (J*I, TB)            bf16, batch tile, batch on the lane axis
    # w_ref : (K*D*(J+2), J*I)     bf16, stacked vote/usum/bias weights (resident)
    # o_ref : (K, D, TB)           f32, squashed capsule outputs, lane-dense in batch
    TB = x_ref.shape[-1]
    r_u = J * K * D
    r_s = K * D

    # Single bf16 MXU matmul (f32 accumulate) produces votes, the J-summed
    # votes (already scaled by 1/sqrt(D)) and the post-softmax bias term.
    uf = jnp.dot(w_ref[...], x_ref[...],
                 preferred_element_type=jnp.float32)           # (K*D*(J+2), TB)
    u = uf[:r_u].reshape(J, K, D, TB)                          # u[j,k,d,n]
    usum = uf[r_u:r_u + r_s].reshape(1, K, D, TB)              # (1/sqrt(D))·Σ_j u
    s_bias = uf[r_u + r_s:].reshape(K, D, TB)                  # Σ_j b[j,k]·u[j,k,d]

    # Agreement a[j,k,n] = Σ_d u[j,k,d,n]·usum[k,d,n]  (1/sqrt(D) folded in usum).
    a = jnp.sum(u * usum, axis=2, keepdims=True)               # (J, K, 1, TB)

    # Softmax over the capsule axis K (exact reciprocal for the denominator).
    a = a - jnp.max(a, axis=1, keepdims=True)
    e = jnp.exp(a)
    c = e * pl.reciprocal(jnp.sum(e, axis=1, keepdims=True))   # (J, K, 1, TB)

    # Weighted vote sum over J; the post-softmax bias term arrives via s_bias.
    s = jnp.sum(u * c, axis=0) + s_bias                        # (K, D, TB)

    # Squash along D (eps matches the PyTorch module); EUP approx reciprocals.
    eps = 1e-20
    n = jnp.sqrt(jnp.sum(s * s, axis=1, keepdims=True))        # (K, 1, TB)
    scale = ((1.0 - pl.reciprocal(jnp.exp(n) + eps, approx=True))
             * pl.reciprocal(n + eps, approx=True))
    o_ref[...] = (s * scale).astype(o_ref.dtype)


def _pick_tiling(B, tb, vmem_limit_bytes):
    """Per-TPU-generation batch-tile (TB) and VMEM-limit defaults."""
    try:
        vmem_cap = getattr(pltpu.get_tpu_info(), "vmem_capacity_bytes", 0) or 0
    except Exception:
        vmem_cap = 0
    try:
        kind = jax.devices()[0].device_kind.lower()
    except Exception:
        kind = ""
    # Big tiles only when we're confident there is ~128 MiB of per-core VMEM
    # (v5e / v6e); v7x (64 MiB per TensorCore) and unknown chips stay modest.
    big_vmem = (vmem_cap >= 100 * 1024 * 1024) and ("v7" not in kind)
    if tb is None:
        tb = 1024 if big_vmem else 512
    if vmem_limit_bytes is None:
        vmem_limit_bytes = (96 if big_vmem else 48) * 1024 * 1024
    # Keep the batch grid >= 2 tiles whenever B allows so
    # dimension_semantics=("parallel",) can split it across v7x's two TCs.
    if B > 128:
        tb = min(tb, 128 * pl.cdiv(B, 256))
    TB = min(tb, 128 * pl.cdiv(B, 128))
    TB = max(128, (TB // 128) * 128)
    return TB, vmem_limit_bytes


def routing_layer(x, W, b, *, tb=None, vmem_limit_bytes=None):
    """x: (B, 16, 8); W: (K, 16, 8, D); b: (K, 16, 1) -> (B, K, D)."""
    B, J, I = x.shape
    K, J2, I2, D = W.shape
    assert (J, I) == (J2, I2) and b.shape == (K, J, 1)

    TB, vmem_limit_bytes = _pick_tiling(B, tb, vmem_limit_bytes)
    Bp = pl.cdiv(B, TB) * TB

    # ---- wrapper-side weight stacking (pure XLA, fused under jit) --------
    # Block-diagonal votes: W_bd[(j,k,d), (j2,i)] = W[k,j,i,d] * (j == j2)
    Wt = jnp.transpose(W, (1, 0, 3, 2)).reshape(J, K * D, I)        # (J, K*D, I)
    eye = jnp.eye(J, dtype=W.dtype)
    W_bd = jnp.einsum('jmi,jn->jmni', Wt, eye).reshape(J * K * D, J * I)
    # usum rows (1/sqrt(D) folded): W_sum[(k,d),(j,i)] = W[k,j,i,d] / sqrt(D)
    W_sum = jnp.transpose(W, (0, 3, 1, 2)).reshape(K * D, J * I) * (1.0 / D ** 0.5)
    # bias rows: W_bias[(k,d),(j,i)] = b[k,j] * W[k,j,i,d]
    W_bias = jnp.transpose(W * b[:, :, :, None], (0, 3, 1, 2)).reshape(K * D, J * I)
    W_stacked = jnp.concatenate([W_bd, W_sum, W_bias], axis=0).astype(jnp.bfloat16)

    # Batch on the lane axis: x_flat[(j,i), n] = x[n, j, i]; bf16 MXU feed.
    x_flat = jnp.transpose(x, (1, 2, 0)).reshape(J * I, B).astype(jnp.bfloat16)
    if Bp != B:
        # Zero-padded batch columns give s = 0 -> output 0, sliced off below.
        x_flat = jnp.pad(x_flat, ((0, 0), (0, Bp - B)))

    kernel = functools.partial(_routing_kernel, J=J, K=K, D=D)
    out = pl.pallas_call(
        kernel,
        out_shape=jax.ShapeDtypeStruct((K, D, Bp), x.dtype),
        grid=(Bp // TB,),
        in_specs=[
            pl.BlockSpec((J * I, TB), lambda g: (0, g)),              # x: streamed
            pl.BlockSpec((K * D * (J + 2), J * I), lambda g: (0, 0)),  # W: resident
        ],
        out_specs=pl.BlockSpec((K, D, TB), lambda g: (0, 0, g)),
        compiler_params=pltpu.CompilerParams(
            dimension_semantics=("parallel",),   # batch tiles split across v7x's 2 TCs
            vmem_limit_bytes=vmem_limit_bytes,
        ),
    )(x_flat, W_stacked)

    # (K, D, Bp) -> (B, K, D)
    return jnp.transpose(out[:, :, :B], (2, 0, 1))


def routing_reference(x, W, b):
    # Pure-JAX (f32, high precision) mirror of the PyTorch forward.
    D = W.shape[-1]
    hp = jax.lax.Precision.HIGHEST
    u = jnp.einsum('bji,kjiz->bkjz', x, W, precision=hp)            # (B, K, 16, D)
    c = jnp.einsum('bkij,bkmj->bki', u, u, precision=hp)[..., None]
    c = c / jnp.sqrt(jnp.float32(D))
    c = jax.nn.softmax(c, axis=1)
    c = c + b
    s = jnp.sum(u * c, axis=-2)                                     # (B, K, D)
    n = jnp.linalg.norm(s, axis=-1, keepdims=True)
    return (1.0 - 1.0 / (jnp.exp(n) + 1e-20)) * (s / (n + 1e-20))


if __name__ == "__main__":
    num_capsules = 10   # K
    dim_capsules = 16   # D
    B = 2

    key = jax.random.PRNGKey(0)
    k_w, k_x = jax.random.split(key)

    # Deterministic kaiming_normal_-style init for W (fan_in = 16*8*D); b = zeros.
    fan_in = 16 * 8 * dim_capsules
    std = (2.0 / fan_in) ** 0.5
    W = jax.random.normal(k_w, (num_capsules, 16, 8, dim_capsules), jnp.float32) * std
    b = jnp.zeros((num_capsules, 16, 1), jnp.float32)

    x = jax.random.normal(k_x, (B, 16, 8), jnp.float32)

    routing = jax.jit(lambda xx: routing_layer(xx, W, b))
    out = jax.block_until_ready(routing(x))

    ref = routing_reference(x, W, b)
    assert out.shape == (B, num_capsules, dim_capsules)
    # bf16 MXU operands + approx reciprocals -> tolerance loosened vs. the f32 reference.
    max_diff = jnp.max(jnp.abs(out - ref))
    assert jnp.allclose(out, ref, rtol=2e-2, atol=2e-3), f"max abs diff {max_diff}"
    print("KERNEL_OK")
</pallas_src>

<mosaic_0001>
module attributes {stable_mosaic.version = 11 : i64} {
  func.func @_routing_kernel(%arg0: i32, %arg1: memref<128x128xbf16, #tpu.memory_space<vmem>>, %arg2: memref<2880x128xbf16, #tpu.memory_space<vmem>>, %arg3: memref<10x16x128xf32, #tpu.memory_space<vmem>>) attributes {dimension_semantics = [#tpu.dimension_semantics<parallel>], iteration_bounds = array<i64: 1>, scalar_prefetch = 0 : i64, scratch_operands = 0 : i64, tpu.core_type = #tpu.core_type<tc>, window_params = [{transform_indices = @transform_0, window_bounds = array<i64: 128, 128>}, {pipeline_mode = #tpu.pipeline_mode<synchronous>, transform_indices = @transform_1, window_bounds = array<i64: 2880, 128>}, {transform_indices = @transform_2, window_bounds = array<i64: 10, 16, 128>}]} {
    %c0 = arith.constant 0 : index
    %c0_0 = arith.constant 0 : index
    %0 = vector.load %arg2[%c0, %c0_0] : memref<2880x128xbf16, #tpu.memory_space<vmem>>, vector<2880x128xbf16>
    %c0_1 = arith.constant 0 : index
    %c0_2 = arith.constant 0 : index
    %1 = vector.load %arg1[%c0_1, %c0_2] : memref<128x128xbf16, #tpu.memory_space<vmem>>, vector<128x128xbf16>
    %cst = arith.constant dense<0.000000e+00> : vector<2880x128xf32>
    %2 = tpu.matmul %0, %1, %cst {dimension_numbers = #tpu.dot_dimension_numbers<[1], [0], [0], [1], [0, 0, 1, 1], [], []>} : vector<2880x128xbf16>, vector<128x128xbf16>, vector<2880x128xf32> -> vector<2880x128xf32>
    %3 = vector.extract_strided_slice %2 {offsets = [0, 0], sizes = [2560, 128], strides = [1, 1]} : vector<2880x128xf32> to vector<2560x128xf32>
    %4 = vector.shape_cast %3 : vector<2560x128xf32> to vector<16x10x16x128xf32>
    %5 = vector.extract_strided_slice %2 {offsets = [2560, 0], sizes = [160, 128], strides = [1, 1]} : vector<2880x128xf32> to vector<160x128xf32>
    %6 = vector.shape_cast %5 : vector<160x128xf32> to vector<1x10x16x128xf32>
    %7 = vector.extract_strided_slice %2 {offsets = [2720, 0], sizes = [160, 128], strides = [1, 1]} : vector<2880x128xf32> to vector<160x128xf32>
    %8 = vector.shape_cast %7 : vector<160x128xf32> to vector<10x16x128xf32>
    %9 = vector.broadcast %6 : vector<1x10x16x128xf32> to vector<16x10x16x128xf32>
    %10 = arith.mulf %4, %9 : vector<16x10x16x128xf32>
    %cst_3 = arith.constant dense<0.000000e+00> : vector<16x10x128xf32>
    %11 = vector.multi_reduction <add>, %10, %cst_3 [2] : vector<16x10x16x128xf32> to vector<16x10x128xf32>
    %12 = vector.shape_cast %11 : vector<16x10x128xf32> to vector<16x10x1x128xf32>
    %cst_4 = arith.constant dense<0xFF800000> : vector<16x1x128xf32>
    %13 = vector.multi_reduction <maximumf>, %12, %cst_4 [1] : vector<16x10x1x128xf32> to vector<16x1x128xf32>
    %14 = vector.shape_cast %13 : vector<16x1x128xf32> to vector<16x1x1x128xf32>
    %15 = vector.broadcast %14 : vector<16x1x1x128xf32> to vector<16x10x1x128xf32>
    %16 = arith.subf %12, %15 : vector<16x10x1x128xf32>
    %17 = math.exp %16 : vector<16x10x1x128xf32>
    %cst_5 = arith.constant dense<0.000000e+00> : vector<16x1x128xf32>
    %18 = vector.multi_reduction <add>, %17, %cst_5 [1] : vector<16x10x1x128xf32> to vector<16x1x128xf32>
    %19 = vector.shape_cast %18 : vector<16x1x128xf32> to vector<16x1x1x128xf32>
    %20 = tpu.reciprocal %19 : vector<16x1x1x128xf32> -> vector<16x1x1x128xf32>
    %21 = vector.broadcast %20 : vector<16x1x1x128xf32> to vector<16x10x1x128xf32>
    %22 = arith.mulf %17, %21 : vector<16x10x1x128xf32>
    %23 = vector.broadcast %22 : vector<16x10x1x128xf32> to vector<16x10x16x128xf32>
    %24 = arith.mulf %4, %23 : vector<16x10x16x128xf32>
    %cst_6 = arith.constant dense<0.000000e+00> : vector<10x16x128xf32>
    %25 = vector.multi_reduction <add>, %24, %cst_6 [0] : vector<16x10x16x128xf32> to vector<10x16x128xf32>
    %26 = arith.addf %25, %8 : vector<10x16x128xf32>
    %27 = arith.mulf %26, %26 : vector<10x16x128xf32>
    %cst_7 = arith.constant dense<0.000000e+00> : vector<10x128xf32>
    %28 = vector.multi_reduction <add>, %27, %cst_7 [1] : vector<10x16x128xf32> to vector<10x128xf32>
    %29 = vector.shape_cast %28 : vector<10x128xf32> to vector<10x1x128xf32>
    %30 = math.sqrt %29 : vector<10x1x128xf32>
    %31 = math.exp %30 : vector<10x1x128xf32>
    %cst_8 = arith.constant 9.99999968E-21 : f32
    %32 = vector.broadcast %cst_8 : f32 to vector<10x1x128xf32>
    %33 = arith.addf %31, %32 : vector<10x1x128xf32>
    %34 = tpu.reciprocal %33 {approx = true} : vector<10x1x128xf32> -> vector<10x1x128xf32>
    %cst_9 = arith.constant 1.000000e+00 : f32
    %35 = vector.broadcast %cst_9 : f32 to vector<10x1x128xf32>
    %36 = arith.subf %35, %34 : vector<10x1x128xf32>
    %cst_10 = arith.constant 9.99999968E-21 : f32
    %37 = vector.broadcast %cst_10 : f32 to vector<10x1x128xf32>
    %38 = arith.addf %30, %37 : vector<10x1x128xf32>
    %39 = tpu.reciprocal %38 {approx = true} : vector<10x1x128xf32> -> vector<10x1x128xf32>
    %40 = arith.mulf %36, %39 : vector<10x1x128xf32>
    %41 = vector.broadcast %40 : vector<10x1x128xf32> to vector<10x16x128xf32>
    %42 = arith.mulf %26, %41 : vector<10x16x128xf32>
    %c0_11 = arith.constant 0 : index
    %c0_12 = arith.constant 0 : index
    %c0_13 = arith.constant 0 : index
    %43 = vector.load %arg3[%c0_11, %c0_12, %c0_13] : memref<10x16x128xf32, #tpu.memory_space<vmem>>, vector<10x16x128xf32>
    tpu.vector_store %arg3[%c0_11, %c0_12, %c0_13], %42 {strides = array<i32>} : memref<10x16x128xf32, #tpu.memory_space<vmem>>, vector<10x16x128xf32>,
    return
  }
  func.func @transform_0(%arg0: i32) -> (i32, i32) {
    %c0_i32 = arith.constant 0 : i32
    %c0_i32_0 = arith.constant 0 : i32
    return %c0_i32, %arg0 : i32, i32
  }
  func.func @transform_1(%arg0: i32) -> (i32, i32) {
    %c0_i32 = arith.constant 0 : i32
    %c0_i32_0 = arith.constant 0 : i32
    %c0_i32_1 = arith.constant 0 : i32
    return %c0_i32, %c0_i32_0 : i32, i32
  }
  func.func @transform_2(%arg0: i32) -> (i32, i32, i32) {
    %c0_i32 = arith.constant 0 : i32
    %c0_i32_0 = arith.constant 0 : i32
    %c0_i32_1 = arith.constant 0 : i32
    return %c0_i32, %c0_i32_0, %arg0 : i32, i32, i32
  }
}

</mosaic_0001>

<llo_original>
// kernel: _lambda_.1
$region0: #{_lambda_.1}
  #allocation0 [shape = 'u32[]', space=smem, size = 0x4, offset = 0x4, fixed_abs, tag = 'smem constant byte address 0x4 - core index']
  #allocation1 [shape = 'u32[144,128]{1,0:T(1,128)}', space=vmem, size = 0x12000, scoped, tag = 'internal scratch']
  %s0 = inlined_call_operand.vmem [shape: bf16[128,128], index: 0, kind: input, shape index: {}]
  %s1 = inlined_call_operand.vmem [shape: bf16[2880,128], index: 1, kind: input, shape index: {}]
  %s2 = inlined_call_operand.vmem [shape: f32[10,16,128], index: 2, kind: output, shape index: {}]
  %s3 = sld [smem:[#allocation0]]
  $region18: #{_lambda_.1} parent=0
    _
  %s5 = ssub.s32 1, %s3
  %s6 = scalar_select 0, %s5, %s3
  // Predicated region
  $region2: #{_lambda_.1} parent=0 // pred_check
    _
  $region3: #{_lambda_.1} parent=0 // pred_check_branch
    %8 = sbr.rel (0) target = $region5
  $region4: #{_lambda_.1} parent=0 // pred_region
    _
  $region5: #{_lambda_.1} parent=0 // pred_fallthru
    _
  // Predicated region
  $region6: #{_lambda_.1} parent=0 // pred_check
    _
  $region7: #{_lambda_.1} parent=0 // pred_check_branch
    %10 = sbr.rel (0) target = $region9
  $region8: #{_lambda_.1} parent=0 // pred_region
    _
  $region9: #{_lambda_.1} parent=0 // pred_fallthru
    _
  %v12 = vld [vmem:[%s1] sm:$0xf]
  %v13 = vld [vmem:[%s1 + $0x4] sm:$0xf]
  %v14 = vld [vmem:[%s1 + $0x8] sm:$0xf]
  %v15 = vld [vmem:[%s1 + $0xc] sm:$0xf]
  %v16 = vld [vmem:[%s1 + $0x10] sm:$0xf]
  %v17 = vld [vmem:[%s1 + $0x14] sm:$0xf]
  %v18 = vld [vmem:[%s1 + $0x18] sm:$0xf]
  %v19 = vld [vmem:[%s1 + $0x1c] sm:$0xf]
  %v20 = vld [vmem:[%s1 + $0x20] sm:$0xf]
  %v21 = vld [vmem:[%s1 + $0x24] sm:$0xf]
  %v22 = vld [vmem:[%s1 + $0x28] sm:$0xf]
  %v23 = vld [vmem:[%s1 + $0x2c] sm:$0xf]
  %v24 = vld [vmem:[%s1 + $0x30] sm:$0xf]
  %v25 = vld [vmem:[%s1 + $0x34] sm:$0xf]
  %v26 = vld [vmem:[%s1 + $0x38] sm:$0xf]
  %v27 = vld [vmem:[%s1 + $0x3c] sm:$0xf]
  %v28 = vld [vmem:[%s1 + $0x40] sm:$0xf]
  %v29 = vld [vmem:[%s1 + $0x44] sm:$0xf]
  %v30 = vld [vmem:[%s1 + $0x48] sm:$0xf]
  %v31 = vld [vmem:[%s1 + $0x4c] sm:$0xf]
  %v32 = vld [vmem:[%s1 + $0x50] sm:$0xf]
  %v33 = vld [vmem:[%s1 + $0x54] sm:$0xf]
  %v34 = vld [vmem:[%s1 + $0x58] sm:$0xf]
  %v35 = vld [vmem:[%s1 + $0x5c] sm:$0xf]
  %v36 = vld [vmem:[%s1 + $0x60] sm:$0xf]
  %v37 = vld [vmem:[%s1 + $0x64] sm:$0xf]
  %v38 = vld [vmem:[%s1 + $0x68] sm:$0xf]
  %v39 = vld [vmem:[%s1 + $0x6c] sm:$0xf]
  %v40 = vld [vmem:[%s1 + $0x70] sm:$0xf]
  %v41 = vld [vmem:[%s1 + $0x74] sm:$0xf]
  %v42 = vld [vmem:[%s1 + $0x78] sm:$0xf]
  %v43 = vld [vmem:[%s1 + $0x7c] sm:$0xf]
  %v44 = vld [vmem:[%s1 + $0x80] sm:$0xf]
  %v45 = vld [vmem:[%s1 + $0x84] sm:$0xf]
  %v46 = vld [vmem:[%s1 + $0x88] sm:$0xf]
  %v47 = vld [vmem:[%s1 + $0x8c] sm:$0xf]
  %v48 = vld [vmem:[%s1 + $0x90] sm:$0xf]
  %v49 = vld [vmem:[%s1 + $0x94] sm:$0xf]
  %v50 = vld [vmem:[%s1 + $0x98] sm:$0xf]
  %v51 = vld [vmem:[%s1 + $0x9c] sm:$0xf]
  %v52 = vld [vmem:[%s1 + $0xa0] sm:$0xf]
  %v53 = vld [vmem:[%s1 + $0xa4] sm:$0xf]
  %v54 = vld [vmem:[%s1 + $0xa8] sm:$0xf]
  %v55 = vld [vmem:[%s1 + $0xac] sm:$0xf]
  %v56 = vld [vmem:[%s1 + $0xb0] sm:$0xf]
  %v57 = vld [vmem:[%s1 + $0xb4] sm:$0xf]
  %v58 = vld [vmem:[%s1 + $0xb8] sm:$0xf]
  %v59 = vld [vmem:[%s1 + $0xbc] sm:$0xf]
  %v60 = vld [vmem:[%s1 + $0xc0] sm:$0xf]
  %v61 = vld [vmem:[%s1 + $0xc4] sm:$0xf]
  %v62 = vld [vmem:[%s1 + $0xc8] sm:$0xf]
  %v63 = vld [vmem:[%s1 + $0xcc] sm:$0xf]
  %v64 = vld [vmem:[%s1 + $0xd0] sm:$0xf]
  %v65 = vld [vmem:[%s1 + $0xd4] sm:$0xf]
  %v66 = vld [vmem:[%s1 + $0xd8] sm:$0xf]
  %v67 = vld [vmem:[%s1 + $0xdc] sm:$0xf]
  %v68 = vld [vmem:[%s1 + $0xe0] sm:$0xf]
  %v69 = vld [vmem:[%s1 + $0xe4] sm:$0xf]
  %v70 = vld [vmem:[%s1 + $0xe8] sm:$0xf]
  %v71 = vld [vmem:[%s1 + $0xec] sm:$0xf]
  %v72 = vld [vmem:[%s1 + $0xf0] sm:$0xf]
  %v73 = vld [vmem:[%s1 + $0xf4] sm:$0xf]
  %v74 = vld [vmem:[%s1 + $0xf8] sm:$0xf]
  %v75 = vld [vmem:[%s1 + $0xfc] sm:$0xf]
  %v76 = vld [vmem:[%s1 + $0x100] sm:$0xf]
  %v77 = vld [vmem:[%s1 + $0x104] sm:$0xf]
  %v78 = vld [vmem:[%s1 + $0x108] sm:$0xf]
  %v79 = vld [vmem:[%s1 + $0x10c] sm:$0xf]
  %v80 = vld [vmem:[%s1 + $0x110] sm:$0xf]
  %v81 = vld [vmem:[%s1 + $0x114] sm:$0xf]
  %v82 = vld [vmem:[%s1 + $0x118] sm:$0xf]
  %v83 = vld [vmem:[%s1 + $0x11c] sm:$0xf]
  %v84 = vld [vmem:[%s1 + $0x120] sm:$0xf]
  %v85 = vld [vmem:[%s1 + $0x124] sm:$0xf]
  %v86 = vld [vmem:[%s1 + $0x128] sm:$0xf]
  %v87 = vld [vmem:[%s1 + $0x12c] sm:$0xf]
  %v88 = vld [vmem:[%s1 + $0x130] sm:$0xf]
  %v89 = vld [vmem:[%s1 + $0x134] sm:$0xf]
  %v90 = vld [vmem:[%s1 + $0x138] sm:$0xf]
  %v91 = vld [vmem:[%s1 + $0x13c] sm:$0xf]
  %v92 = vld [vmem:[%s1 + $0x140] sm:$0xf]
  %v93 = vld [vmem:[%s1 + $0x144] sm:$0xf]
  %v94 = vld [vmem:[%s1 + $0x148] sm:$0xf]
  %v95 = vld [vmem:[%s1 + $0x14c] sm:$0xf]
  %v96 = vld [vmem:[%s1 + $0x150] sm:$0xf]
  %v97 = vld [vmem:[%s1 + $0x154] sm:$0xf]
  %v98 = vld [vmem:[%s1 + $0x158] sm:$0xf]
  %v99 = vld [vmem:[%s1 + $0x15c] sm:$0xf]
  %v100 = vld [vmem:[%s1 + $0x160] sm:$0xf]
  %v101 = vld [vmem:[%s1 + $0x164] sm:$0xf]
  %v102 = vld [vmem:[%s1 + $0x168] sm:$0xf]
  %v103 = vld [vmem:[%s1 + $0x16c] sm:$0xf]
  %v104 = vld [vmem:[%s1 + $0x170] sm:$0xf]
  %v105 = vld [vmem:[%s1 + $0x174] sm:$0xf]
  %v106 = vld [vmem:[%s1 + $0x178] sm:$0xf]
  %v107 = vld [vmem:[%s1 + $0x17c] sm:$0xf]
  %v108 = vld [vmem:[%s1 + $0x180] sm:$0xf]
  %v109 = vld [vmem:[%s1 + $0x184] sm:$0xf]
  %v110 = vld [vmem:[%s1 + $0x188] sm:$0xf]
  %v111 = vld [vmem:[%s1 + $0x18c] sm:$0xf]
  %v112 = vld [vmem:[%s1 + $0x190] sm:$0xf]
  %v113 = vld [vmem:[%s1 + $0x194] sm:$0xf]
  %v114 = vld [vmem:[%s1 + $0x198] sm:$0xf]
  %v115 = vld [vmem:[%s1 + $0x19c] sm:$0xf]
  %v116 = vld [vmem:[%s1 + $0x1a0] sm:$0xf]
  %v117 = vld [vmem:[%s1 + $0x1a4] sm:$0xf]
  %v118 = vld [vmem:[%s1 + $0x1a8] sm:$0xf]
  %v119 = vld [vmem:[%s1 + $0x1ac] sm:$0xf]
  %v120 = vld [vmem:[%s1 + $0x1b0] sm:$0xf]
  %v121 = vld [vmem:[%s1 + $0x1b4] sm:$0xf]
  %v122 = vld [vmem:[%s1 + $0x1b8] sm:$0xf]
  %v123 = vld [vmem:[%s1 + $0x1bc] sm:$0xf]
  %v124 = vld [vmem:[%s1 + $0x1c0] sm:$0xf]
  %v125 = vld [vmem:[%s1 + $0x1c4] sm:$0xf]
  %v126 = vld [vmem:[%s1 + $0x1c8] sm:$0xf]
  %v127 = vld [vmem:[%s1 + $0x1cc] sm:$0xf]
  %v128 = vld [vmem:[%s1 + $0x1d0] sm:$0xf]
  %v129 = vld [vmem:[%s1 + $0x1d4] sm:$0xf]
  %v130 = vld [vmem:[%s1 + $0x1d8] sm:$0xf]
  %v131 = vld [vmem:[%s1 + $0x1dc] sm:$0xf]
  %v132 = vld [vmem:[%s1 + $0x1e0] sm:$0xf]
  %v133 = vld [vmem:[%s1 + $0x1e4] sm:$0xf]
  %v134 = vld [vmem:[%s1 + $0x1e8] sm:$0xf]
  %v135 = vld [vmem:[%s1 + $0x1ec] sm:$0xf]
  %v136 = vld [vmem:[%s1 + $0x1f0] sm:$0xf]
  %v137 = vld [vmem:[%s1 + $0x1f4] sm:$0xf]
  %v138 = vld [vmem:[%s1 + $0x1f8] sm:$0xf]
  %v139 = vld [vmem:[%s1 + $0x1fc] sm:$0xf]
  %v140 = vld [vmem:[%s1 + $0x200] sm:$0xf]
  %v141 = vld [vmem:[%s1 + $0x204] sm:$0xf]
  %v142 = vld [vmem:[%s1 + $0x208] sm:$0xf]
  %v143 = vld [vmem:[%s1 + $0x20c] sm:$0xf]
  %v144 = vld [vmem:[%s1 + $0x210] sm:$0xf]
  %v145 = vld [vmem:[%s1 + $0x214] sm:$0xf]
  %v146 = vld [vmem:[%s1 + $0x218] sm:$0xf]
  %v147 = vld [vmem:[%s1 + $0x21c] sm:$0xf]
  %v148 = vld [vmem:[%s1 + $0x220] sm:$0xf]
  %v149 = vld [vmem:[%s1 + $0x224] sm:$0xf]
  %v150 = vld [vmem:[%s1 + $0x228] sm:$0xf]
  %v151 = vld [vmem:[%s1 + $0x22c] sm:$0xf]
  %v152 = vld [vmem:[%s1 + $0x230] sm:$0xf]
  %v153 = vld [vmem:[%s1 + $0x234] sm:$0xf]
  %v154 = vld [vmem:[%s1 + $0x238] sm:$0xf]
  %v155 = vld [vmem:[%s1 + $0x23c] sm:$0xf]
  %v156 = vld [vmem:[%s1 + $0x240] sm:$0xf]
  %v157 = vld [vmem:[%s1 + $0x244] sm:$0xf]
  %v158 = vld [vmem:[%s1 + $0x248] sm:$0xf]
  %v159 = vld [vmem:[%s1 + $0x24c] sm:$0xf]
  %v160 = vld [vmem:[%s1 + $0x250] sm:$0xf]
  %v161 = vld [vmem:[%s1 + $0x254] sm:$0xf]
  %v162 = vld [vmem:[%s1 + $0x258] sm:$0xf]
  %v163 = vld [vmem:[%s1 + $0x25c] sm:$0xf]
  %v164 = vld [vmem:[%s1 + $0x260] sm:$0xf]
  %v165 = vld [vmem:[%s1 + $0x264] sm:$0xf]
  %v166 = vld [vmem:[%s1 + $0x268] sm:$0xf]
  %v167 = vld [vmem:[%s1 + $0x26c] sm:$0xf]
  %v168 = vld [vmem:[%s1 + $0x270] sm:$0xf]
  %v169 = vld [vmem:[%s1 + $0x274] sm:$0xf]
  %v170 = vld [vmem:[%s1 + $0x278] sm:$0xf]
  %v171 = vld [vmem:[%s1 + $0x27c] sm:$0xf]
  %v172 = vld [vmem:[%s1 + $0x280] sm:$0xf]
  %v173 = vld [vmem:[%s1 + $0x284] sm:$0xf]
  %v174 = vld [vmem:[%s1 + $0x288] sm:$0xf]
  %v175 = vld [vmem:[%s1 + $0x28c] sm:$0xf]
  %v176 = vld [vmem:[%s1 + $0x290] sm:$0xf]
  %v177 = vld [vmem:[%s1 + $0x294] sm:$0xf]
  %v178 = vld [vmem:[%s1 + $0x298] sm:$0xf]
  %v179 = vld [vmem:[%s1 + $0x29c] sm:$0xf]
  %v180 = vld [vmem:[%s1 + $0x2a0] sm:$0xf]
  %v181 = vld [vmem:[%s1 + $0x2a4] sm:$0xf]
  %v182 = vld [vmem:[%s1 + $0x2a8] sm:$0xf]
  %v183 = vld [vmem:[%s1 + $0x2ac] sm:$0xf]
  %v184 = vld [vmem:[%s1 + $0x2b0] sm:$0xf]
  %v185 = vld [vmem:[%s1 + $0x2b4] sm:$0xf]
  %v186 = vld [vmem:[%s1 + $0x2b8] sm:$0xf]
  %v187 = vld [vmem:[%s1 + $0x2bc] sm:$0xf]
  %v188 = vld [vmem:[%s1 + $0x2c0] sm:$0xf]
  %v189 = vld [vmem:[%s1 + $0x2c4] sm:$0xf]
  %v190 = vld [vmem:[%s1 + $0x2c8] sm:$0xf]
  %v191 = vld [vmem:[%s1 + $0x2cc] sm:$0xf]
  %v192 = vld [vmem:[%s1 + $0x2d0] sm:$0xf]
  %v193 = vld [vmem:[%s1 + $0x2d4] sm:$0xf]
  %v194 = vld [vmem:[%s1 + $0x2d8] sm:$0xf]
  %v195 = vld [vmem:[%s1 + $0x2dc] sm:$0xf]
  %v196 = vld [vmem:[%s1 + $0x2e0] sm:$0xf]
  %v197 = vld [vmem:[%s1 + $0x2e4] sm:$0xf]
  %v198 = vld [vmem:[%s1 + $0x2e8] sm:$0xf]
  %v199 = vld [vmem:[%s1 + $0x2ec] sm:$0xf]
  %v200 = vld [vmem:[%s1 + $0x2f0] sm:$0xf]
  %v201 = vld [vmem:[%s1 + $0x2f4] sm:$0xf]
  %v202 = vld [vmem:[%s1 + $0x2f8] sm:$0xf]
  %v203 = vld [vmem:[%s1 + $0x2fc] sm:$0xf]
  %v204 = vld [vmem:[%s1 + $0x300] sm:$0xf]
  %v205 = vld [vmem:[%s1 + $0x304] sm:$0xf]
  %v206 = vld [vmem:[%s1 + $0x308] sm:$0xf]
  %v207 = vld [vmem:[%s1 + $0x30c] sm:$0xf]
  %v208 = vld [vmem:[%s1 + $0x310] sm:$0xf]
  %v209 = vld [vmem:[%s1 + $0x314] sm:$0xf]
  %v210 = vld [vmem:[%s1 + $0x318] sm:$0xf]
  %v211 = vld [vmem:[%s1 + $0x31c] sm:$0xf]
  %v212 = vld [vmem:[%s1 + $0x320] sm:$0xf]
  %v213 = vld [vmem:[%s1 + $0x324] sm:$0xf]
  %v214 = vld [vmem:[%s1 + $0x328] sm:$0xf]
  %v215 = vld [vmem:[%s1 + $0x32c] sm:$0xf]
  %v216 = vld [vmem:[%s1 + $0x330] sm:$0xf]
  %v217 = vld [vmem:[%s1 + $0x334] sm:$0xf]
  %v218 = vld [vmem:[%s1 + $0x338] sm:$0xf]
  %v219 = vld [vmem:[%s1 + $0x33c] sm:$0xf]
  %v220 = vld [vmem:[%s1 + $0x340] sm:$0xf]
  %v221 = vld [vmem:[%s1 + $0x344] sm:$0xf]
  %v222 = vld [vmem:[%s1 + $0x348] sm:$0xf]
  %v223 = vld [vmem:[%s1 + $0x34c] sm:$0xf]
  %v224 = vld [vmem:[%s1 + $0x350] sm:$0xf]
  %v225 = vld [vmem:[%s1 + $0x354] sm:$0xf]
  %v226 = vld [vmem:[%s1 + $0x358] sm:$0xf]
  %v227 = vld [vmem:[%s1 + $0x35c] sm:$0xf]
  %v228 = vld [vmem:[%s1 + $0x360] sm:$0xf]
  %v229 = vld [vmem:[%s1 + $0x364] sm:$0xf]
  %v230 = vld [vmem:[%s1 + $0x368] sm:$0xf]
  %v231 = vld [vmem:[%s1 + $0x36c] sm:$0xf]
  %v232 = vld [vmem:[%s1 + $0x370] sm:$0xf]
  %v233 = vld [vmem:[%s1 + $0x374] sm:$0xf]
  %v234 = vld [vmem:[%s1 + $0x378] sm:$0xf]
  %v235 = vld [vmem:[%s1 + $0x37c] sm:$0xf]
  %v236 = vld [vmem:[%s1 + $0x380] sm:$0xf]
  %v237 = vld [vmem:[%s1 + $0x384] sm:$0xf]
  %v238 = vld [vmem:[%s1 + $0x388] sm:$0xf]
  %v239 = vld [vmem:[%s1 + $0x38c] sm:$0xf]
  %v240 = vld [vmem:[%s1 + $0x390] sm:$0xf]
  %v241 = vld [vmem:[%s1 + $0x394] sm:$0xf]
  %v242 = vld [vmem:[%s1 + $0x398] sm:$0xf]
  %v243 = vld [vmem:[%s1 + $0x39c] sm:$0xf]
  %v244 = vld [vmem:[%s1 + $0x3a0] sm:$0xf]
  %v245 = vld [vmem:[%s1 + $0x3a4] sm:$0xf]
  %v246 = vld [vmem:[%s1 + $0x3a8] sm:$0xf]
  %v247 = vld [vmem:[%s1 + $0x3ac] sm:$0xf]
  %v248 = vld [vmem:[%s1 + $0x3b0] sm:$0xf]
  %v249 = vld [vmem:[%s1 + $0x3b4] sm:$0xf]
  %v250 = vld [vmem:[%s1 + $0x3b8] sm:$0xf]
  %v251 = vld [vmem:[%s1 + $0x3bc] sm:$0xf]
  %v252 = vld [vmem:[%s1 + $0x3c0] sm:$0xf]
  %v253 = vld [vmem:[%s1 + $0x3c4] sm:$0xf]
  %v254 = vld [vmem:[%s1 + $0x3c8] sm:$0xf]
  %v255 = vld [vmem:[%s1 + $0x3cc] sm:$0xf]
  %v256 = vld [vmem:[%s1 + $0x3d0] sm:$0xf]
  %v257 = vld [vmem:[%s1 + $0x3d4] sm:$0xf]
  %v258 = vld [vmem:[%s1 + $0x3d8] sm:$0xf]
  %v259 = vld [vmem:[%s1 + $0x3dc] sm:$0xf]
  %v260 = vld [vmem:[%s1 + $0x3e0] sm:$0xf]
  %v261 = vld [vmem:[%s1 + $0x3e4] sm:$0xf]
  %v262 = vld [vmem:[%s1 + $0x3e8] sm:$0xf]
  %v263 = vld [vmem:[%s1 + $0x3ec] sm:$0xf]
  %v264 = vld [vmem:[%s1 + $0x3f0] sm:$0xf]
  %v265 = vld [vmem:[%s1 + $0x3f4] sm:$0xf]
  %v266 = vld [vmem:[%s1 + $0x3f8] sm:$0xf]
  %v267 = vld [vmem:[%s1 + $0x3fc] sm:$0xf]
  %v268 = vld [vmem:[%s1 + $0x400] sm:$0xf]
  %v269 = vld [vmem:[%s1 + $0x404] sm:$0xf]
  %v270 = vld [vmem:[%s1 + $0x408] sm:$0xf]
  %v271 = vld [vmem:[%s1 + $0x40c] sm:$0xf]
  %v272 = vld [vmem:[%s1 + $0x410] sm:$0xf]
  %v273 = vld [vmem:[%s1 + $0x414] sm:$0xf]
  %v274 = vld [vmem:[%s1 + $0x418] sm:$0xf]
  %v275 = vld [vmem:[%s1 + $0x41c] sm:$0xf]
  %v276 = vld [vmem:[%s1 + $0x420] sm:$0xf]
  %v277 = vld [vmem:[%s1 + $0x424] sm:$0xf]
  %v278 = vld [vmem:[%s1 + $0x428] sm:$0xf]
  %v279 = vld [vmem:[%s1 + $0x42c] sm:$0xf]
  %v280 = vld [vmem:[%s1 + $0x430] sm:$0xf]
  %v281 = vld [vmem:[%s1 + $0x434] sm:$0xf]
  %v282 = vld [vmem:[%s1 + $0x438] sm:$0xf]
  %v283 = vld [vmem:[%s1 + $0x43c] sm:$0xf]
  %v284 = vld [vmem:[%s1 + $0x440] sm:$0xf]
  %v285 = vld [vmem:[%s1 + $0x444] sm:$0xf]
  %v286 = vld [vmem:[%s1 + $0x448] sm:$0xf]
  %v287 = vld [vmem:[%s1 + $0x44c] sm:$0xf]
  %v288 = vld [vmem:[%s1 + $0x450] sm:$0xf]
  %v289 = vld [vmem:[%s1 + $0x454] sm:$0xf]
  %v290 = vld [vmem:[%s1 + $0x458] sm:$0xf]
  %v291 = vld [vmem:[%s1 + $0x45c] sm:$0xf]
  %v292 = vld [vmem:[%s1 + $0x460] sm:$0xf]
  %v293 = vld [vmem:[%s1 + $0x464] sm:$0xf]
  %v294 = vld [vmem:[%s1 + $0x468] sm:$0xf]
  %v295 = vld [vmem:[%s1 + $0x46c] sm:$0xf]
  %v296 = vld [vmem:[%s1 + $0x470] sm:$0xf]
  %v297 = vld [vmem:[%s1 + $0x474] sm:$0xf]
  %v298 = vld [vmem:[%s1 + $0x478] sm:$0xf]
  %v299 = vld [vmem:[%s1 + $0x47c] sm:$0xf]
  %v300 = vld [vmem:[%s1 + $0x480] sm:$0xf]
  %v301 = vld [vmem:[%s1 + $0x484] sm:$0xf]
  %v302 = vld [vmem:[%s1 + $0x488] sm:$0xf]
  %v303 = vld [vmem:[%s1 + $0x48c] sm:$0xf]
  %v304 = vld [vmem:[%s1 + $0x490] sm:$0xf]
  %v305 = vld [vmem:[%s1 + $0x494] sm:$0xf]
  %v306 = vld [vmem:[%s1 + $0x498] sm:$0xf]
  %v307 = vld [vmem:[%s1 + $0x49c] sm:$0xf]
  %v308 = vld [vmem:[%s1 + $0x4a0] sm:$0xf]
  %v309 = vld [vmem:[%s1 + $0x4a4] sm:$0xf]
  %v310 = vld [vmem:[%s1 + $0x4a8] sm:$0xf]
  %v311 = vld [vmem:[%s1 + $0x4ac] sm:$0xf]
  %v312 = vld [vmem:[%s1 + $0x4b0] sm:$0xf]
  %v313 = vld [vmem:[%s1 + $0x4b4] sm:$0xf]
  %v314 = vld [vmem:[%s1 + $0x4b8] sm:$0xf]
  %v315 = vld [vmem:[%s1 + $0x4bc] sm:$0xf]
  %v316 = vld [vmem:[%s1 + $0x4c0] sm:$0xf]
  %v317 = vld [vmem:[%s1 + $0x4c4] sm:$0xf]
  %v318 = vld [vmem:[%s1 + $0x4c8] sm:$0xf]
  %v319 = vld [vmem:[%s1 + $0x4cc] sm:$0xf]
  %v320 = vld [vmem:[%s1 + $0x4d0] sm:$0xf]
  %v321 = vld [vmem:[%s1 + $0x4d4] sm:$0xf]
  %v322 = vld [vmem:[%s1 + $0x4d8] sm:$0xf]
  %v323 = vld [vmem:[%s1 + $0x4dc] sm:$0xf]
  %v324 = vld [vmem:[%s1 + $0x4e0] sm:$0xf]
  %v325 = vld [vmem:[%s1 + $0x4e4] sm:$0xf]
  %v326 = vld [vmem:[%s1 + $0x4e8] sm:$0xf]
  %v327 = vld [vmem:[%s1 + $0x4ec] sm:$0xf]
  %v328 = vld [vmem:[%s1 + $0x4f0] sm:$0xf]
  %v329 = vld [vmem:[%s1 + $0x4f4] sm:$0xf]
  %v330 = vld [vmem:[%s1 + $0x4f8] sm:$0xf]
  %v331 = vld [vmem:[%s1 + $0x4fc] sm:$0xf]
  %v332 = vld [vmem:[%s1 + $0x500] sm:$0xf]
  %v333 = vld [vmem:[%s1 + $0x504] sm:$0xf]
  %v334 = vld [vmem:[%s1 + $0x508] sm:$0xf]
  %v335 = vld [vmem:[%s1 + $0x50c] sm:$0xf]
  %v336 = vld [vmem:[%s1 + $0x510] sm:$0xf]
  %v337 = vld [vmem:[%s1 + $0x514] sm:$0xf]
  %v338 = vld [vmem:[%s1 + $0x518] sm:$0xf]
  %v339 = vld [vmem:[%s1 + $0x51c] sm:$0xf]
  %v340 = vld [vmem:[%s1 + $0x520] sm:$0xf]
  %v341 = vld [vmem:[%s1 + $0x524] sm:$0xf]
  %v342 = vld [vmem:[%s1 + $0x528] sm:$0xf]
  %v343 = vld [vmem:[%s1 + $0x52c] sm:$0xf]
  %v344 = vld [vmem:[%s1 + $0x530] sm:$0xf]
  %v345 = vld [vmem:[%s1 + $0x534] sm:$0xf]
  %v346 = vld [vmem:[%s1 + $0x538] sm:$0xf]
  %v347 = vld [vmem:[%s1 + $0x53c] sm:$0xf]
  %v348 = vld [vmem:[%s1 + $0x540] sm:$0xf]
  %v349 = vld [vmem:[%s1 + $0x544] sm:$0xf]
  %v350 = vld [vmem:[%s1 + $0x548] sm:$0xf]
  %v351 = vld [vmem:[%s1 + $0x54c] sm:$0xf]
  %v352 = vld [vmem:[%s1 + $0x550] sm:$0xf]
  %v353 = vld [vmem:[%s1 + $0x554] sm:$0xf]
  %v354 = vld [vmem:[%s1 + $0x558] sm:$0xf]
  %v355 = vld [vmem:[%s1 + $0x55c] sm:$0xf]
  %v356 = vld [vmem:[%s1 + $0x560] sm:$0xf]
  %v357 = vld [vmem:[%s1 + $0x564] sm:$0xf]
  %v358 = vld [vmem:[%s1 + $0x568] sm:$0xf]
  %v359 = vld [vmem:[%s1 + $0x56c] sm:$0xf]
  %v360 = vld [vmem:[%s1 + $0x570] sm:$0xf]
  %v361 = vld [vmem:[%s1 + $0x574] sm:$0xf]
  %v362 = vld [vmem:[%s1 + $0x578] sm:$0xf]
  %v363 = vld [vmem:[%s1 + $0x57c] sm:$0xf]
  %v364 = vld [vmem:[%s1 + $0x580] sm:$0xf]
  %v365 = vld [vmem:[%s1 + $0x584] sm:$0xf]
  %v366 = vld [vmem:[%s1 + $0x588] sm:$0xf]
  %v367 = vld [vmem:[%s1 + $0x58c] sm:$0xf]
  %v368 = vld [vmem:[%s1 + $0x590] sm:$0xf]
  %v369 = vld [vmem:[%s1 + $0x594] sm:$0xf]
  %v370 = vld [vmem:[%s1 + $0x598] sm:$0xf]
  %v371 = vld [vmem:[%s1 + $0x59c] sm:$0xf]
  %v372 = vld [vmem:[%s0] sm:$0xf]
  %v373 = vld [vmem:[%s0 + $0x4] sm:$0xf]
  %v374 = vld [vmem:[%s0 + $0x8] sm:$0xf]
  %v375 = vld [vmem:[%s0 + $0xc] sm:$0xf]
  %v376 = vld [vmem:[%s0 + $0x10] sm:$0xf]
  %v377 = vld [vmem:[%s0 + $0x14] sm:$0xf]
  %v378 = vld [vmem:[%s0 + $0x18] sm:$0xf]
  %v379 = vld [vmem:[%s0 + $0x1c] sm:$0xf]
  %v380 = vld [vmem:[%s0 + $0x20] sm:$0xf]
  %v381 = vld [vmem:[%s0 + $0x24] sm:$0xf]
  %v382 = vld [vmem:[%s0 + $0x28] sm:$0xf]
  %v383 = vld [vmem:[%s0 + $0x2c] sm:$0xf]
  %v384 = vld [vmem:[%s0 + $0x30] sm:$0xf]
  %v385 = vld [vmem:[%s0 + $0x34] sm:$0xf]
  %v386 = vld [vmem:[%s0 + $0x38] sm:$0xf]
  %v387 = vld [vmem:[%s0 + $0x3c] sm:$0xf]
  %v748 = vunpack.c.l.b16 %v12
  %v749 = vunpack.c.l.b16 %v13
  %v750 = vunpack.c.l.b16 %v14
  %v751 = vunpack.c.l.b16 %v15
  %v752 = vunpack.c.l.b16 %v16
  %v753 = vunpack.c.l.b16 %v17
  %v754 = vunpack.c.l.b16 %v18
  %v755 = vunpack.c.l.b16 %v19
  %v756 = vunpack.c.l.b16 %v20
  %v757 = vunpack.c.l.b16 %v21
  %v758 = vunpack.c.l.b16 %v22
  %v759 = vunpack.c.l.b16 %v23
  %v760 = vunpack.c.l.b16 %v24
  %v761 = vunpack.c.l.b16 %v25
  %v762 = vunpack.c.l.b16 %v26
  %v763 = vunpack.c.l.b16 %v27
  %v764 = vunpack.c.l.b16 %v28
  %v765 = vunpack.c.l.b16 %v29
  %v766 = vunpack.c.l.b16 %v30
  %v767 = vunpack.c.l.b16 %v31
  %v768 = vunpack.c.l.b16 %v32
  %v769 = vunpack.c.l.b16 %v33
  %v770 = vunpack.c.l.b16 %v34
  %v771 = vunpack.c.l.b16 %v35
  %v772 = vunpack.c.l.b16 %v36
  %v773 = vunpack.c.l.b16 %v37
  %v774 = vunpack.c.l.b16 %v38
  %v775 = vunpack.c.l.b16 %v39
  %v776 = vunpack.c.l.b16 %v40
  %v777 = vunpack.c.l.b16 %v41
  %v778 = vunpack.c.l.b16 %v42
  %v779 = vunpack.c.l.b16 %v43
  %v780 = vunpack.c.l.b16 %v44
  %v781 = vunpack.c.l.b16 %v45
  %v782 = vunpack.c.l.b16 %v46
  %v783 = vunpack.c.l.b16 %v47
  %v784 = vunpack.c.l.b16 %v48
  %v785 = vunpack.c.l.b16 %v49
  %v786 = vunpack.c.l.b16 %v50
  %v787 = vunpack.c.l.b16 %v51
  %v788 = vunpack.c.l.b16 %v52
  %v789 = vunpack.c.l.b16 %v53
  %v790 = vunpack.c.l.b16 %v54
  %v791 = vunpack.c.l.b16 %v55
  %v792 = vunpack.c.l.b16 %v56
  %v793 = vunpack.c.l.b16 %v57
  %v794 = vunpack.c.l.b16 %v58
  %v795 = vunpack.c.l.b16 %v59
  %v796 = vunpack.c.l.b16 %v60
  %v797 = vunpack.c.l.b16 %v61
  %v798 = vunpack.c.l.b16 %v62
  %v799 = vunpack.c.l.b16 %v63
  %v800 = vunpack.c.l.b16 %v64
  %v801 = vunpack.c.l.b16 %v65
  %v802 = vunpack.c.l.b16 %v66
  %v803 = vunpack.c.l.b16 %v67
  %v804 = vunpack.c.l.b16 %v68
  %v805 = vunpack.c.l.b16 %v69
  %v806 = vunpack.c.l.b16 %v70
  %v807 = vunpack.c.l.b16 %v71
  %v808 = vunpack.c.l.b16 %v72
  %v809 = vunpack.c.l.b16 %v73
  %v810 = vunpack.c.l.b16 %v74
  %v811 = vunpack.c.l.b16 %v75
  %v812 = vunpack.c.l.b16 %v76
  %v813 = vunpack.c.l.b16 %v77
  %v814 = vunpack.c.l.b16 %v78
  %v815 = vunpack.c.l.b16 %v79
  %v816 = vunpack.c.l.b16 %v80
  %v817 = vunpack.c.l.b16 %v81
  %v818 = vunpack.c.l.b16 %v82
  %v819 = vunpack.c.l.b16 %v83
  %v820 = vunpack.c.l.b16 %v84
  %v821 = vunpack.c.l.b16 %v85
  %v822 = vunpack.c.l.b16 %v86
  %v823 = vunpack.c.l.b16 %v87
  %v824 = vunpack.c.l.b16 %v88
  %v825 = vunpack.c.l.b16 %v89
  %v826 = vunpack.c.l.b16 %v90
  %v827 = vunpack.c.l.b16 %v91
  %v828 = vunpack.c.l.b16 %v92
  %v829 = vunpack.c.l.b16 %v93
  %v830 = vunpack.c.l.b16 %v94
  %v831 = vunpack.c.l.b16 %v95
  %v832 = vunpack.c.l.b16 %v96
  %v833 = vunpack.c.l.b16 %v97
  %v834 = vunpack.c.l.b16 %v98
  %v835 = vunpack.c.l.b16 %v99
  %v836 = vunpack.c.l.b16 %v100
  %v837 = vunpack.c.l.b16 %v101
  %v838 = vunpack.c.l.b16 %v102
  %v839 = vunpack.c.l.b16 %v103
  %v840 = vunpack.c.l.b16 %v104
  %v841 = vunpack.c.l.b16 %v105
  %v842 = vunpack.c.l.b16 %v106
  %v843 = vunpack.c.l.b16 %v107
  %v844 = vunpack.c.l.b16 %v108
  %v845 = vunpack.c.l.b16 %v109
  %v846 = vunpack.c.l.b16 %v110
  %v847 = vunpack.c.l.b16 %v111
  %v848 = vunpack.c.l.b16 %v112
  %v849 = vunpack.c.l.b16 %v113
  %v850 = vunpack.c.l.b16 %v114
  %v851 = vunpack.c.l.b16 %v115
  %v852 = vunpack.c.l.b16 %v116
  %v853 = vunpack.c.l.b16 %v117
  %v854 = vunpack.c.l.b16 %v118
  %v855 = vunpack.c.l.b16 %v119
  %v856 = vunpack.c.l.b16 %v120
  %v857 = vunpack.c.l.b16 %v121
  %v858 = vunpack.c.l.b16 %v122
  %v859 = vunpack.c.l.b16 %v123
  %v860 = vunpack.c.l.b16 %v124
  %v861 = vunpack.c.l.b16 %v125
  %v862 = vunpack.c.l.b16 %v126
  %v863 = vunpack.c.l.b16 %v127
  %v864 = vunpack.c.l.b16 %v128
  %v865 = vunpack.c.l.b16 %v129
  %v866 = vunpack.c.l.b16 %v130
  %v867 = vunpack.c.l.b16 %v131
  %v868 = vunpack.c.l.b16 %v132
  %v869 = vunpack.c.l.b16 %v133
  %v870 = vunpack.c.l.b16 %v134
  %v871 = vunpack.c.l.b16 %v135
  %v872 = vunpack.c.l.b16 %v136
  %v873 = vunpack.c.l.b16 %v137
  %v874 = vunpack.c.l.b16 %v138
  %v875 = vunpack.c.l.b16 %v139
  %v876 = vunpack.c.l.b16 %v140
  %v877 = vunpack.c.l.b16 %v141
  %v878 = vunpack.c.l.b16 %v142
  %v879 = vunpack.c.l.b16 %v143
  %v880 = vunpack.c.l.b16 %v144
  %v881 = vunpack.c.l.b16 %v145
  %v882 = vunpack.c.l.b16 %v146
  %v883 = vunpack.c.l.b16 %v147
  %v884 = vunpack.c.l.b16 %v148
  %v885 = vunpack.c.l.b16 %v149
  %v886 = vunpack.c.l.b16 %v150
  %v887 = vunpack.c.l.b16 %v151
  %v888 = vunpack.c.l.b16 %v152
  %v889 = vunpack.c.l.b16 %v153
  %v890 = vunpack.c.l.b16 %v154
  %v891 = vunpack.c.l.b16 %v155
  %v892 = vunpack.c.l.b16 %v156
  %v893 = vunpack.c.l.b16 %v157
  %v894 = vunpack.c.l.b16 %v158
  %v895 = vunpack.c.l.b16 %v159
  %v896 = vunpack.c.l.b16 %v160
  %v897 = vunpack.c.l.b16 %v161
  %v898 = vunpack.c.l.b16 %v162
  %v899 = vunpack.c.l.b16 %v163
  %v900 = vunpack.c.l.b16 %v164
  %v901 = vunpack.c.l.b16 %v165
  %v902 = vunpack.c.l.b16 %v166
  %v903 = vunpack.c.l.b16 %v167
  %v904 = vunpack.c.l.b16 %v168
  %v905 = vunpack.c.l.b16 %v169
  %v906 = vunpack.c.l.b16 %v170
  %v907 = vunpack.c.l.b16 %v171
  %v908 = vunpack.c.l.b16 %v172
  %v909 = vunpack.c.l.b16 %v173
  %v910 = vunpack.c.l.b16 %v174
  %v911 = vunpack.c.l.b16 %v175
  %v912 = vunpack.c.l.b16 %v176
  %v913 = vunpack.c.l.b16 %v177
  %v914 = vunpack.c.l.b16 %v178
  %v915 = vunpack.c.l.b16 %v179
  %v916 = vunpack.c.l.b16 %v180
  %v917 = vunpack.c.l.b16 %v181
  %v918 = vunpack.c.l.b16 %v182
  %v919 = vunpack.c.l.b16 %v183
  %v920 = vunpack.c.l.b16 %v184
  %v921 = vunpack.c.l.b16 %v185
  %v922 = vunpack.c.l.b16 %v186
  %v923 = vunpack.c.l.b16 %v187
  %v924 = vunpack.c.l.b16 %v188
  %v925 = vunpack.c.l.b16 %v189
  %v926 = vunpack.c.l.b16 %v190
  %v927 = vunpack.c.l.b16 %v191
  %v928 = vunpack.c.l.b16 %v192
  %v929 = vunpack.c.l.b16 %v193
  %v930 = vunpack.c.l.b16 %v194
  %v931 = vunpack.c.l.b16 %v195
  %v932 = vunpack.c.l.b16 %v196
  %v933 = vunpack.c.l.b16 %v197
  %v934 = vunpack.c.l.b16 %v198
  %v935 = vunpack.c.l.b16 %v199
  %v936 = vunpack.c.l.b16 %v200
  %v937 = vunpack.c.l.b16 %v201
  %v938 = vunpack.c.l.b16 %v202
  %v939 = vunpack.c.l.b16 %v203
  %v940 = vunpack.c.l.b16 %v204
  %v941 = vunpack.c.l.b16 %v205
  %v942 = vunpack.c.l.b16 %v206
  %v943 = vunpack.c.l.b16 %v207
  %v944 = vunpack.c.l.b16 %v208
  %v945 = vunpack.c.l.b16 %v209
  %v946 = vunpack.c.l.b16 %v210
  %v947 = vunpack.c.l.b16 %v211
  %v948 = vunpack.c.l.b16 %v212
  %v949 = vunpack.c.l.b16 %v213
  %v950 = vunpack.c.l.b16 %v214
  %v951 = vunpack.c.l.b16 %v215
  %v952 = vunpack.c.l.b16 %v216
  %v953 = vunpack.c.l.b16 %v217
  %v954 = vunpack.c.l.b16 %v218
  %v955 = vunpack.c.l.b16 %v219
  %v956 = vunpack.c.l.b16 %v220
  %v957 = vunpack.c.l.b16 %v221
  %v958 = vunpack.c.l.b16 %v222
  %v959 = vunpack.c.l.b16 %v223
  %v960 = vunpack.c.l.b16 %v224
  %v961 = vunpack.c.l.b16 %v225
  %v962 = vunpack.c.l.b16 %v226
  %v963 = vunpack.c.l.b16 %v227
  %v964 = vunpack.c.l.b16 %v228
  %v965 = vunpack.c.l.b16 %v229
  %v966 = vunpack.c.l.b16 %v230
  %v967 = vunpack.c.l.b16 %v231
  %v968 = vunpack.c.l.b16 %v232
  %v969 = vunpack.c.l.b16 %v233
  %v970 = vunpack.c.l.b16 %v234
  %v971 = vunpack.c.l.b16 %v235
  %v972 = vunpack.c.l.b16 %v236
  %v973 = vunpack.c.l.b16 %v237
  %v974 = vunpack.c.l.b16 %v238
  %v975 = vunpack.c.l.b16 %v239
  %v976 = vunpack.c.l.b16 %v240
  %v977 = vunpack.c.l.b16 %v241
  %v978 = vunpack.c.l.b16 %v242
  %v979 = vunpack.c.l.b16 %v243
  %v980 = vunpack.c.l.b16 %v244
  %v981 = vunpack.c.l.b16 %v245
  %v982 = vunpack.c.l.b16 %v246
  %v983 = vunpack.c.l.b16 %v247
  %v984 = vunpack.c.l.b16 %v248
  %v985 = vunpack.c.l.b16 %v249
  %v986 = vunpack.c.l.b16 %v250
  %v987 = vunpack.c.l.b16 %v251
  %v988 = vunpack.c.l.b16 %v252
  %v989 = vunpack.c.l.b16 %v253
  %v990 = vunpack.c.l.b16 %v254
  %v991 = vunpack.c.l.b16 %v255
  %v992 = vunpack.c.l.b16 %v256
  %v993 = vunpack.c.l.b16 %v257
  %v994 = vunpack.c.l.b16 %v258
  %v995 = vunpack.c.l.b16 %v259
  %v996 = vunpack.c.l.b16 %v260
  %v997 = vunpack.c.l.b16 %v261
  %v998 = vunpack.c.l.b16 %v262
  %v999 = vunpack.c.l.b16 %v263
  %v1000 = vunpack.c.l.b16 %v264
  %v1001 = vunpack.c.l.b16 %v265
  %v1002 = vunpack.c.l.b16 %v266
  %v1003 = vunpack.c.l.b16 %v267
  %v1004 = vunpack.c.l.b16 %v268
  %v1005 = vunpack.c.l.b16 %v269
  %v1006 = vunpack.c.l.b16 %v270
  %v1007 = vunpack.c.l.b16 %v271
  %v1008 = vunpack.c.l.b16 %v272
  %v1009 = vunpack.c.l.b16 %v273
  %v1010 = vunpack.c.l.b16 %v274
  %v1011 = vunpack.c.l.b16 %v275
  %v1012 = vunpack.c.l.b16 %v276
  %v1013 = vunpack.c.l.b16 %v277
  %v1014 = vunpack.c.l.b16 %v278
  %v1015 = vunpack.c.l.b16 %v279
  %v1016 = vunpack.c.l.b16 %v280
  %v1017 = vunpack.c.l.b16 %v281
  %v1018 = vunpack.c.l.b16 %v282
  %v1019 = vunpack.c.l.b16 %v283
  %v1020 = vunpack.c.l.b16 %v284
  %v1021 = vunpack.c.l.b16 %v285
  %v1022 = vunpack.c.l.b16 %v286
  %v1023 = vunpack.c.l.b16 %v287
  %v1024 = vunpack.c.l.b16 %v288
  %v1025 = vunpack.c.l.b16 %v289
  %v1026 = vunpack.c.l.b16 %v290
  %v1027 = vunpack.c.l.b16 %v291
  %v1028 = vunpack.c.l.b16 %v292
  %v1029 = vunpack.c.l.b16 %v293
  %v1030 = vunpack.c.l.b16 %v294
  %v1031 = vunpack.c.l.b16 %v295
  %v1032 = vunpack.c.l.b16 %v296
  %v1033 = vunpack.c.l.b16 %v297
  %v1034 = vunpack.c.l.b16 %v298
  %v1035 = vunpack.c.l.b16 %v299
  %v1036 = vunpack.c.l.b16 %v300
  %v1037 = vunpack.c.l.b16 %v301
  %v1038 = vunpack.c.l.b16 %v302
  %v1039 = vunpack.c.l.b16 %v303
  %v1040 = vunpack.c.l.b16 %v304
  %v1041 = vunpack.c.l.b16 %v305
  %v1042 = vunpack.c.l.b16 %v306
  %v1043 = vunpack.c.l.b16 %v307
  %v1044 = vunpack.c.l.b16 %v308
  %v1045 = vunpack.c.l.b16 %v309
  %v1046 = vunpack.c.l.b16 %v310
  %v1047 = vunpack.c.l.b16 %v311
  %v1048 = vunpack.c.l.b16 %v312
  %v1049 = vunpack.c.l.b16 %v313
  %v1050 = vunpack.c.l.b16 %v314
  %v1051 = vunpack.c.l.b16 %v315
  %v1052 = vunpack.c.l.b16 %v316
  %v1053 = vunpack.c.l.b16 %v317
  %v1054 = vunpack.c.l.b16 %v318
  %v1055 = vunpack.c.l.b16 %v319
  %v1056 = vunpack.c.l.b16 %v320
  %v1057 = vunpack.c.l.b16 %v321
  %v1058 = vunpack.c.l.b16 %v322
  %v1059 = vunpack.c.l.b16 %v323
  %v1060 = vunpack.c.l.b16 %v324
  %v1061 = vunpack.c.l.b16 %v325
  %v1062 = vunpack.c.l.b16 %v326
  %v1063 = vunpack.c.l.b16 %v327
  %v1064 = vunpack.c.l.b16 %v328
  %v1065 = vunpack.c.l.b16 %v329
  %v1066 = vunpack.c.l.b16 %v330
  %v1067 = vunpack.c.l.b16 %v331
  %v1068 = vunpack.c.l.b16 %v332
  %v1069 = vunpack.c.l.b16 %v333
  %v1070 = vunpack.c.l.b16 %v334
  %v1071 = vunpack.c.l.b16 %v335
  %v1072 = vunpack.c.l.b16 %v336
  %v1073 = vunpack.c.l.b16 %v337
  %v1074 = vunpack.c.l.b16 %v338
  %v1075 = vunpack.c.l.b16 %v339
  %v1076 = vunpack.c.l.b16 %v340
  %v1077 = vunpack.c.l.b16 %v341
  %v1078 = vunpack.c.l.b16 %v342
  %v1079 = vunpack.c.l.b16 %v343
  %v1080 = vunpack.c.l.b16 %v344
  %v1081 = vunpack.c.l.b16 %v345
  %v1082 = vunpack.c.l.b16 %v346
  %v1083 = vunpack.c.l.b16 %v347
  %v1084 = vunpack.c.l.b16 %v348
  %v1085 = vunpack.c.l.b16 %v349
  %v1086 = vunpack.c.l.b16 %v350
  %v1087 = vunpack.c.l.b16 %v351
  %v1088 = vunpack.c.l.b16 %v352
  %v1089 = vunpack.c.l.b16 %v353
  %v1090 = vunpack.c.l.b16 %v354
  %v1091 = vunpack.c.l.b16 %v355
  %v1092 = vunpack.c.l.b16 %v356
  %v1093 = vunpack.c.l.b16 %v357
  %v1094 = vunpack.c.l.b16 %v358
  %v1095 = vunpack.c.l.b16 %v359
  %v1096 = vunpack.c.l.b16 %v360
  %v1097 = vunpack.c.l.b16 %v361
  %v1098 = vunpack.c.l.b16 %v362
  %v1099 = vunpack.c.l.b16 %v363
  %v1100 = vunpack.c.l.b16 %v364
  %v1101 = vunpack.c.l.b16 %v365
  %v1102 = vunpack.c.l.b16 %v366
  %v1103 = vunpack.c.l.b16 %v367
  %v1104 = vunpack.c.l.b16 %v368
  %v1105 = vunpack.c.l.b16 %v369
  %v1106 = vunpack.c.l.b16 %v370
  %v1107 = vunpack.c.l.b16 %v371
  %v1108 = vpack.c.b16 %v749, %v748
  %v1109 = vpack.c.b16 %v751, %v750
  %v1110 = vpack.c.b16 %v753, %v752
  %v1111 = vpack.c.b16 %v755, %v754
  %v1112 = vpack.c.b16 %v757, %v756
  %v1113 = vpack.c.b16 %v759, %v758
  %v1114 = vpack.c.b16 %v761, %v760
  %v1115 = vpack.c.b16 %v763, %v762
  %v1116 = vpack.c.b16 %v765, %v764
  %v1117 = vpack.c.b16 %v767, %v766
  %v1118 = vpack.c.b16 %v769, %v768
  %v1119 = vpack.c.b16 %v771, %v770
  %v1120 = vpack.c.b16 %v773, %v772
  %v1121 = vpack.c.b16 %v775, %v774
  %v1122 = vpack.c.b16 %v777, %v776
  %v1123 = vpack.c.b16 %v779, %v778
  %v1124 = vpack.c.b16 %v781, %v780
  %v1125 = vpack.c.b16 %v783, %v782
  %v1126 = vpack.c.b16 %v785, %v784
  %v1127 = vpack.c.b16 %v787, %v786
  %v1128 = vpack.c.b16 %v789, %v788
  %v1129 = vpack.c.b16 %v791, %v790
  %v1130 = vpack.c.b16 %v793, %v792
  %v1131 = vpack.c.b16 %v795, %v794
  %v1132 = vpack.c.b16 %v797, %v796
  %v1133 = vpack.c.b16 %v799, %v798
  %v1134 = vpack.c.b16 %v801, %v800
  %v1135 = vpack.c.b16 %v803, %v802
  %v1136 = vpack.c.b16 %v805, %v804
  %v1137 = vpack.c.b16 %v807, %v806
  %v1138 = vpack.c.b16 %v809, %v808
  %v1139 = vpack.c.b16 %v811, %v810
  %v1140 = vpack.c.b16 %v813, %v812
  %v1141 = vpack.c.b16 %v815, %v814
  %v1142 = vpack.c.b16 %v817, %v816
  %v1143 = vpack.c.b16 %v819, %v818
  %v1144 = vpack.c.b16 %v821, %v820
  %v1145 = vpack.c.b16 %v823, %v822
  %v1146 = vpack.c.b16 %v825, %v824
  %v1147 = vpack.c.b16 %v827, %v826
  %v1148 = vpack.c.b16 %v829, %v828
  %v1149 = vpack.c.b16 %v831, %v830
  %v1150 = vpack.c.b16 %v833, %v832
  %v1151 = vpack.c.b16 %v835, %v834
  %v1152 = vpack.c.b16 %v837, %v836
  %v1153 = vpack.c.b16 %v839, %v838
  %v1154 = vpack.c.b16 %v841, %v840
  %v1155 = vpack.c.b16 %v843, %v842
  %v1156 = vpack.c.b16 %v845, %v844
  %v1157 = vpack.c.b16 %v847, %v846
  %v1158 = vpack.c.b16 %v849, %v848
  %v1159 = vpack.c.b16 %v851, %v850
  %v1160 = vpack.c.b16 %v853, %v852
  %v1161 = vpack.c.b16 %v855, %v854
  %v1162 = vpack.c.b16 %v857, %v856
  %v1163 = vpack.c.b16 %v859, %v858
  %v1164 = vpack.c.b16 %v861, %v860
  %v1165 = vpack.c.b16 %v863, %v862
  %v1166 = vpack.c.b16 %v865, %v864
  %v1167 = vpack.c.b16 %v867, %v866
  %v1168 = vpack.c.b16 %v869, %v868
  %v1169 = vpack.c.b16 %v871, %v870
  %v1170 = vpack.c.b16 %v873, %v872
  %v1171 = vpack.c.b16 %v875, %v874
  %v1172 = vpack.c.b16 %v877, %v876
  %v1173 = vpack.c.b16 %v879, %v878
  %v1174 = vpack.c.b16 %v881, %v880
  %v1175 = vpack.c.b16 %v883, %v882
  %v1176 = vpack.c.b16 %v885, %v884
  %v1177 = vpack.c.b16 %v887, %v886
  %v1178 = vpack.c.b16 %v889, %v888
  %v1179 = vpack.c.b16 %v891, %v890
  %v1180 = vpack.c.b16 %v893, %v892
  %v1181 = vpack.c.b16 %v895, %v894
  %v1182 = vpack.c.b16 %v897, %v896
  %v1183 = vpack.c.b16 %v899, %v898
  %v1184 = vpack.c.b16 %v901, %v900
  %v1185 = vpack.c.b16 %v903, %v902
  %v1186 = vpack.c.b16 %v905, %v904
  %v1187 = vpack.c.b16 %v907, %v906
  %v1188 = vpack.c.b16 %v909, %v908
  %v1189 = vpack.c.b16 %v911, %v910
  %v1190 = vpack.c.b16 %v913, %v912
  %v1191 = vpack.c.b16 %v915, %v914
  %v1192 = vpack.c.b16 %v917, %v916
  %v1193 = vpack.c.b16 %v919, %v918
  %v1194 = vpack.c.b16 %v921, %v920
  %v1195 = vpack.c.b16 %v923, %v922
  %v1196 = vpack.c.b16 %v925, %v924
  %v1197 = vpack.c.b16 %v927, %v926
  %v1198 = vpack.c.b16 %v929, %v928
  %v1199 = vpack.c.b16 %v931, %v930
  %v1200 = vpack.c.b16 %v933, %v932
  %v1201 = vpack.c.b16 %v935, %v934
  %v1202 = vpack.c.b16 %v937, %v936
  %v1203 = vpack.c.b16 %v939, %v938
  %v1204 = vpack.c.b16 %v941, %v940
  %v1205 = vpack.c.b16 %v943, %v942
  %v1206 = vpack.c.b16 %v945, %v944
  %v1207 = vpack.c.b16 %v947, %v946
  %v1208 = vpack.c.b16 %v949, %v948
  %v1209 = vpack.c.b16 %v951, %v950
  %v1210 = vpack.c.b16 %v953, %v952
  %v1211 = vpack.c.b16 %v955, %v954
  %v1212 = vpack.c.b16 %v957, %v956
  %v1213 = vpack.c.b16 %v959, %v958
  %v1214 = vpack.c.b16 %v961, %v960
  %v1215 = vpack.c.b16 %v963, %v962
  %v1216 = vpack.c.b16 %v965, %v964
  %v1217 = vpack.c.b16 %v967, %v966
  %v1218 = vpack.c.b16 %v969, %v968
  %v1219 = vpack.c.b16 %v971, %v970
  %v1220 = vpack.c.b16 %v973, %v972
  %v1221 = vpack.c.b16 %v975, %v974
  %v1222 = vpack.c.b16 %v977, %v976
  %v1223 = vpack.c.b16 %v979, %v978
  %v1224 = vpack.c.b16 %v981, %v980
  %v1225 = vpack.c.b16 %v983, %v982
  %v1226 = vpack.c.b16 %v985, %v984
  %v1227 = vpack.c.b16 %v987, %v986
  %v1228 = vpack.c.b16 %v989, %v988
  %v1229 = vpack.c.b16 %v991, %v990
  %v1230 = vpack.c.b16 %v993, %v992
  %v1231 = vpack.c.b16 %v995, %v994
  %v1232 = vpack.c.b16 %v997, %v996
  %v1233 = vpack.c.b16 %v999, %v998
  %v1234 = vpack.c.b16 %v1001, %v1000
  %v1235 = vpack.c.b16 %v1003, %v1002
  %v1236 = vpack.c.b16 %v1005, %v1004
  %v1237 = vpack.c.b16 %v1007, %v1006
  %v1238 = vpack.c.b16 %v1009, %v1008
  %v1239 = vpack.c.b16 %v1011, %v1010
  %v1240 = vpack.c.b16 %v1013, %v1012
  %v1241 = vpack.c.b16 %v1015, %v1014
  %v1242 = vpack.c.b16 %v1017, %v1016
  %v1243 = vpack.c.b16 %v1019, %v1018
  %v1244 = vpack.c.b16 %v1021, %v1020
  %v1245 = vpack.c.b16 %v1023, %v1022
  %v1246 = vpack.c.b16 %v1025, %v1024
  %v1247 = vpack.c.b16 %v1027, %v1026
  %v1248 = vpack.c.b16 %v1029, %v1028
  %v1249 = vpack.c.b16 %v1031, %v1030
  %v1250 = vpack.c.b16 %v1033, %v1032
  %v1251 = vpack.c.b16 %v1035, %v1034
  %v1252 = vpack.c.b16 %v1037, %v1036
  %v1253 = vpack.c.b16 %v1039, %v1038
  %v1254 = vpack.c.b16 %v1041, %v1040
  %v1255 = vpack.c.b16 %v1043, %v1042
  %v1256 = vpack.c.b16 %v1045, %v1044
  %v1257 = vpack.c.b16 %v1047, %v1046
  %v1258 = vpack.c.b16 %v1049, %v1048
  %v1259 = vpack.c.b16 %v1051, %v1050
  %v1260 = vpack.c.b16 %v1053, %v1052
  %v1261 = vpack.c.b16 %v1055, %v1054
  %v1262 = vpack.c.b16 %v1057, %v1056
  %v1263 = vpack.c.b16 %v1059, %v1058
  %v1264 = vpack.c.b16 %v1061, %v1060
  %v1265 = vpack.c.b16 %v1063, %v1062
  %v1266 = vpack.c.b16 %v1065, %v1064
  %v1267 = vpack.c.b16 %v1067, %v1066
  %v1268 = vpack.c.b16 %v1069, %v1068
  %v1269 = vpack.c.b16 %v1071, %v1070
  %v1270 = vpack.c.b16 %v1073, %v1072
  %v1271 = vpack.c.b16 %v1075, %v1074
  %v1272 = vpack.c.b16 %v1077, %v1076
  %v1273 = vpack.c.b16 %v1079, %v1078
  %v1274 = vpack.c.b16 %v1081, %v1080
  %v1275 = vpack.c.b16 %v1083, %v1082
  %v1276 = vpack.c.b16 %v1085, %v1084
  %v1277 = vpack.c.b16 %v1087, %v1086
  %v1278 = vpack.c.b16 %v1089, %v1088
  %v1279 = vpack.c.b16 %v1091, %v1090
  %v1280 = vpack.c.b16 %v1093, %v1092
  %v1281 = vpack.c.b16 %v1095, %v1094
  %v1282 = vpack.c.b16 %v1097, %v1096
  %v1283 = vpack.c.b16 %v1099, %v1098
  %v1284 = vpack.c.b16 %v1101, %v1100
  %v1285 = vpack.c.b16 %v1103, %v1102
  %v1286 = vpack.c.b16 %v1105, %v1104
  %v1287 = vpack.c.b16 %v1107, %v1106
  %v1484 = vunpack.c.l.b16 %v372
  %v1485 = vunpack.c.l.b16 %v373
  %v1486 = vunpack.c.l.b16 %v374
  %v1487 = vunpack.c.l.b16 %v375
  %v1488 = vunpack.c.l.b16 %v376
  %v1489 = vunpack.c.l.b16 %v377
  %v1490 = vunpack.c.l.b16 %v378
  %v1491 = vunpack.c.l.b16 %v379
  %v1492 = vunpack.c.l.b16 %v380
  %v1493 = vunpack.c.l.b16 %v381
  %v1494 = vunpack.c.l.b16 %v382
  %v1495 = vunpack.c.l.b16 %v383
  %v1496 = vunpack.c.l.b16 %v384
  %v1497 = vunpack.c.l.b16 %v385
  %v1498 = vunpack.c.l.b16 %v386
  %v1499 = vunpack.c.l.b16 %v387
  %v1500 = vpack.c.b16 %v1485, %v1484
  %v1501 = vpack.c.b16 %v1487, %v1486
  %v1502 = vpack.c.b16 %v1489, %v1488
  %v1503 = vpack.c.b16 %v1491, %v1490
  %v1504 = vpack.c.b16 %v1493, %v1492
  %v1505 = vpack.c.b16 %v1495, %v1494
  %v1506 = vpack.c.b16 %v1497, %v1496
  %v1507 = vpack.c.b16 %v1499, %v1498
  %1516 = vmatprep.subr.bf16.mxu0 0
  %1517 = vmatpush1.bf16.msra.mxu0 %v1507
  %1518 = vmatprep.subr.bf16.mxu0 0
  %1519 = vmatpush1.bf16.msra.mxu0 %v1506
  %1520 = vmatprep.subr.bf16.mxu0 0
  %1521 = vmatpush1.bf16.msra.mxu0 %v1505
  %1522 = vmatprep.subr.bf16.mxu0 0
  %1523 = vmatpush1.bf16.msra.mxu0 %v1504
  %1524 = vmatprep.subr.bf16.mxu0 0
  %1525 = vmatpush1.bf16.msra.mxu0 %v1503
  %1526 = vmatprep.subr.bf16.mxu0 0
  %1527 = vmatpush1.bf16.msra.mxu0 %v1502
  %1528 = vmatprep.subr.bf16.mxu0 0
  %1529 = vmatpush1.bf16.msra.mxu0 %v1501
  %1530 = vmatprep.subr.bf16.mxu0 0
  %1531 = vmatpush1.bf16.msra.mxu0 %v1500
  %1532 = vmatprep.subr.bf16.mxu0 0
  %1533 = vmatpush2.bf16.msra.mxu0 0
  %1534 = vmatprep.subr.bf16.mxu0 0
  %1535 = vmatpush2.bf16.msra.mxu0 0
  %1536 = vmatprep.subr.bf16.mxu0 0
  %1537 = vmatpush2.bf16.msra.mxu0 0
  %1538 = vmatprep.subr.bf16.mxu0 0
  %1539 = vmatpush2.bf16.msra.mxu0 0
  %1540 = vmatprep.subr.bf16.mxu0 0
  %1541 = vmatpush2.bf16.msra.mxu0 0
  %1542 = vmatprep.subr.bf16.mxu0 0
  %1543 = vmatpush2.bf16.msra.mxu0 0
  %1544 = vmatprep.subr.bf16.mxu0 0
  %1545 = vmatpush2.bf16.msra.mxu0 0
  %1546 = vmatprep.subr.bf16.mxu0 0
  %1547 = vmatpush2.bf16.msra.mxu0 0
  %1548 = vmatprep.mubr.bf16.mxu0 0
  %1549 = vmatmul.mubr.bf16.gmra.mxu0 %v1108
  %v1550 = vpop.f32.mrf.mxu0
  %v1551 = vadd.f32 0.0, %v1550
  %v1552 = vpop.f32.mrf.mxu0
  %v1553 = vpop.f32.mrf.mxu0
  %v1554 = vadd.f32 0.0, %v1553
  %v1555 = vpop.f32.mrf.mxu0
  %1556 = vmatprep.mubr.bf16.mxu0 0
  %1557 = vmatmul.mubr.bf16.gmra.mxu0 %v1109
  %v1558 = vpop.f32.mrf.mxu0
  %v1559 = vadd.f32 0.0, %v1558
  %v1560 = vpop.f32.mrf.mxu0
  %v1561 = vpop.f32.mrf.mxu0
  %v1562 = vadd.f32 0.0, %v1561
  %v1563 = vpop.f32.mrf.mxu0
  %1564 = vmatprep.mubr.bf16.mxu0 0
  %1565 = vmatmul.mubr.bf16.gmra.mxu0 %v1110
  %v1566 = vpop.f32.mrf.mxu0
  %v1567 = vadd.f32 0.0, %v1566
  %v1568 = vpop.f32.mrf.mxu0
  %v1569 = vpop.f32.mrf.mxu0
  %v1570 = vadd.f32 0.0, %v1569
  %v1571 = vpop.f32.mrf.mxu0
  %1572 = vmatprep.mubr.bf16.mxu0 0
  %1573 = vmatmul.mubr.bf16.gmra.mxu0 %v1111
  %v1574 = vpop.f32.mrf.mxu0
  %v1575 = vadd.f32 0.0, %v1574
  %v1576 = vpop.f32.mrf.mxu0
  %v1577 = vpop.f32.mrf.mxu0
  %v1578 = vadd.f32 0.0, %v1577
  %v1579 = vpop.f32.mrf.mxu0
  %1580 = vmatprep.mubr.bf16.mxu0 0
  %1581 = vmatmul.mubr.bf16.gmra.mxu0 %v1112
  %v1582 = vpop.f32.mrf.mxu0
  %v1583 = vadd.f32 0.0, %v1582
  %v1584 = vpop.f32.mrf.mxu0
  %v1585 = vpop.f32.mrf.mxu0
  %v1586 = vadd.f32 0.0, %v1585
  %v1587 = vpop.f32.mrf.mxu0
  %1588 = vmatprep.mubr.bf16.mxu0 0
  %1589 = vmatmul.mubr.bf16.gmra.mxu0 %v1113
  %v1590 = vpop.f32.mrf.mxu0
  %v1591 = vadd.f32 0.0, %v1590
  %v1592 = vpop.f32.mrf.mxu0
  %v1593 = vpop.f32.mrf.mxu0
  %v1594 = vadd.f32 0.0, %v1593
  %v1595 = vpop.f32.mrf.mxu0
  %1596 = vmatprep.mubr.bf16.mxu0 0
  %1597 = vmatmul.mubr.bf16.gmra.mxu0 %v1114
  %v1598 = vpop.f32.mrf.mxu0
  %v1599 = vadd.f32 0.0, %v1598
  %v1600 = vpop.f32.mrf.mxu0
  %v1601 = vpop.f32.mrf.mxu0
  %v1602 = vadd.f32 0.0, %v1601
  %v1603 = vpop.f32.mrf.mxu0
  %1604 = vmatprep.mubr.bf16.mxu0 0
  %1605 = vmatmul.mubr.bf16.gmra.mxu0 %v1115
  %v1606 = vpop.f32.mrf.mxu0
  %v1607 = vadd.f32 0.0, %v1606
  %v1608 = vpop.f32.mrf.mxu0
  %v1609 = vpop.f32.mrf.mxu0
  %v1610 = vadd.f32 0.0, %v1609
  %v1611 = vpop.f32.mrf.mxu0
  %1612 = vmatprep.mubr.bf16.mxu0 0
  %1613 = vmatmul.mubr.bf16.gmra.mxu0 %v1116
  %v1614 = vpop.f32.mrf.mxu0
  %v1615 = vadd.f32 0.0, %v1614
  %v1616 = vpop.f32.mrf.mxu0
  %v1617 = vpop.f32.mrf.mxu0
  %v1618 = vadd.f32 0.0, %v1617
  %v1619 = vpop.f32.mrf.mxu0
  %1620 = vmatprep.mubr.bf16.mxu0 0
  %1621 = vmatmul.mubr.bf16.gmra.mxu0 %v1117
  %v1622 = vpop.f32.mrf.mxu0
  %v1623 = vadd.f32 0.0, %v1622
  %v1624 = vpop.f32.mrf.mxu0
  %v1625 = vpop.f32.mrf.mxu0
  %v1626 = vadd.f32 0.0, %v1625
  %v1627 = vpop.f32.mrf.mxu0
  %1628 = vmatprep.mubr.bf16.mxu0 0
  %1629 = vmatmul.mubr.bf16.gmra.mxu0 %v1118
  %v1630 = vpop.f32.mrf.mxu0
  %v1631 = vadd.f32 0.0, %v1630
  %v1632 = vpop.f32.mrf.mxu0
  %v1633 = vpop.f32.mrf.mxu0
  %v1634 = vadd.f32 0.0, %v1633
  %v1635 = vpop.f32.mrf.mxu0
  %1636 = vmatprep.mubr.bf16.mxu0 0
  %1637 = vmatmul.mubr.bf16.gmra.mxu0 %v1119
  %v1638 = vpop.f32.mrf.mxu0
  %v1639 = vadd.f32 0.0, %v1638
  %v1640 = vpop.f32.mrf.mxu0
  %v1641 = vpop.f32.mrf.mxu0
  %v1642 = vadd.f32 0.0, %v1641
  %v1643 = vpop.f32.mrf.mxu0
  %1644 = vmatprep.mubr.bf16.mxu0 0
  %1645 = vmatmul.mubr.bf16.gmra.mxu0 %v1120
  %v1646 = vpop.f32.mrf.mxu0
  %v1647 = vadd.f32 0.0, %v1646
  %v1648 = vpop.f32.mrf.mxu0
  %v1649 = vpop.f32.mrf.mxu0
  %v1650 = vadd.f32 0.0, %v1649
  %v1651 = vpop.f32.mrf.mxu0
  %1652 = vmatprep.mubr.bf16.mxu0 0
  %1653 = vmatmul.mubr.bf16.gmra.mxu0 %v1121
  %v1654 = vpop.f32.mrf.mxu0
  %v1655 = vadd.f32 0.0, %v1654
  %v1656 = vpop.f32.mrf.mxu0
  %v1657 = vpop.f32.mrf.mxu0
  %v1658 = vadd.f32 0.0, %v1657
  %v1659 = vpop.f32.mrf.mxu0
  %1660 = vmatprep.mubr.bf16.mxu0 0
  %1661 = vmatmul.mubr.bf16.gmra.mxu0 %v1122
  %v1662 = vpop.f32.mrf.mxu0
  %v1663 = vadd.f32 0.0, %v1662
  %v1664 = vpop.f32.mrf.mxu0
  %v1665 = vpop.f32.mrf.mxu0
  %v1666 = vadd.f32 0.0, %v1665
  %v1667 = vpop.f32.mrf.mxu0
  %1668 = vmatprep.mubr.bf16.mxu0 0
  %1669 = vmatmul.mubr.bf16.gmra.mxu0 %v1123
  %v1670 = vpop.f32.mrf.mxu0
  %v1671 = vadd.f32 0.0, %v1670
  %v1672 = vpop.f32.mrf.mxu0
  %v1673 = vpop.f32.mrf.mxu0
  %v1674 = vadd.f32 0.0, %v1673
  %v1675 = vpop.f32.mrf.mxu0
  %1676 = vmatprep.mubr.bf16.mxu0 0
  %1677 = vmatmul.mubr.bf16.gmra.mxu0 %v1124
  %v1678 = vpop.f32.mrf.mxu0
  %v1679 = vadd.f32 0.0, %v1678
  %v1680 = vpop.f32.mrf.mxu0
  %v1681 = vpop.f32.mrf.mxu0
  %v1682 = vadd.f32 0.0, %v1681
  %v1683 = vpop.f32.mrf.mxu0
  %1684 = vmatprep.mubr.bf16.mxu0 0
  %1685 = vmatmul.mubr.bf16.gmra.mxu0 %v1125
  %v1686 = vpop.f32.mrf.mxu0
  %v1687 = vadd.f32 0.0, %v1686
  %v1688 = vpop.f32.mrf.mxu0
  %v1689 = vpop.f32.mrf.mxu0
  %v1690 = vadd.f32 0.0, %v1689
  %v1691 = vpop.f32.mrf.mxu0
  %1692 = vmatprep.mubr.bf16.mxu0 0
  %1693 = vmatmul.mubr.bf16.gmra.mxu0 %v1126
  %v1694 = vpop.f32.mrf.mxu0
  %v1695 = vadd.f32 0.0, %v1694
  %v1696 = vpop.f32.mrf.mxu0
  %v1697 = vpop.f32.mrf.mxu0
  %v1698 = vadd.f32 0.0, %v1697
  %v1699 = vpop.f32.mrf.mxu0
  %1700 = vmatprep.mubr.bf16.mxu0 0
  %1701 = vmatmul.mubr.bf16.gmra.mxu0 %v1127
  %v1702 = vpop.f32.mrf.mxu0
  %v1703 = vadd.f32 0.0, %v1702
  %v1704 = vpop.f32.mrf.mxu0
  %v1705 = vpop.f32.mrf.mxu0
  %v1706 = vadd.f32 0.0, %v1705
  %v1707 = vpop.f32.mrf.mxu0
  %1708 = vmatprep.mubr.bf16.mxu0 0
  %1709 = vmatmul.mubr.bf16.gmra.mxu0 %v1128
  %v1710 = vpop.f32.mrf.mxu0
  %v1711 = vadd.f32 0.0, %v1710
  %v1712 = vpop.f32.mrf.mxu0
  %v1713 = vpop.f32.mrf.mxu0
  %v1714 = vadd.f32 0.0, %v1713
  %v1715 = vpop.f32.mrf.mxu0
  %1716 = vmatprep.mubr.bf16.mxu0 0
  %1717 = vmatmul.mubr.bf16.gmra.mxu0 %v1129
  %v1718 = vpop.f32.mrf.mxu0
  %v1719 = vadd.f32 0.0, %v1718
  %v1720 = vpop.f32.mrf.mxu0
  %v1721 = vpop.f32.mrf.mxu0
  %v1722 = vadd.f32 0.0, %v1721
  %v1723 = vpop.f32.mrf.mxu0
  %1724 = vmatprep.mubr.bf16.mxu0 0
  %1725 = vmatmul.mubr.bf16.gmra.mxu0 %v1130
  %v1726 = vpop.f32.mrf.mxu0
  %v1727 = vadd.f32 0.0, %v1726
  %v1728 = vpop.f32.mrf.mxu0
  %v1729 = vpop.f32.mrf.mxu0
  %v1730 = vadd.f32 0.0, %v1729
  %v1731 = vpop.f32.mrf.mxu0
  %1732 = vmatprep.mubr.bf16.mxu0 0
  %1733 = vmatmul.mubr.bf16.gmra.mxu0 %v1131
  %v1734 = vpop.f32.mrf.mxu0
  %v1735 = vadd.f32 0.0, %v1734
  %v1736 = vpop.f32.mrf.mxu0
  %v1737 = vpop.f32.mrf.mxu0
  %v1738 = vadd.f32 0.0, %v1737
  %v1739 = vpop.f32.mrf.mxu0
  %1740 = vmatprep.mubr.bf16.mxu0 0
  %1741 = vmatmul.mubr.bf16.gmra.mxu0 %v1132
  %v1742 = vpop.f32.mrf.mxu0
  %v1743 = vadd.f32 0.0, %v1742
  %v1744 = vpop.f32.mrf.mxu0
  %v1745 = vpop.f32.mrf.mxu0
  %v1746 = vadd.f32 0.0, %v1745
  %v1747 = vpop.f32.mrf.mxu0
  %1748 = vmatprep.mubr.bf16.mxu0 0
  %1749 = vmatmul.mubr.bf16.gmra.mxu0 %v1133
  %v1750 = vpop.f32.mrf.mxu0
  %v1751 = vadd.f32 0.0, %v1750
  %v1752 = vpop.f32.mrf.mxu0
  %v1753 = vpop.f32.mrf.mxu0
  %v1754 = vadd.f32 0.0, %v1753
  %v1755 = vpop.f32.mrf.mxu0
  %1756 = vmatprep.mubr.bf16.mxu0 0
  %1757 = vmatmul.mubr.bf16.gmra.mxu0 %v1134
  %v1758 = vpop.f32.mrf.mxu0
  %v1759 = vadd.f32 0.0, %v1758
  %v1760 = vpop.f32.mrf.mxu0
  %v1761 = vpop.f32.mrf.mxu0
  %v1762 = vadd.f32 0.0, %v1761
  %v1763 = vpop.f32.mrf.mxu0
  %1764 = vmatprep.mubr.bf16.mxu0 0
  %1765 = vmatmul.mubr.bf16.gmra.mxu0 %v1135
  %v1766 = vpop.f32.mrf.mxu0
  %v1767 = vadd.f32 0.0, %v1766
  %v1768 = vpop.f32.mrf.mxu0
  %v1769 = vpop.f32.mrf.mxu0
  %v1770 = vadd.f32 0.0, %v1769
  %v1771 = vpop.f32.mrf.mxu0
  %1772 = vmatprep.mubr.bf16.mxu0 0
  %1773 = vmatmul.mubr.bf16.gmra.mxu0 %v1136
  %v1774 = vpop.f32.mrf.mxu0
  %v1775 = vadd.f32 0.0, %v1774
  %v1776 = vpop.f32.mrf.mxu0
  %v1777 = vpop.f32.mrf.mxu0
  %v1778 = vadd.f32 0.0, %v1777
  %v1779 = vpop.f32.mrf.mxu0
  %1780 = vmatprep.mubr.bf16.mxu0 0
  %1781 = vmatmul.mubr.bf16.gmra.mxu0 %v1137
  %v1782 = vpop.f32.mrf.mxu0
  %v1783 = vadd.f32 0.0, %v1782
  %v1784 = vpop.f32.mrf.mxu0
  %v1785 = vpop.f32.mrf.mxu0
  %v1786 = vadd.f32 0.0, %v1785
  %v1787 = vpop.f32.mrf.mxu0
  %1788 = vmatprep.mubr.bf16.mxu0 0
  %1789 = vmatmul.mubr.bf16.gmra.mxu0 %v1138
  %v1790 = vpop.f32.mrf.mxu0
  %v1791 = vadd.f32 0.0, %v1790
  %v1792 = vpop.f32.mrf.mxu0
  %v1793 = vpop.f32.mrf.mxu0
  %v1794 = vadd.f32 0.0, %v1793
  %v1795 = vpop.f32.mrf.mxu0
  %1796 = vmatprep.mubr.bf16.mxu0 0
  %1797 = vmatmul.mubr.bf16.gmra.mxu0 %v1139
  %v1798 = vpop.f32.mrf.mxu0
  %v1799 = vadd.f32 0.0, %v1798
  %v1800 = vpop.f32.mrf.mxu0
  %v1801 = vpop.f32.mrf.mxu0
  %v1802 = vadd.f32 0.0, %v1801
  %v1803 = vpop.f32.mrf.mxu0
  %1804 = vmatprep.mubr.bf16.mxu0 0
  %1805 = vmatmul.mubr.bf16.gmra.mxu0 %v1140
  %v1806 = vpop.f32.mrf.mxu0
  %v1807 = vadd.f32 0.0, %v1806
  %v1808 = vpop.f32.mrf.mxu0
  %v1809 = vpop.f32.mrf.mxu0
  %v1810 = vadd.f32 0.0, %v1809
  %v1811 = vpop.f32.mrf.mxu0
  %1812 = vmatprep.mubr.bf16.mxu0 0
  %1813 = vmatmul.mubr.bf16.gmra.mxu0 %v1141
  %v1814 = vpop.f32.mrf.mxu0
  %v1815 = vadd.f32 0.0, %v1814
  %v1816 = vpop.f32.mrf.mxu0
  %v1817 = vpop.f32.mrf.mxu0
  %v1818 = vadd.f32 0.0, %v1817
  %v1819 = vpop.f32.mrf.mxu0
  %1820 = vmatprep.mubr.bf16.mxu0 0
  %1821 = vmatmul.mubr.bf16.gmra.mxu0 %v1142
  %v1822 = vpop.f32.mrf.mxu0
  %v1823 = vadd.f32 0.0, %v1822
  %v1824 = vpop.f32.mrf.mxu0
  %v1825 = vpop.f32.mrf.mxu0
  %v1826 = vadd.f32 0.0, %v1825
  %v1827 = vpop.f32.mrf.mxu0
  %1828 = vmatprep.mubr.bf16.mxu0 0
  %1829 = vmatmul.mubr.bf16.gmra.mxu0 %v1143
  %v1830 = vpop.f32.mrf.mxu0
  %v1831 = vadd.f32 0.0, %v1830
  %v1832 = vpop.f32.mrf.mxu0
  %v1833 = vpop.f32.mrf.mxu0
  %v1834 = vadd.f32 0.0, %v1833
  %v1835 = vpop.f32.mrf.mxu0
  %1836 = vmatprep.mubr.bf16.mxu0 0
  %1837 = vmatmul.mubr.bf16.gmra.mxu0 %v1144
  %v1838 = vpop.f32.mrf.mxu0
  %v1839 = vadd.f32 0.0, %v1838
  %v1840 = vpop.f32.mrf.mxu0
  %v1841 = vpop.f32.mrf.mxu0
  %v1842 = vadd.f32 0.0, %v1841
  %v1843 = vpop.f32.mrf.mxu0
  %1844 = vmatprep.mubr.bf16.mxu0 0
  %1845 = vmatmul.mubr.bf16.gmra.mxu0 %v1145
  %v1846 = vpop.f32.mrf.mxu0
  %v1847 = vadd.f32 0.0, %v1846
  %v1848 = vpop.f32.mrf.mxu0
  %v1849 = vpop.f32.mrf.mxu0
  %v1850 = vadd.f32 0.0, %v1849
  %v1851 = vpop.f32.mrf.mxu0
  %1852 = vmatprep.mubr.bf16.mxu0 0
  %1853 = vmatmul.mubr.bf16.gmra.mxu0 %v1146
  %v1854 = vpop.f32.mrf.mxu0
  %v1855 = vadd.f32 0.0, %v1854
  %v1856 = vpop.f32.mrf.mxu0
  %v1857 = vpop.f32.mrf.mxu0
  %v1858 = vadd.f32 0.0, %v1857
  %v1859 = vpop.f32.mrf.mxu0
  %1860 = vmatprep.mubr.bf16.mxu0 0
  %1861 = vmatmul.mubr.bf16.gmra.mxu0 %v1147
  %v1862 = vpop.f32.mrf.mxu0
  %v1863 = vadd.f32 0.0, %v1862
  %v1864 = vpop.f32.mrf.mxu0
  %v1865 = vpop.f32.mrf.mxu0
  %v1866 = vadd.f32 0.0, %v1865
  %v1867 = vpop.f32.mrf.mxu0
  %1868 = vmatprep.mubr.bf16.mxu0 0
  %1869 = vmatmul.mubr.bf16.gmra.mxu0 %v1148
  %v1870 = vpop.f32.mrf.mxu0
  %v1871 = vadd.f32 0.0, %v1870
  %v1872 = vpop.f32.mrf.mxu0
  %v1873 = vpop.f32.mrf.mxu0
  %v1874 = vadd.f32 0.0, %v1873
  %v1875 = vpop.f32.mrf.mxu0
  %1876 = vmatprep.mubr.bf16.mxu0 0
  %1877 = vmatmul.mubr.bf16.gmra.mxu0 %v1149
  %v1878 = vpop.f32.mrf.mxu0
  %v1879 = vadd.f32 0.0, %v1878
  %v1880 = vpop.f32.mrf.mxu0
  %v1881 = vpop.f32.mrf.mxu0
  %v1882 = vadd.f32 0.0, %v1881
  %v1883 = vpop.f32.mrf.mxu0
  %1884 = vmatprep.mubr.bf16.mxu0 0
  %1885 = vmatmul.mubr.bf16.gmra.mxu0 %v1150
  %v1886 = vpop.f32.mrf.mxu0
  %v1887 = vadd.f32 0.0, %v1886
  %v1888 = vpop.f32.mrf.mxu0
  %v1889 = vpop.f32.mrf.mxu0
  %v1890 = vadd.f32 0.0, %v1889
  %v1891 = vpop.f32.mrf.mxu0
  %1892 = vmatprep.mubr.bf16.mxu0 0
  %1893 = vmatmul.mubr.bf16.gmra.mxu0 %v1151
  %v1894 = vpop.f32.mrf.mxu0
  %v1895 = vadd.f32 0.0, %v1894
  %v1896 = vpop.f32.mrf.mxu0
  %v1897 = vpop.f32.mrf.mxu0
  %v1898 = vadd.f32 0.0, %v1897
  %v1899 = vpop.f32.mrf.mxu0
  %1900 = vmatprep.mubr.bf16.mxu0 0
  %1901 = vmatmul.mubr.bf16.gmra.mxu0 %v1152
  %v1902 = vpop.f32.mrf.mxu0
  %v1903 = vadd.f32 0.0, %v1902
  %v1904 = vpop.f32.mrf.mxu0
  %v1905 = vpop.f32.mrf.mxu0
  %v1906 = vadd.f32 0.0, %v1905
  %v1907 = vpop.f32.mrf.mxu0
  %1908 = vmatprep.mubr.bf16.mxu0 0
  %1909 = vmatmul.mubr.bf16.gmra.mxu0 %v1153
  %v1910 = vpop.f32.mrf.mxu0
  %v1911 = vadd.f32 0.0, %v1910
  %v1912 = vpop.f32.mrf.mxu0
  %v1913 = vpop.f32.mrf.mxu0
  %v1914 = vadd.f32 0.0, %v1913
  %v1915 = vpop.f32.mrf.mxu0
  %1916 = vmatprep.mubr.bf16.mxu0 0
  %1917 = vmatmul.mubr.bf16.gmra.mxu0 %v1154
  %v1918 = vpop.f32.mrf.mxu0
  %v1919 = vadd.f32 0.0, %v1918
  %v1920 = vpop.f32.mrf.mxu0
  %v1921 = vpop.f32.mrf.mxu0
  %v1922 = vadd.f32 0.0, %v1921
  %v1923 = vpop.f32.mrf.mxu0
  %1924 = vmatprep.mubr.bf16.mxu0 0
  %1925 = vmatmul.mubr.bf16.gmra.mxu0 %v1155
  %v1926 = vpop.f32.mrf.mxu0
  %v1927 = vadd.f32 0.0, %v1926
  %v1928 = vpop.f32.mrf.mxu0
  %v1929 = vpop.f32.mrf.mxu0
  %v1930 = vadd.f32 0.0, %v1929
  %v1931 = vpop.f32.mrf.mxu0
  %1932 = vmatprep.mubr.bf16.mxu0 0
  %1933 = vmatmul.mubr.bf16.gmra.mxu0 %v1156
  %v1934 = vpop.f32.mrf.mxu0
  %v1935 = vadd.f32 0.0, %v1934
  %v1936 = vpop.f32.mrf.mxu0
  %v1937 = vpop.f32.mrf.mxu0
  %v1938 = vadd.f32 0.0, %v1937
  %v1939 = vpop.f32.mrf.mxu0
  %1940 = vmatprep.mubr.bf16.mxu0 0
  %1941 = vmatmul.mubr.bf16.gmra.mxu0 %v1157
  %v1942 = vpop.f32.mrf.mxu0
  %v1943 = vadd.f32 0.0, %v1942
  %v1944 = vpop.f32.mrf.mxu0
  %v1945 = vpop.f32.mrf.mxu0
  %v1946 = vadd.f32 0.0, %v1945
  %v1947 = vpop.f32.mrf.mxu0
  %1948 = vmatprep.mubr.bf16.mxu0 0
  %1949 = vmatmul.mubr.bf16.gmra.mxu0 %v1158
  %v1950 = vpop.f32.mrf.mxu0
  %v1951 = vadd.f32 0.0, %v1950
  %v1952 = vpop.f32.mrf.mxu0
  %v1953 = vpop.f32.mrf.mxu0
  %v1954 = vadd.f32 0.0, %v1953
  %v1955 = vpop.f32.mrf.mxu0
  %1956 = vmatprep.mubr.bf16.mxu0 0
  %1957 = vmatmul.mubr.bf16.gmra.mxu0 %v1159
  %v1958 = vpop.f32.mrf.mxu0
  %v1959 = vadd.f32 0.0, %v1958
  %v1960 = vpop.f32.mrf.mxu0
  %v1961 = vpop.f32.mrf.mxu0
  %v1962 = vadd.f32 0.0, %v1961
  %v1963 = vpop.f32.mrf.mxu0
  %1964 = vmatprep.mubr.bf16.mxu0 0
  %1965 = vmatmul.mubr.bf16.gmra.mxu0 %v1160
  %v1966 = vpop.f32.mrf.mxu0
  %v1967 = vadd.f32 0.0, %v1966
  %v1968 = vpop.f32.mrf.mxu0
  %v1969 = vpop.f32.mrf.mxu0
  %v1970 = vadd.f32 0.0, %v1969
  %v1971 = vpop.f32.mrf.mxu0
  %1972 = vmatprep.mubr.bf16.mxu0 0
  %1973 = vmatmul.mubr.bf16.gmra.mxu0 %v1161
  %v1974 = vpop.f32.mrf.mxu0
  %v1975 = vadd.f32 0.0, %v1974
  %v1976 = vpop.f32.mrf.mxu0
  %v1977 = vpop.f32.mrf.mxu0
  %v1978 = vadd.f32 0.0, %v1977
  %v1979 = vpop.f32.mrf.mxu0
  %1980 = vmatprep.mubr.bf16.mxu0 0
  %1981 = vmatmul.mubr.bf16.gmra.mxu0 %v1162
  %v1982 = vpop.f32.mrf.mxu0
  %v1983 = vadd.f32 0.0, %v1982
  %v1984 = vpop.f32.mrf.mxu0
  %v1985 = vpop.f32.mrf.mxu0
  %v1986 = vadd.f32 0.0, %v1985
  %v1987 = vpop.f32.mrf.mxu0
  %1988 = vmatprep.mubr.bf16.mxu0 0
  %1989 = vmatmul.mubr.bf16.gmra.mxu0 %v1163
  %v1990 = vpop.f32.mrf.mxu0
  %v1991 = vadd.f32 0.0, %v1990
  %v1992 = vpop.f32.mrf.mxu0
  %v1993 = vpop.f32.mrf.mxu0
  %v1994 = vadd.f32 0.0, %v1993
  %v1995 = vpop.f32.mrf.mxu0
  %1996 = vmatprep.mubr.bf16.mxu0 0
  %1997 = vmatmul.mubr.bf16.gmra.mxu0 %v1164
  %v1998 = vpop.f32.mrf.mxu0
  %v1999 = vadd.f32 0.0, %v1998
  %v2000 = vpop.f32.mrf.mxu0
  %v2001 = vpop.f32.mrf.mxu0
  %v2002 = vadd.f32 0.0, %v2001
  %v2003 = vpop.f32.mrf.mxu0
  %2004 = vmatprep.mubr.bf16.mxu0 0
  %2005 = vmatmul.mubr.bf16.gmra.mxu0 %v1165
  %v2006 = vpop.f32.mrf.mxu0
  %v2007 = vadd.f32 0.0, %v2006
  %v2008 = vpop.f32.mrf.mxu0
  %v2009 = vpop.f32.mrf.mxu0
  %v2010 = vadd.f32 0.0, %v2009
  %v2011 = vpop.f32.mrf.mxu0
  %2012 = vmatprep.mubr.bf16.mxu0 0
  %2013 = vmatmul.mubr.bf16.gmra.mxu0 %v1166
  %v2014 = vpop.f32.mrf.mxu0
  %v2015 = vadd.f32 0.0, %v2014
  %v2016 = vpop.f32.mrf.mxu0
  %v2017 = vpop.f32.mrf.mxu0
  %v2018 = vadd.f32 0.0, %v2017
  %v2019 = vpop.f32.mrf.mxu0
  %2020 = vmatprep.mubr.bf16.mxu0 0
  %2021 = vmatmul.mubr.bf16.gmra.mxu0 %v1167
  %v2022 = vpop.f32.mrf.mxu0
  %v2023 = vadd.f32 0.0, %v2022
  %v2024 = vpop.f32.mrf.mxu0
  %v2025 = vpop.f32.mrf.mxu0
  %v2026 = vadd.f32 0.0, %v2025
  %v2027 = vpop.f32.mrf.mxu0
  %2028 = vmatprep.mubr.bf16.mxu0 0
  %2029 = vmatmul.mubr.bf16.gmra.mxu0 %v1168
  %v2030 = vpop.f32.mrf.mxu0
  %v2031 = vadd.f32 0.0, %v2030
  %v2032 = vpop.f32.mrf.mxu0
  %v2033 = vpop.f32.mrf.mxu0
  %v2034 = vadd.f32 0.0, %v2033
  %v2035 = vpop.f32.mrf.mxu0
  %2036 = vmatprep.mubr.bf16.mxu0 0
  %2037 = vmatmul.mubr.bf16.gmra.mxu0 %v1169
  %v2038 = vpop.f32.mrf.mxu0
  %v2039 = vadd.f32 0.0, %v2038
  %v2040 = vpop.f32.mrf.mxu0
  %v2041 = vpop.f32.mrf.mxu0
  %v2042 = vadd.f32 0.0, %v2041
  %v2043 = vpop.f32.mrf.mxu0
  %2044 = vmatprep.mubr.bf16.mxu0 0
  %2045 = vmatmul.mubr.bf16.gmra.mxu0 %v1170
  %v2046 = vpop.f32.mrf.mxu0
  %v2047 = vadd.f32 0.0, %v2046
  %v2048 = vpop.f32.mrf.mxu0
  %v2049 = vpop.f32.mrf.mxu0
  %v2050 = vadd.f32 0.0, %v2049
  %v2051 = vpop.f32.mrf.mxu0
  %2052 = vmatprep.mubr.bf16.mxu0 0
  %2053 = vmatmul.mubr.bf16.gmra.mxu0 %v1171
  %v2054 = vpop.f32.mrf.mxu0
  %v2055 = vadd.f32 0.0, %v2054
  %v2056 = vpop.f32.mrf.mxu0
  %v2057 = vpop.f32.mrf.mxu0
  %v2058 = vadd.f32 0.0, %v2057
  %v2059 = vpop.f32.mrf.mxu0
  %2060 = vmatprep.mubr.bf16.mxu0 0
  %2061 = vmatmul.mubr.bf16.gmra.mxu0 %v1172
  %v2062 = vpop.f32.mrf.mxu0
  %v2063 = vadd.f32 0.0, %v2062
  %v2064 = vpop.f32.mrf.mxu0
  %v2065 = vpop.f32.mrf.mxu0
  %v2066 = vadd.f32 0.0, %v2065
  %v2067 = vpop.f32.mrf.mxu0
  %2068 = vmatprep.mubr.bf16.mxu0 0
  %2069 = vmatmul.mubr.bf16.gmra.mxu0 %v1173
  %v2070 = vpop.f32.mrf.mxu0
  %v2071 = vadd.f32 0.0, %v2070
  %v2072 = vpop.f32.mrf.mxu0
  %v2073 = vpop.f32.mrf.mxu0
  %v2074 = vadd.f32 0.0, %v2073
  %v2075 = vpop.f32.mrf.mxu0
  %2076 = vmatprep.mubr.bf16.mxu0 0
  %2077 = vmatmul.mubr.bf16.gmra.mxu0 %v1174
  %v2078 = vpop.f32.mrf.mxu0
  %v2079 = vadd.f32 0.0, %v2078
  %v2080 = vpop.f32.mrf.mxu0
  %v2081 = vpop.f32.mrf.mxu0
  %v2082 = vadd.f32 0.0, %v2081
  %v2083 = vpop.f32.mrf.mxu0
  %2084 = vmatprep.mubr.bf16.mxu0 0
  %2085 = vmatmul.mubr.bf16.gmra.mxu0 %v1175
  %v2086 = vpop.f32.mrf.mxu0
  %v2087 = vadd.f32 0.0, %v2086
  %v2088 = vpop.f32.mrf.mxu0
  %v2089 = vpop.f32.mrf.mxu0
  %v2090 = vadd.f32 0.0, %v2089
  %v2091 = vpop.f32.mrf.mxu0
  %2092 = vmatprep.mubr.bf16.mxu0 0
  %2093 = vmatmul.mubr.bf16.gmra.mxu0 %v1176
  %v2094 = vpop.f32.mrf.mxu0
  %v2095 = vadd.f32 0.0, %v2094
  %v2096 = vpop.f32.mrf.mxu0
  %v2097 = vpop.f32.mrf.mxu0
  %v2098 = vadd.f32 0.0, %v2097
  %v2099 = vpop.f32.mrf.mxu0
  %2100 = vmatprep.mubr.bf16.mxu0 0
  %2101 = vmatmul.mubr.bf16.gmra.mxu0 %v1177
  %v2102 = vpop.f32.mrf.mxu0
  %v2103 = vadd.f32 0.0, %v2102
  %v2104 = vpop.f32.mrf.mxu0
  %v2105 = vpop.f32.mrf.mxu0
  %v2106 = vadd.f32 0.0, %v2105
  %v2107 = vpop.f32.mrf.mxu0
  %2108 = vmatprep.mubr.bf16.mxu0 0
  %2109 = vmatmul.mubr.bf16.gmra.mxu0 %v1178
  %v2110 = vpop.f32.mrf.mxu0
  %v2111 = vadd.f32 0.0, %v2110
  %v2112 = vpop.f32.mrf.mxu0
  %v2113 = vpop.f32.mrf.mxu0
  %v2114 = vadd.f32 0.0, %v2113
  %v2115 = vpop.f32.mrf.mxu0
  %2116 = vmatprep.mubr.bf16.mxu0 0
  %2117 = vmatmul.mubr.bf16.gmra.mxu0 %v1179
  %v2118 = vpop.f32.mrf.mxu0
  %v2119 = vadd.f32 0.0, %v2118
  %v2120 = vpop.f32.mrf.mxu0
  %v2121 = vpop.f32.mrf.mxu0
  %v2122 = vadd.f32 0.0, %v2121
  %v2123 = vpop.f32.mrf.mxu0
  %2124 = vmatprep.mubr.bf16.mxu0 0
  %2125 = vmatmul.mubr.bf16.gmra.mxu0 %v1180
  %v2126 = vpop.f32.mrf.mxu0
  %v2127 = vadd.f32 0.0, %v2126
  %v2128 = vpop.f32.mrf.mxu0
  %v2129 = vpop.f32.mrf.mxu0
  %v2130 = vadd.f32 0.0, %v2129
  %v2131 = vpop.f32.mrf.mxu0
  %2132 = vmatprep.mubr.bf16.mxu0 0
  %2133 = vmatmul.mubr.bf16.gmra.mxu0 %v1181
  %v2134 = vpop.f32.mrf.mxu0
  %v2135 = vadd.f32 0.0, %v2134
  %v2136 = vpop.f32.mrf.mxu0
  %v2137 = vpop.f32.mrf.mxu0
  %v2138 = vadd.f32 0.0, %v2137
  %v2139 = vpop.f32.mrf.mxu0
  %2140 = vmatprep.mubr.bf16.mxu0 0
  %2141 = vmatmul.mubr.bf16.gmra.mxu0 %v1182
  %v2142 = vpop.f32.mrf.mxu0
  %v2143 = vadd.f32 0.0, %v2142
  %v2144 = vpop.f32.mrf.mxu0
  %v2145 = vpop.f32.mrf.mxu0
  %v2146 = vadd.f32 0.0, %v2145
  %v2147 = vpop.f32.mrf.mxu0
  %2148 = vmatprep.mubr.bf16.mxu0 0
  %2149 = vmatmul.mubr.bf16.gmra.mxu0 %v1183
  %v2150 = vpop.f32.mrf.mxu0
  %v2151 = vadd.f32 0.0, %v2150
  %v2152 = vpop.f32.mrf.mxu0
  %v2153 = vpop.f32.mrf.mxu0
  %v2154 = vadd.f32 0.0, %v2153
  %v2155 = vpop.f32.mrf.mxu0
  %2156 = vmatprep.mubr.bf16.mxu0 0
  %2157 = vmatmul.mubr.bf16.gmra.mxu0 %v1184
  %v2158 = vpop.f32.mrf.mxu0
  %v2159 = vadd.f32 0.0, %v2158
  %v2160 = vpop.f32.mrf.mxu0
  %v2161 = vpop.f32.mrf.mxu0
  %v2162 = vadd.f32 0.0, %v2161
  %v2163 = vpop.f32.mrf.mxu0
  %2164 = vmatprep.mubr.bf16.mxu0 0
  %2165 = vmatmul.mubr.bf16.gmra.mxu0 %v1185
  %v2166 = vpop.f32.mrf.mxu0
  %v2167 = vadd.f32 0.0, %v2166
  %v2168 = vpop.f32.mrf.mxu0
  %v2169 = vpop.f32.mrf.mxu0
  %v2170 = vadd.f32 0.0, %v2169
  %v2171 = vpop.f32.mrf.mxu0
  %2172 = vmatprep.mubr.bf16.mxu0 0
  %2173 = vmatmul.mubr.bf16.gmra.mxu0 %v1186
  %v2174 = vpop.f32.mrf.mxu0
  %v2175 = vadd.f32 0.0, %v2174
  %v2176 = vpop.f32.mrf.mxu0
  %v2177 = vpop.f32.mrf.mxu0
  %v2178 = vadd.f32 0.0, %v2177
  %v2179 = vpop.f32.mrf.mxu0
  %2180 = vmatprep.mubr.bf16.mxu0 0
  %2181 = vmatmul.mubr.bf16.gmra.mxu0 %v1187
  %v2182 = vpop.f32.mrf.mxu0
  %v2183 = vadd.f32 0.0, %v2182
  %v2184 = vpop.f32.mrf.mxu0
  %v2185 = vpop.f32.mrf.mxu0
  %v2186 = vadd.f32 0.0, %v2185
  %v2187 = vpop.f32.mrf.mxu0
  %2188 = vmatprep.mubr.bf16.mxu0 0
  %2189 = vmatmul.mubr.bf16.gmra.mxu0 %v1188
  %v2190 = vpop.f32.mrf.mxu0
  %v2191 = vadd.f32 0.0, %v2190
  %v2192 = vpop.f32.mrf.mxu0
  %v2193 = vpop.f32.mrf.mxu0
  %v2194 = vadd.f32 0.0, %v2193
  %v2195 = vpop.f32.mrf.mxu0
  %2196 = vmatprep.mubr.bf16.mxu0 0
  %2197 = vmatmul.mubr.bf16.gmra.mxu0 %v1189
  %v2198 = vpop.f32.mrf.mxu0
  %v2199 = vadd.f32 0.0, %v2198
  %v2200 = vpop.f32.mrf.mxu0
  %v2201 = vpop.f32.mrf.mxu0
  %v2202 = vadd.f32 0.0, %v2201
  %v2203 = vpop.f32.mrf.mxu0
  %2204 = vmatprep.mubr.bf16.mxu0 0
  %2205 = vmatmul.mubr.bf16.gmra.mxu0 %v1190
  %v2206 = vpop.f32.mrf.mxu0
  %v2207 = vadd.f32 0.0, %v2206
  %v2208 = vpop.f32.mrf.mxu0
  %v2209 = vpop.f32.mrf.mxu0
  %v2210 = vadd.f32 0.0, %v2209
  %v2211 = vpop.f32.mrf.mxu0
  %2212 = vmatprep.mubr.bf16.mxu0 0
  %2213 = vmatmul.mubr.bf16.gmra.mxu0 %v1191
  %v2214 = vpop.f32.mrf.mxu0
  %v2215 = vadd.f32 0.0, %v2214
  %v2216 = vpop.f32.mrf.mxu0
  %v2217 = vpop.f32.mrf.mxu0
  %v2218 = vadd.f32 0.0, %v2217
  %v2219 = vpop.f32.mrf.mxu0
  %2220 = vmatprep.mubr.bf16.mxu0 0
  %2221 = vmatmul.mubr.bf16.gmra.mxu0 %v1192
  %v2222 = vpop.f32.mrf.mxu0
  %v2223 = vadd.f32 0.0, %v2222
  %v2224 = vpop.f32.mrf.mxu0
  %v2225 = vpop.f32.mrf.mxu0
  %v2226 = vadd.f32 0.0, %v2225
  %v2227 = vpop.f32.mrf.mxu0
  %2228 = vmatprep.mubr.bf16.mxu0 0
  %2229 = vmatmul.mubr.bf16.gmra.mxu0 %v1193
  %v2230 = vpop.f32.mrf.mxu0
  %v2231 = vadd.f32 0.0, %v2230
  %v2232 = vpop.f32.mrf.mxu0
  %v2233 = vpop.f32.mrf.mxu0
  %v2234 = vadd.f32 0.0, %v2233
  %v2235 = vpop.f32.mrf.mxu0
  %2236 = vmatprep.mubr.bf16.mxu0 0
  %2237 = vmatmul.mubr.bf16.gmra.mxu0 %v1194
  %v2238 = vpop.f32.mrf.mxu0
  %v2239 = vadd.f32 0.0, %v2238
  %v2240 = vpop.f32.mrf.mxu0
  %v2241 = vpop.f32.mrf.mxu0
  %v2242 = vadd.f32 0.0, %v2241
  %v2243 = vpop.f32.mrf.mxu0
  %2244 = vmatprep.mubr.bf16.mxu0 0
  %2245 = vmatmul.mubr.bf16.gmra.mxu0 %v1195
  %v2246 = vpop.f32.mrf.mxu0
  %v2247 = vadd.f32 0.0, %v2246
  %v2248 = vpop.f32.mrf.mxu0
  %v2249 = vpop.f32.mrf.mxu0
  %v2250 = vadd.f32 0.0, %v2249
  %v2251 = vpop.f32.mrf.mxu0
  %2252 = vmatprep.mubr.bf16.mxu0 0
  %2253 = vmatmul.mubr.bf16.gmra.mxu0 %v1196
  %v2254 = vpop.f32.mrf.mxu0
  %v2255 = vadd.f32 0.0, %v2254
  %v2256 = vpop.f32.mrf.mxu0
  %v2257 = vpop.f32.mrf.mxu0
  %v2258 = vadd.f32 0.0, %v2257
  %v2259 = vpop.f32.mrf.mxu0
  %2260 = vmatprep.mubr.bf16.mxu0 0
  %2261 = vmatmul.mubr.bf16.gmra.mxu0 %v1197
  %v2262 = vpop.f32.mrf.mxu0
  %v2263 = vadd.f32 0.0, %v2262
  %v2264 = vpop.f32.mrf.mxu0
  %v2265 = vpop.f32.mrf.mxu0
  %v2266 = vadd.f32 0.0, %v2265
  %v2267 = vpop.f32.mrf.mxu0
  %2268 = vmatprep.mubr.bf16.mxu0 0
  %2269 = vmatmul.mubr.bf16.gmra.mxu0 %v1198
  %v2270 = vpop.f32.mrf.mxu0
  %v2271 = vadd.f32 0.0, %v2270
  %v2272 = vpop.f32.mrf.mxu0
  %v2273 = vpop.f32.mrf.mxu0
  %v2274 = vadd.f32 0.0, %v2273
  %v2275 = vpop.f32.mrf.mxu0
  %2276 = vmatprep.mubr.bf16.mxu0 0
  %2277 = vmatmul.mubr.bf16.gmra.mxu0 %v1199
  %v2278 = vpop.f32.mrf.mxu0
  %v2279 = vadd.f32 0.0, %v2278
  %v2280 = vpop.f32.mrf.mxu0
  %v2281 = vpop.f32.mrf.mxu0
  %v2282 = vadd.f32 0.0, %v2281
  %v2283 = vpop.f32.mrf.mxu0
  %2284 = vmatprep.mubr.bf16.mxu0 0
  %2285 = vmatmul.mubr.bf16.gmra.mxu0 %v1200
  %v2286 = vpop.f32.mrf.mxu0
  %v2287 = vadd.f32 0.0, %v2286
  %v2288 = vpop.f32.mrf.mxu0
  %v2289 = vpop.f32.mrf.mxu0
  %v2290 = vadd.f32 0.0, %v2289
  %v2291 = vpop.f32.mrf.mxu0
  %2292 = vmatprep.mubr.bf16.mxu0 0
  %2293 = vmatmul.mubr.bf16.gmra.mxu0 %v1201
  %v2294 = vpop.f32.mrf.mxu0
  %v2295 = vadd.f32 0.0, %v2294
  %v2296 = vpop.f32.mrf.mxu0
  %v2297 = vpop.f32.mrf.mxu0
  %v2298 = vadd.f32 0.0, %v2297
  %v2299 = vpop.f32.mrf.mxu0
  %2300 = vmatprep.mubr.bf16.mxu0 0
  %2301 = vmatmul.mubr.bf16.gmra.mxu0 %v1202
  %v2302 = vpop.f32.mrf.mxu0
  %v2303 = vadd.f32 0.0, %v2302
  %v2304 = vpop.f32.mrf.mxu0
  %v2305 = vpop.f32.mrf.mxu0
  %v2306 = vadd.f32 0.0, %v2305
  %v2307 = vpop.f32.mrf.mxu0
  %2308 = vmatprep.mubr.bf16.mxu0 0
  %2309 = vmatmul.mubr.bf16.gmra.mxu0 %v1203
  %v2310 = vpop.f32.mrf.mxu0
  %v2311 = vadd.f32 0.0, %v2310
  %v2312 = vpop.f32.mrf.mxu0
  %v2313 = vpop.f32.mrf.mxu0
  %v2314 = vadd.f32 0.0, %v2313
  %v2315 = vpop.f32.mrf.mxu0
  %2316 = vmatprep.mubr.bf16.mxu0 0
  %2317 = vmatmul.mubr.bf16.gmra.mxu0 %v1204
  %v2318 = vpop.f32.mrf.mxu0
  %v2319 = vadd.f32 0.0, %v2318
  %v2320 = vpop.f32.mrf.mxu0
  %v2321 = vpop.f32.mrf.mxu0
  %v2322 = vadd.f32 0.0, %v2321
  %v2323 = vpop.f32.mrf.mxu0
  %2324 = vmatprep.mubr.bf16.mxu0 0
  %2325 = vmatmul.mubr.bf16.gmra.mxu0 %v1205
  %v2326 = vpop.f32.mrf.mxu0
  %v2327 = vadd.f32 0.0, %v2326
  %v2328 = vpop.f32.mrf.mxu0
  %v2329 = vpop.f32.mrf.mxu0
  %v2330 = vadd.f32 0.0, %v2329
  %v2331 = vpop.f32.mrf.mxu0
  %2332 = vmatprep.mubr.bf16.mxu0 0
  %2333 = vmatmul.mubr.bf16.gmra.mxu0 %v1206
  %v2334 = vpop.f32.mrf.mxu0
  %v2335 = vadd.f32 0.0, %v2334
  %v2336 = vpop.f32.mrf.mxu0
  %v2337 = vpop.f32.mrf.mxu0
  %v2338 = vadd.f32 0.0, %v2337
  %v2339 = vpop.f32.mrf.mxu0
  %2340 = vmatprep.mubr.bf16.mxu0 0
  %2341 = vmatmul.mubr.bf16.gmra.mxu0 %v1207
  %v2342 = vpop.f32.mrf.mxu0
  %v2343 = vadd.f32 0.0, %v2342
  %v2344 = vpop.f32.mrf.mxu0
  %v2345 = vpop.f32.mrf.mxu0
  %v2346 = vadd.f32 0.0, %v2345
  %v2347 = vpop.f32.mrf.mxu0
  %2348 = vmatprep.mubr.bf16.mxu0 0
  %2349 = vmatmul.mubr.bf16.gmra.mxu0 %v1208
  %v2350 = vpop.f32.mrf.mxu0
  %v2351 = vadd.f32 0.0, %v2350
  %v2352 = vpop.f32.mrf.mxu0
  %v2353 = vpop.f32.mrf.mxu0
  %v2354 = vadd.f32 0.0, %v2353
  %v2355 = vpop.f32.mrf.mxu0
  %2356 = vmatprep.mubr.bf16.mxu0 0
  %2357 = vmatmul.mubr.bf16.gmra.mxu0 %v1209
  %v2358 = vpop.f32.mrf.mxu0
  %v2359 = vadd.f32 0.0, %v2358
  %v2360 = vpop.f32.mrf.mxu0
  %v2361 = vpop.f32.mrf.mxu0
  %v2362 = vadd.f32 0.0, %v2361
  %v2363 = vpop.f32.mrf.mxu0
  %2364 = vmatprep.mubr.bf16.mxu0 0
  %2365 = vmatmul.mubr.bf16.gmra.mxu0 %v1210
  %v2366 = vpop.f32.mrf.mxu0
  %v2367 = vadd.f32 0.0, %v2366
  %v2368 = vpop.f32.mrf.mxu0
  %v2369 = vpop.f32.mrf.mxu0
  %v2370 = vadd.f32 0.0, %v2369
  %v2371 = vpop.f32.mrf.mxu0
  %2372 = vmatprep.mubr.bf16.mxu0 0
  %2373 = vmatmul.mubr.bf16.gmra.mxu0 %v1211
  %v2374 = vpop.f32.mrf.mxu0
  %v2375 = vadd.f32 0.0, %v2374
  %v2376 = vpop.f32.mrf.mxu0
  %v2377 = vpop.f32.mrf.mxu0
  %v2378 = vadd.f32 0.0, %v2377
  %v2379 = vpop.f32.mrf.mxu0
  %2380 = vmatprep.mubr.bf16.mxu0 0
  %2381 = vmatmul.mubr.bf16.gmra.mxu0 %v1212
  %v2382 = vpop.f32.mrf.mxu0
  %v2383 = vadd.f32 0.0, %v2382
  %v2384 = vpop.f32.mrf.mxu0
  %v2385 = vpop.f32.mrf.mxu0
  %v2386 = vadd.f32 0.0, %v2385
  %v2387 = vpop.f32.mrf.mxu0
  %2388 = vmatprep.mubr.bf16.mxu0 0
  %2389 = vmatmul.mubr.bf16.gmra.mxu0 %v1213
  %v2390 = vpop.f32.mrf.mxu0
  %v2391 = vadd.f32 0.0, %v2390
  %v2392 = vpop.f32.mrf.mxu0
  %v2393 = vpop.f32.mrf.mxu0
  %v2394 = vadd.f32 0.0, %v2393
  %v2395 = vpop.f32.mrf.mxu0
  %2396 = vmatprep.mubr.bf16.mxu0 0
  %2397 = vmatmul.mubr.bf16.gmra.mxu0 %v1214
  %v2398 = vpop.f32.mrf.mxu0
  %v2399 = vadd.f32 0.0, %v2398
  %v2400 = vpop.f32.mrf.mxu0
  %v2401 = vpop.f32.mrf.mxu0
  %v2402 = vadd.f32 0.0, %v2401
  %v2403 = vpop.f32.mrf.mxu0
  %2404 = vmatprep.mubr.bf16.mxu0 0
  %2405 = vmatmul.mubr.bf16.gmra.mxu0 %v1215
  %v2406 = vpop.f32.mrf.mxu0
  %v2407 = vadd.f32 0.0, %v2406
  %v2408 = vpop.f32.mrf.mxu0
  %v2409 = vpop.f32.mrf.mxu0
  %v2410 = vadd.f32 0.0, %v2409
  %v2411 = vpop.f32.mrf.mxu0
  %2412 = vmatprep.mubr.bf16.mxu0 0
  %2413 = vmatmul.mubr.bf16.gmra.mxu0 %v1216
  %v2414 = vpop.f32.mrf.mxu0
  %v2415 = vadd.f32 0.0, %v2414
  %v2416 = vpop.f32.mrf.mxu0
  %v2417 = vpop.f32.mrf.mxu0
  %v2418 = vadd.f32 0.0, %v2417
  %v2419 = vpop.f32.mrf.mxu0
  %2420 = vmatprep.mubr.bf16.mxu0 0
  %2421 = vmatmul.mubr.bf16.gmra.mxu0 %v1217
  %v2422 = vpop.f32.mrf.mxu0
  %v2423 = vadd.f32 0.0, %v2422
  %v2424 = vpop.f32.mrf.mxu0
  %v2425 = vpop.f32.mrf.mxu0
  %v2426 = vadd.f32 0.0, %v2425
  %v2427 = vpop.f32.mrf.mxu0
  %2428 = vmatprep.mubr.bf16.mxu0 0
  %2429 = vmatmul.mubr.bf16.gmra.mxu0 %v1218
  %v2430 = vpop.f32.mrf.mxu0
  %v2431 = vadd.f32 0.0, %v2430
  %v2432 = vpop.f32.mrf.mxu0
  %v2433 = vpop.f32.mrf.mxu0
  %v2434 = vadd.f32 0.0, %v2433
  %v2435 = vpop.f32.mrf.mxu0
  %2436 = vmatprep.mubr.bf16.mxu0 0
  %2437 = vmatmul.mubr.bf16.gmra.mxu0 %v1219
  %v2438 = vpop.f32.mrf.mxu0
  %v2439 = vadd.f32 0.0, %v2438
  %v2440 = vpop.f32.mrf.mxu0
  %v2441 = vpop.f32.mrf.mxu0
  %v2442 = vadd.f32 0.0, %v2441
  %v2443 = vpop.f32.mrf.mxu0
  %2444 = vmatprep.mubr.bf16.mxu0 0
  %2445 = vmatmul.mubr.bf16.gmra.mxu0 %v1220
  %v2446 = vpop.f32.mrf.mxu0
  %v2447 = vadd.f32 0.0, %v2446
  %v2448 = vpop.f32.mrf.mxu0
  %v2449 = vpop.f32.mrf.mxu0
  %v2450 = vadd.f32 0.0, %v2449
  %v2451 = vpop.f32.mrf.mxu0
  %2452 = vmatprep.mubr.bf16.mxu0 0
  %2453 = vmatmul.mubr.bf16.gmra.mxu0 %v1221
  %v2454 = vpop.f32.mrf.mxu0
  %v2455 = vadd.f32 0.0, %v2454
  %v2456 = vpop.f32.mrf.mxu0
  %v2457 = vpop.f32.mrf.mxu0
  %v2458 = vadd.f32 0.0, %v2457
  %v2459 = vpop.f32.mrf.mxu0
  %2460 = vmatprep.mubr.bf16.mxu0 0
  %2461 = vmatmul.mubr.bf16.gmra.mxu0 %v1222
  %v2462 = vpop.f32.mrf.mxu0
  %v2463 = vadd.f32 0.0, %v2462
  %v2464 = vpop.f32.mrf.mxu0
  %v2465 = vpop.f32.mrf.mxu0
  %v2466 = vadd.f32 0.0, %v2465
  %v2467 = vpop.f32.mrf.mxu0
  %2468 = vmatprep.mubr.bf16.mxu0 0
  %2469 = vmatmul.mubr.bf16.gmra.mxu0 %v1223
  %v2470 = vpop.f32.mrf.mxu0
  %v2471 = vadd.f32 0.0, %v2470
  %v2472 = vpop.f32.mrf.mxu0
  %v2473 = vpop.f32.mrf.mxu0
  %v2474 = vadd.f32 0.0, %v2473
  %v2475 = vpop.f32.mrf.mxu0
  %2476 = vmatprep.mubr.bf16.mxu0 0
  %2477 = vmatmul.mubr.bf16.gmra.mxu0 %v1224
  %v2478 = vpop.f32.mrf.mxu0
  %v2479 = vadd.f32 0.0, %v2478
  %v2480 = vpop.f32.mrf.mxu0
  %v2481 = vpop.f32.mrf.mxu0
  %v2482 = vadd.f32 0.0, %v2481
  %v2483 = vpop.f32.mrf.mxu0
  %2484 = vmatprep.mubr.bf16.mxu0 0
  %2485 = vmatmul.mubr.bf16.gmra.mxu0 %v1225
  %v2486 = vpop.f32.mrf.mxu0
  %v2487 = vadd.f32 0.0, %v2486
  %v2488 = vpop.f32.mrf.mxu0
  %v2489 = vpop.f32.mrf.mxu0
  %v2490 = vadd.f32 0.0, %v2489
  %v2491 = vpop.f32.mrf.mxu0
  %2492 = vmatprep.mubr.bf16.mxu0 0
  %2493 = vmatmul.mubr.bf16.gmra.mxu0 %v1226
  %v2494 = vpop.f32.mrf.mxu0
  %v2495 = vadd.f32 0.0, %v2494
  %v2496 = vpop.f32.mrf.mxu0
  %v2497 = vpop.f32.mrf.mxu0
  %v2498 = vadd.f32 0.0, %v2497
  %v2499 = vpop.f32.mrf.mxu0
  %2500 = vmatprep.mubr.bf16.mxu0 0
  %2501 = vmatmul.mubr.bf16.gmra.mxu0 %v1227
  %v2502 = vpop.f32.mrf.mxu0
  %v2503 = vadd.f32 0.0, %v2502
  %v2504 = vpop.f32.mrf.mxu0
  %v2505 = vpop.f32.mrf.mxu0
  %v2506 = vadd.f32 0.0, %v2505
  %v2507 = vpop.f32.mrf.mxu0
  %2508 = vmatprep.mubr.bf16.mxu0 0
  %2509 = vmatmul.mubr.bf16.gmra.mxu0 %v1228
  %v2510 = vpop.f32.mrf.mxu0
  %v2511 = vadd.f32 0.0, %v2510
  %v2512 = vpop.f32.mrf.mxu0
  %v2513 = vpop.f32.mrf.mxu0
  %v2514 = vadd.f32 0.0, %v2513
  %v2515 = vpop.f32.mrf.mxu0
  %2516 = vmatprep.mubr.bf16.mxu0 0
  %2517 = vmatmul.mubr.bf16.gmra.mxu0 %v1229
  %v2518 = vpop.f32.mrf.mxu0
  %v2519 = vadd.f32 0.0, %v2518
  %v2520 = vpop.f32.mrf.mxu0
  %v2521 = vpop.f32.mrf.mxu0
  %v2522 = vadd.f32 0.0, %v2521
  %v2523 = vpop.f32.mrf.mxu0
  %2524 = vmatprep.mubr.bf16.mxu0 0
  %2525 = vmatmul.mubr.bf16.gmra.mxu0 %v1230
  %v2526 = vpop.f32.mrf.mxu0
  %v2527 = vadd.f32 0.0, %v2526
  %v2528 = vpop.f32.mrf.mxu0
  %v2529 = vpop.f32.mrf.mxu0
  %v2530 = vadd.f32 0.0, %v2529
  %v2531 = vpop.f32.mrf.mxu0
  %2532 = vmatprep.mubr.bf16.mxu0 0
  %2533 = vmatmul.mubr.bf16.gmra.mxu0 %v1231
  %v2534 = vpop.f32.mrf.mxu0
  %v2535 = vadd.f32 0.0, %v2534
  %v2536 = vpop.f32.mrf.mxu0
  %v2537 = vpop.f32.mrf.mxu0
  %v2538 = vadd.f32 0.0, %v2537
  %v2539 = vpop.f32.mrf.mxu0
  %2540 = vmatprep.mubr.bf16.mxu0 0
  %2541 = vmatmul.mubr.bf16.gmra.mxu0 %v1232
  %v2542 = vpop.f32.mrf.mxu0
  %v2543 = vadd.f32 0.0, %v2542
  %v2544 = vpop.f32.mrf.mxu0
  %v2545 = vpop.f32.mrf.mxu0
  %v2546 = vadd.f32 0.0, %v2545
  %v2547 = vpop.f32.mrf.mxu0
  %2548 = vmatprep.mubr.bf16.mxu0 0
  %2549 = vmatmul.mubr.bf16.gmra.mxu0 %v1233
  %v2550 = vpop.f32.mrf.mxu0
  %v2551 = vadd.f32 0.0, %v2550
  %v2552 = vpop.f32.mrf.mxu0
  %v2553 = vpop.f32.mrf.mxu0
  %v2554 = vadd.f32 0.0, %v2553
  %v2555 = vpop.f32.mrf.mxu0
  %2556 = vmatprep.mubr.bf16.mxu0 0
  %2557 = vmatmul.mubr.bf16.gmra.mxu0 %v1234
  %v2558 = vpop.f32.mrf.mxu0
  %v2559 = vadd.f32 0.0, %v2558
  %v2560 = vpop.f32.mrf.mxu0
  %v2561 = vpop.f32.mrf.mxu0
  %v2562 = vadd.f32 0.0, %v2561
  %v2563 = vpop.f32.mrf.mxu0
  %2564 = vmatprep.mubr.bf16.mxu0 0
  %2565 = vmatmul.mubr.bf16.gmra.mxu0 %v1235
  %v2566 = vpop.f32.mrf.mxu0
  %v2567 = vadd.f32 0.0, %v2566
  %v2568 = vpop.f32.mrf.mxu0
  %v2569 = vpop.f32.mrf.mxu0
  %v2570 = vadd.f32 0.0, %v2569
  %v2571 = vpop.f32.mrf.mxu0
  %2572 = vmatprep.mubr.bf16.mxu0 0
  %2573 = vmatmul.mubr.bf16.gmra.mxu0 %v1236
  %v2574 = vpop.f32.mrf.mxu0
  %v2575 = vadd.f32 0.0, %v2574
  %v2576 = vpop.f32.mrf.mxu0
  %v2577 = vpop.f32.mrf.mxu0
  %v2578 = vadd.f32 0.0, %v2577
  %v2579 = vpop.f32.mrf.mxu0
  %2580 = vmatprep.mubr.bf16.mxu0 0
  %2581 = vmatmul.mubr.bf16.gmra.mxu0 %v1237
  %v2582 = vpop.f32.mrf.mxu0
  %v2583 = vadd.f32 0.0, %v2582
  %v2584 = vpop.f32.mrf.mxu0
  %v2585 = vpop.f32.mrf.mxu0
  %v2586 = vadd.f32 0.0, %v2585
  %v2587 = vpop.f32.mrf.mxu0
  %2588 = vmatprep.mubr.bf16.mxu0 0
  %2589 = vmatmul.mubr.bf16.gmra.mxu0 %v1238
  %v2590 = vpop.f32.mrf.mxu0
  %v2591 = vadd.f32 0.0, %v2590
  %v2592 = vpop.f32.mrf.mxu0
  %v2593 = vpop.f32.mrf.mxu0
  %v2594 = vadd.f32 0.0, %v2593
  %v2595 = vpop.f32.mrf.mxu0
  %2596 = vmatprep.mubr.bf16.mxu0 0
  %2597 = vmatmul.mubr.bf16.gmra.mxu0 %v1239
  %v2598 = vpop.f32.mrf.mxu0
  %v2599 = vadd.f32 0.0, %v2598
  %v2600 = vpop.f32.mrf.mxu0
  %v2601 = vpop.f32.mrf.mxu0
  %v2602 = vadd.f32 0.0, %v2601
  %v2603 = vpop.f32.mrf.mxu0
  %2604 = vmatprep.mubr.bf16.mxu0 0
  %2605 = vmatmul.mubr.bf16.gmra.mxu0 %v1240
  %v2606 = vpop.f32.mrf.mxu0
  %v2607 = vadd.f32 0.0, %v2606
  %v2608 = vpop.f32.mrf.mxu0
  %v2609 = vpop.f32.mrf.mxu0
  %v2610 = vadd.f32 0.0, %v2609
  %v2611 = vpop.f32.mrf.mxu0
  %2612 = vmatprep.mubr.bf16.mxu0 0
  %2613 = vmatmul.mubr.bf16.gmra.mxu0 %v1241
  %v2614 = vpop.f32.mrf.mxu0
  %v2615 = vadd.f32 0.0, %v2614
  %v2616 = vpop.f32.mrf.mxu0
  %v2617 = vpop.f32.mrf.mxu0
  %v2618 = vadd.f32 0.0, %v2617
  %v2619 = vpop.f32.mrf.mxu0
  %2620 = vmatprep.mubr.bf16.mxu0 0
  %2621 = vmatmul.mubr.bf16.gmra.mxu0 %v1242
  %v2622 = vpop.f32.mrf.mxu0
  %v2623 = vadd.f32 0.0, %v2622
  %v2624 = vpop.f32.mrf.mxu0
  %v2625 = vpop.f32.mrf.mxu0
  %v2626 = vadd.f32 0.0, %v2625
  %v2627 = vpop.f32.mrf.mxu0
  %2628 = vmatprep.mubr.bf16.mxu0 0
  %2629 = vmatmul.mubr.bf16.gmra.mxu0 %v1243
  %v2630 = vpop.f32.mrf.mxu0
  %v2631 = vadd.f32 0.0, %v2630
  %v2632 = vpop.f32.mrf.mxu0
  %v2633 = vpop.f32.mrf.mxu0
  %v2634 = vadd.f32 0.0, %v2633
  %v2635 = vpop.f32.mrf.mxu0
  %2636 = vmatprep.mubr.bf16.mxu0 0
  %2637 = vmatmul.mubr.bf16.gmra.mxu0 %v1244
  %v2638 = vpop.f32.mrf.mxu0
  %v2639 = vadd.f32 0.0, %v2638
  %v2640 = vpop.f32.mrf.mxu0
  %v2641 = vpop.f32.mrf.mxu0
  %v2642 = vadd.f32 0.0, %v2641
  %v2643 = vpop.f32.mrf.mxu0
  %2644 = vmatprep.mubr.bf16.mxu0 0
  %2645 = vmatmul.mubr.bf16.gmra.mxu0 %v1245
  %v2646 = vpop.f32.mrf.mxu0
  %v2647 = vadd.f32 0.0, %v2646
  %v2648 = vpop.f32.mrf.mxu0
  %v2649 = vpop.f32.mrf.mxu0
  %v2650 = vadd.f32 0.0, %v2649
  %v2651 = vpop.f32.mrf.mxu0
  %2652 = vmatprep.mubr.bf16.mxu0 0
  %2653 = vmatmul.mubr.bf16.gmra.mxu0 %v1246
  %v2654 = vpop.f32.mrf.mxu0
  %v2655 = vadd.f32 0.0, %v2654
  %v2656 = vpop.f32.mrf.mxu0
  %v2657 = vpop.f32.mrf.mxu0
  %v2658 = vadd.f32 0.0, %v2657
  %v2659 = vpop.f32.mrf.mxu0
  %2660 = vmatprep.mubr.bf16.mxu0 0
  %2661 = vmatmul.mubr.bf16.gmra.mxu0 %v1247
  %v2662 = vpop.f32.mrf.mxu0
  %v2663 = vadd.f32 0.0, %v2662
  %v2664 = vpop.f32.mrf.mxu0
  %v2665 = vpop.f32.mrf.mxu0
  %v2666 = vadd.f32 0.0, %v2665
  %v2667 = vpop.f32.mrf.mxu0
  %2668 = vmatprep.mubr.bf16.mxu0 0
  %2669 = vmatmul.mubr.bf16.gmra.mxu0 %v1248
  %v2670 = vpop.f32.mrf.mxu0
  %v2671 = vadd.f32 0.0, %v2670
  %v2672 = vpop.f32.mrf.mxu0
  %v2673 = vpop.f32.mrf.mxu0
  %v2674 = vadd.f32 0.0, %v2673
  %v2675 = vpop.f32.mrf.mxu0
  %2676 = vmatprep.mubr.bf16.mxu0 0
  %2677 = vmatmul.mubr.bf16.gmra.mxu0 %v1249
  %v2678 = vpop.f32.mrf.mxu0
  %v2679 = vadd.f32 0.0, %v2678
  %v2680 = vpop.f32.mrf.mxu0
  %v2681 = vpop.f32.mrf.mxu0
  %v2682 = vadd.f32 0.0, %v2681
  %v2683 = vpop.f32.mrf.mxu0
  %2684 = vmatprep.mubr.bf16.mxu0 0
  %2685 = vmatmul.mubr.bf16.gmra.mxu0 %v1250
  %v2686 = vpop.f32.mrf.mxu0
  %v2687 = vadd.f32 0.0, %v2686
  %v2688 = vpop.f32.mrf.mxu0
  %v2689 = vpop.f32.mrf.mxu0
  %v2690 = vadd.f32 0.0, %v2689
  %v2691 = vpop.f32.mrf.mxu0
  %2692 = vmatprep.mubr.bf16.mxu0 0
  %2693 = vmatmul.mubr.bf16.gmra.mxu0 %v1251
  %v2694 = vpop.f32.mrf.mxu0
  %v2695 = vadd.f32 0.0, %v2694
  %v2696 = vpop.f32.mrf.mxu0
  %v2697 = vpop.f32.mrf.mxu0
  %v2698 = vadd.f32 0.0, %v2697
  %v2699 = vpop.f32.mrf.mxu0
  %2700 = vmatprep.mubr.bf16.mxu0 0
  %2701 = vmatmul.mubr.bf16.gmra.mxu0 %v1252
  %v2702 = vpop.f32.mrf.mxu0
  %v2703 = vadd.f32 0.0, %v2702
  %v2704 = vpop.f32.mrf.mxu0
  %v2705 = vpop.f32.mrf.mxu0
  %v2706 = vadd.f32 0.0, %v2705
  %v2707 = vpop.f32.mrf.mxu0
  %2708 = vmatprep.mubr.bf16.mxu0 0
  %2709 = vmatmul.mubr.bf16.gmra.mxu0 %v1253
  %v2710 = vpop.f32.mrf.mxu0
  %v2711 = vadd.f32 0.0, %v2710
  %v2712 = vpop.f32.mrf.mxu0
  %v2713 = vpop.f32.mrf.mxu0
  %v2714 = vadd.f32 0.0, %v2713
  %v2715 = vpop.f32.mrf.mxu0
  %2716 = vmatprep.mubr.bf16.mxu0 0
  %2717 = vmatmul.mubr.bf16.gmra.mxu0 %v1254
  %v2718 = vpop.f32.mrf.mxu0
  %v2719 = vadd.f32 0.0, %v2718
  %v2720 = vpop.f32.mrf.mxu0
  %v2721 = vpop.f32.mrf.mxu0
  %v2722 = vadd.f32 0.0, %v2721
  %v2723 = vpop.f32.mrf.mxu0
  %2724 = vmatprep.mubr.bf16.mxu0 0
  %2725 = vmatmul.mubr.bf16.gmra.mxu0 %v1255
  %v2726 = vpop.f32.mrf.mxu0
  %v2727 = vadd.f32 0.0, %v2726
  %v2728 = vpop.f32.mrf.mxu0
  %v2729 = vpop.f32.mrf.mxu0
  %v2730 = vadd.f32 0.0, %v2729
  %v2731 = vpop.f32.mrf.mxu0
  %2732 = vmatprep.mubr.bf16.mxu0 0
  %2733 = vmatmul.mubr.bf16.gmra.mxu0 %v1256
  %v2734 = vpop.f32.mrf.mxu0
  %v2735 = vadd.f32 0.0, %v2734
  %v2736 = vpop.f32.mrf.mxu0
  %v2737 = vpop.f32.mrf.mxu0
  %v2738 = vadd.f32 0.0, %v2737
  %v2739 = vpop.f32.mrf.mxu0
  %2740 = vmatprep.mubr.bf16.mxu0 0
  %2741 = vmatmul.mubr.bf16.gmra.mxu0 %v1257
  %v2742 = vpop.f32.mrf.mxu0
  %v2743 = vadd.f32 0.0, %v2742
  %v2744 = vpop.f32.mrf.mxu0
  %v2745 = vpop.f32.mrf.mxu0
  %v2746 = vadd.f32 0.0, %v2745
  %v2747 = vpop.f32.mrf.mxu0
  %2748 = vmatprep.mubr.bf16.mxu0 0
  %2749 = vmatmul.mubr.bf16.gmra.mxu0 %v1258
  %v2750 = vpop.f32.mrf.mxu0
  %v2751 = vadd.f32 0.0, %v2750
  %v2752 = vpop.f32.mrf.mxu0
  %v2753 = vpop.f32.mrf.mxu0
  %v2754 = vadd.f32 0.0, %v2753
  %v2755 = vpop.f32.mrf.mxu0
  %2756 = vmatprep.mubr.bf16.mxu0 0
  %2757 = vmatmul.mubr.bf16.gmra.mxu0 %v1259
  %v2758 = vpop.f32.mrf.mxu0
  %v2759 = vadd.f32 0.0, %v2758
  %v2760 = vpop.f32.mrf.mxu0
  %v2761 = vpop.f32.mrf.mxu0
  %v2762 = vadd.f32 0.0, %v2761
  %v2763 = vpop.f32.mrf.mxu0
  %2764 = vmatprep.mubr.bf16.mxu0 0
  %2765 = vmatmul.mubr.bf16.gmra.mxu0 %v1260
  %v2766 = vpop.f32.mrf.mxu0
  %v2767 = vadd.f32 0.0, %v2766
  %v2768 = vpop.f32.mrf.mxu0
  %v2769 = vpop.f32.mrf.mxu0
  %v2770 = vadd.f32 0.0, %v2769
  %v2771 = vpop.f32.mrf.mxu0
  %2772 = vmatprep.mubr.bf16.mxu0 0
  %2773 = vmatmul.mubr.bf16.gmra.mxu0 %v1261
  %v2774 = vpop.f32.mrf.mxu0
  %v2775 = vadd.f32 0.0, %v2774
  %v2776 = vpop.f32.mrf.mxu0
  %v2777 = vpop.f32.mrf.mxu0
  %v2778 = vadd.f32 0.0, %v2777
  %v2779 = vpop.f32.mrf.mxu0
  %2780 = vmatprep.mubr.bf16.mxu0 0
  %2781 = vmatmul.mubr.bf16.gmra.mxu0 %v1262
  %v2782 = vpop.f32.mrf.mxu0
  %v2783 = vadd.f32 0.0, %v2782
  %v2784 = vpop.f32.mrf.mxu0
  %v2785 = vpop.f32.mrf.mxu0
  %v2786 = vadd.f32 0.0, %v2785
  %v2787 = vpop.f32.mrf.mxu0
  %2788 = vmatprep.mubr.bf16.mxu0 0
  %2789 = vmatmul.mubr.bf16.gmra.mxu0 %v1263
  %v2790 = vpop.f32.mrf.mxu0
  %v2791 = vadd.f32 0.0, %v2790
  %v2792 = vpop.f32.mrf.mxu0
  %v2793 = vpop.f32.mrf.mxu0
  %v2794 = vadd.f32 0.0, %v2793
  %v2795 = vpop.f32.mrf.mxu0
  %2796 = vmatprep.mubr.bf16.mxu0 0
  %2797 = vmatmul.mubr.bf16.gmra.mxu0 %v1264
  %v2798 = vpop.f32.mrf.mxu0
  %v2799 = vadd.f32 0.0, %v2798
  %v2800 = vpop.f32.mrf.mxu0
  %v2801 = vpop.f32.mrf.mxu0
  %v2802 = vadd.f32 0.0, %v2801
  %v2803 = vpop.f32.mrf.mxu0
  %2804 = vmatprep.mubr.bf16.mxu0 0
  %2805 = vmatmul.mubr.bf16.gmra.mxu0 %v1265
  %v2806 = vpop.f32.mrf.mxu0
  %v2807 = vadd.f32 0.0, %v2806
  %v2808 = vpop.f32.mrf.mxu0
  %v2809 = vpop.f32.mrf.mxu0
  %v2810 = vadd.f32 0.0, %v2809
  %v2811 = vpop.f32.mrf.mxu0
  %2812 = vmatprep.mubr.bf16.mxu0 0
  %2813 = vmatmul.mubr.bf16.gmra.mxu0 %v1266
  %v2814 = vpop.f32.mrf.mxu0
  %v2815 = vadd.f32 0.0, %v2814
  %v2816 = vpop.f32.mrf.mxu0
  %v2817 = vpop.f32.mrf.mxu0
  %v2818 = vadd.f32 0.0, %v2817
  %v2819 = vpop.f32.mrf.mxu0
  %2820 = vmatprep.mubr.bf16.mxu0 0
  %2821 = vmatmul.mubr.bf16.gmra.mxu0 %v1267
  %v2822 = vpop.f32.mrf.mxu0
  %v2823 = vadd.f32 0.0, %v2822
  %v2824 = vpop.f32.mrf.mxu0
  %v2825 = vpop.f32.mrf.mxu0
  %v2826 = vadd.f32 0.0, %v2825
  %v2827 = vpop.f32.mrf.mxu0
  %2828 = vmatprep.mubr.bf16.mxu0 0
  %2829 = vmatmul.mubr.bf16.gmra.mxu0 %v1268
  %v2830 = vpop.f32.mrf.mxu0
  %v2831 = vadd.f32 0.0, %v2830
  %v2832 = vpop.f32.mrf.mxu0
  %v2833 = vpop.f32.mrf.mxu0
  %v2834 = vadd.f32 0.0, %v2833
  %v2835 = vpop.f32.mrf.mxu0
  %2836 = vmatprep.mubr.bf16.mxu0 0
  %2837 = vmatmul.mubr.bf16.gmra.mxu0 %v1269
  %v2838 = vpop.f32.mrf.mxu0
  %v2839 = vadd.f32 0.0, %v2838
  %v2840 = vpop.f32.mrf.mxu0
  %v2841 = vpop.f32.mrf.mxu0
  %v2842 = vadd.f32 0.0, %v2841
  %v2843 = vpop.f32.mrf.mxu0
  %2844 = vmatprep.mubr.bf16.mxu0 0
  %2845 = vmatmul.mubr.bf16.gmra.mxu0 %v1270
  %v2846 = vpop.f32.mrf.mxu0
  %v2847 = vadd.f32 0.0, %v2846
  %v2848 = vpop.f32.mrf.mxu0
  %v2849 = vpop.f32.mrf.mxu0
  %v2850 = vadd.f32 0.0, %v2849
  %v2851 = vpop.f32.mrf.mxu0
  %2852 = vmatprep.mubr.bf16.mxu0 0
  %2853 = vmatmul.mubr.bf16.gmra.mxu0 %v1271
  %v2854 = vpop.f32.mrf.mxu0
  %v2855 = vadd.f32 0.0, %v2854
  %v2856 = vpop.f32.mrf.mxu0
  %v2857 = vpop.f32.mrf.mxu0
  %v2858 = vadd.f32 0.0, %v2857
  %v2859 = vpop.f32.mrf.mxu0
  %2860 = vmatprep.mubr.bf16.mxu0 0
  %2861 = vmatmul.mubr.bf16.gmra.mxu0 %v1272
  %v2862 = vpop.f32.mrf.mxu0
  %v2863 = vadd.f32 0.0, %v2862
  %v2864 = vpop.f32.mrf.mxu0
  %v2865 = vpop.f32.mrf.mxu0
  %v2866 = vadd.f32 0.0, %v2865
  %v2867 = vpop.f32.mrf.mxu0
  %2868 = vmatprep.mubr.bf16.mxu0 0
  %2869 = vmatmul.mubr.bf16.gmra.mxu0 %v1273
  %v2870 = vpop.f32.mrf.mxu0
  %v2871 = vadd.f32 0.0, %v2870
  %v2872 = vpop.f32.mrf.mxu0
  %v2873 = vpop.f32.mrf.mxu0
  %v2874 = vadd.f32 0.0, %v2873
  %v2875 = vpop.f32.mrf.mxu0
  %2876 = vmatprep.mubr.bf16.mxu0 0
  %2877 = vmatmul.mubr.bf16.gmra.mxu0 %v1274
  %v2878 = vpop.f32.mrf.mxu0
  %v2879 = vadd.f32 0.0, %v2878
  %v2880 = vpop.f32.mrf.mxu0
  %v2881 = vpop.f32.mrf.mxu0
  %v2882 = vadd.f32 0.0, %v2881
  %v2883 = vpop.f32.mrf.mxu0
  %2884 = vmatprep.mubr.bf16.mxu0 0
  %2885 = vmatmul.mubr.bf16.gmra.mxu0 %v1275
  %v2886 = vpop.f32.mrf.mxu0
  %v2887 = vadd.f32 0.0, %v2886
  %v2888 = vpop.f32.mrf.mxu0
  %v2889 = vpop.f32.mrf.mxu0
  %v2890 = vadd.f32 0.0, %v2889
  %v2891 = vpop.f32.mrf.mxu0
  %2892 = vmatprep.mubr.bf16.mxu0 0
  %2893 = vmatmul.mubr.bf16.gmra.mxu0 %v1276
  %v2894 = vpop.f32.mrf.mxu0
  %v2895 = vadd.f32 0.0, %v2894
  %v2896 = vpop.f32.mrf.mxu0
  %v2897 = vpop.f32.mrf.mxu0
  %v2898 = vadd.f32 0.0, %v2897
  %v2899 = vpop.f32.mrf.mxu0
  %2900 = vmatprep.mubr.bf16.mxu0 0
  %2901 = vmatmul.mubr.bf16.gmra.mxu0 %v1277
  %v2902 = vpop.f32.mrf.mxu0
  %v2903 = vadd.f32 0.0, %v2902
  %v2904 = vpop.f32.mrf.mxu0
  %v2905 = vpop.f32.mrf.mxu0
  %v2906 = vadd.f32 0.0, %v2905
  %v2907 = vpop.f32.mrf.mxu0
  %2908 = vmatprep.mubr.bf16.mxu0 0
  %2909 = vmatmul.mubr.bf16.gmra.mxu0 %v1278
  %v2910 = vpop.f32.mrf.mxu0
  %v2911 = vadd.f32 0.0, %v2910
  %v2912 = vpop.f32.mrf.mxu0
  %v2913 = vpop.f32.mrf.mxu0
  %v2914 = vadd.f32 0.0, %v2913
  %v2915 = vpop.f32.mrf.mxu0
  %2916 = vmatprep.mubr.bf16.mxu0 0
  %2917 = vmatmul.mubr.bf16.gmra.mxu0 %v1279
  %v2918 = vpop.f32.mrf.mxu0
  %v2919 = vadd.f32 0.0, %v2918
  %v2920 = vpop.f32.mrf.mxu0
  %v2921 = vpop.f32.mrf.mxu0
  %v2922 = vadd.f32 0.0, %v2921
  %v2923 = vpop.f32.mrf.mxu0
  %2924 = vmatprep.mubr.bf16.mxu0 0
  %2925 = vmatmul.mubr.bf16.gmra.mxu0 %v1280
  %v2926 = vpop.f32.mrf.mxu0
  %v2927 = vadd.f32 0.0, %v2926
  %v2928 = vpop.f32.mrf.mxu0
  %v2929 = vpop.f32.mrf.mxu0
  %v2930 = vadd.f32 0.0, %v2929
  %v2931 = vpop.f32.mrf.mxu0
  %2932 = vmatprep.mubr.bf16.mxu0 0
  %2933 = vmatmul.mubr.bf16.gmra.mxu0 %v1281
  %v2934 = vpop.f32.mrf.mxu0
  %v2935 = vadd.f32 0.0, %v2934
  %v2936 = vpop.f32.mrf.mxu0
  %v2937 = vpop.f32.mrf.mxu0
  %v2938 = vadd.f32 0.0, %v2937
  %v2939 = vpop.f32.mrf.mxu0
  %2940 = vmatprep.mubr.bf16.mxu0 0
  %2941 = vmatmul.mubr.bf16.gmra.mxu0 %v1282
  %v2942 = vpop.f32.mrf.mxu0
  %v2943 = vadd.f32 0.0, %v2942
  %v2944 = vpop.f32.mrf.mxu0
  %v2945 = vpop.f32.mrf.mxu0
  %v2946 = vadd.f32 0.0, %v2945
  %v2947 = vpop.f32.mrf.mxu0
  %2948 = vmatprep.mubr.bf16.mxu0 0
  %2949 = vmatmul.mubr.bf16.gmra.mxu0 %v1283
  %v2950 = vpop.f32.mrf.mxu0
  %v2951 = vadd.f32 0.0, %v2950
  %v2952 = vpop.f32.mrf.mxu0
  %v2953 = vpop.f32.mrf.mxu0
  %v2954 = vadd.f32 0.0, %v2953
  %v2955 = vpop.f32.mrf.mxu0
  %2956 = vmatprep.mubr.bf16.mxu0 0
  %2957 = vmatmul.mubr.bf16.gmra.mxu0 %v1284
  %v2958 = vpop.f32.mrf.mxu0
  %v2959 = vadd.f32 0.0, %v2958
  %v2960 = vpop.f32.mrf.mxu0
  %v2961 = vpop.f32.mrf.mxu0
  %v2962 = vadd.f32 0.0, %v2961
  %v2963 = vpop.f32.mrf.mxu0
  %2964 = vmatprep.mubr.bf16.mxu0 0
  %2965 = vmatmul.mubr.bf16.gmra.mxu0 %v1285
  %v2966 = vpop.f32.mrf.mxu0
  %v2967 = vadd.f32 0.0, %v2966
  %v2968 = vpop.f32.mrf.mxu0
  %v2969 = vpop.f32.mrf.mxu0
  %v2970 = vadd.f32 0.0, %v2969
  %v2971 = vpop.f32.mrf.mxu0
  %2972 = vmatprep.mubr.bf16.mxu0 0
  %2973 = vmatmul.mubr.bf16.gmra.mxu0 %v1286
  %v2974 = vpop.f32.mrf.mxu0
  %v2975 = vadd.f32 0.0, %v2974
  %v2976 = vpop.f32.mrf.mxu0
  %v2977 = vpop.f32.mrf.mxu0
  %v2978 = vadd.f32 0.0, %v2977
  %v2979 = vpop.f32.mrf.mxu0
  %2980 = vmatprep.mubr.bf16.mxu0 0
  %2981 = vmatmul.mubr.bf16.gmra.mxu0 %v1287
  %v2982 = vpop.f32.mrf.mxu0
  %v2983 = vadd.f32 0.0, %v2982
  %v2984 = vpop.f32.mrf.mxu0
  %v2985 = vpop.f32.mrf.mxu0
  %v2986 = vadd.f32 0.0, %v2985
  %v2987 = vpop.f32.mrf.mxu0
  %2988 = vdwg.mxu0
  %v2989 = vmul.f32 %v1551, %v2831
  %v2990 = vmul.f32 %v1554, %v2834
  %v2991 = vmul.f32 %v1559, %v2839
  %v2992 = vmul.f32 %v1562, %v2842
  %v2993 = vmul.f32 %v1567, %v2847
  %v2994 = vmul.f32 %v1570, %v2850
  %v2995 = vmul.f32 %v1575, %v2855
  %v2996 = vmul.f32 %v1578, %v2858
  %v2997 = vmul.f32 %v1583, %v2863
  %v2998 = vmul.f32 %v1586, %v2866
  %v2999 = vmul.f32 %v1591, %v2871
  %v3000 = vmul.f32 %v1594, %v2874
  %v3001 = vmul.f32 %v1599, %v2879
  %v3002 = vmul.f32 %v1602, %v2882
  %v3003 = vmul.f32 %v1607, %v2887
  %v3004 = vmul.f32 %v1610, %v2890
  %v3005 = vmul.f32 %v1615, %v2895
  %v3006 = vmul.f32 %v1618, %v2898
  %v3007 = vmul.f32 %v1623, %v2903
  %v3008 = vmul.f32 %v1626, %v2906
  %v3009 = vmul.f32 %v1631, %v2831
  %v3010 = vmul.f32 %v1634, %v2834
  %v3011 = vmul.f32 %v1639, %v2839
  %v3012 = vmul.f32 %v1642, %v2842
  %v3013 = vmul.f32 %v1647, %v2847
  %v3014 = vmul.f32 %v1650, %v2850
  %v3015 = vmul.f32 %v1655, %v2855
  %v3016 = vmul.f32 %v1658, %v2858
  %v3017 = vmul.f32 %v1663, %v2863
  %v3018 = vmul.f32 %v1666, %v2866
  %v3019 = vmul.f32 %v1671, %v2871
  %v3020 = vmul.f32 %v1674, %v2874
  %v3021 = vmul.f32 %v1679, %v2879
  %v3022 = vmul.f32 %v1682, %v2882
  %v3023 = vmul.f32 %v1687, %v2887
  %v3024 = vmul.f32 %v1690, %v2890
  %v3025 = vmul.f32 %v1695, %v2895
  %v3026 = vmul.f32 %v1698, %v2898
  %v3027 = vmul.f32 %v1703, %v2903
  %v3028 = vmul.f32 %v1706, %v2906
  %v3029 = vmul.f32 %v1711, %v2831
  %v3030 = vmul.f32 %v1714, %v2834
  %v3031 = vmul.f32 %v1719, %v2839
  %v3032 = vmul.f32 %v1722, %v2842
  %v3033 = vmul.f32 %v1727, %v2847
  %v3034 = vmul.f32 %v1730, %v2850
  %v3035 = vmul.f32 %v1735, %v2855
  %v3036 = vmul.f32 %v1738, %v2858
  %v3037 = vmul.f32 %v1743, %v2863
  %v3038 = vmul.f32 %v1746, %v2866
  %v3039 = vmul.f32 %v1751, %v2871
  %v3040 = vmul.f32 %v1754, %v2874
  %v3041 = vmul.f32 %v1759, %v2879
  %v3042 = vmul.f32 %v1762, %v2882
  %v3043 = vmul.f32 %v1767, %v2887
  %v3044 = vmul.f32 %v1770, %v2890
  %v3045 = vmul.f32 %v1775, %v2895
  %v3046 = vmul.f32 %v1778, %v2898
  %v3047 = vmul.f32 %v1783, %v2903
  %v3048 = vmul.f32 %v1786, %v2906
  %v3049 = vmul.f32 %v1791, %v2831
  %v3050 = vmul.f32 %v1794, %v2834
  %v3051 = vmul.f32 %v1799, %v2839
  %v3052 = vmul.f32 %v1802, %v2842
  %v3053 = vmul.f32 %v1807, %v2847
  %v3054 = vmul.f32 %v1810, %v2850
  %v3055 = vmul.f32 %v1815, %v2855
  %v3056 = vmul.f32 %v1818, %v2858
  %v3057 = vmul.f32 %v1823, %v2863
  %v3058 = vmul.f32 %v1826, %v2866
  %v3059 = vmul.f32 %v1831, %v2871
  %v3060 = vmul.f32 %v1834, %v2874
  %v3061 = vmul.f32 %v1839, %v2879
  %v3062 = vmul.f32 %v1842, %v2882
  %v3063 = vmul.f32 %v1847, %v2887
  %v3064 = vmul.f32 %v1850, %v2890
  %v3065 = vmul.f32 %v1855, %v2895
  %v3066 = vmul.f32 %v1858, %v2898
  %v3067 = vmul.f32 %v1863, %v2903
  %v3068 = vmul.f32 %v1866, %v2906
  %v3069 = vmul.f32 %v1871, %v2831
  %v3070 = vmul.f32 %v1874, %v2834
  %v3071 = vmul.f32 %v1879, %v2839
  %v3072 = vmul.f32 %v1882, %v2842
  %v3073 = vmul.f32 %v1887, %v2847
  %v3074 = vmul.f32 %v1890, %v2850
  %v3075 = vmul.f32 %v1895, %v2855
  %v3076 = vmul.f32 %v1898, %v2858
  %v3077 = vmul.f32 %v1903, %v2863
  %v3078 = vmul.f32 %v1906, %v2866
  %v3079 = vmul.f32 %v1911, %v2871
  %v3080 = vmul.f32 %v1914, %v2874
  %v3081 = vmul.f32 %v1919, %v2879
  %v3082 = vmul.f32 %v1922, %v2882
  %v3083 = vmul.f32 %v1927, %v2887
  %v3084 = vmul.f32 %v1930, %v2890
  %v3085 = vmul.f32 %v1935, %v2895
  %v3086 = vmul.f32 %v1938, %v2898
  %v3087 = vmul.f32 %v1943, %v2903
  %v3088 = vmul.f32 %v1946, %v2906
  %v3089 = vmul.f32 %v1951, %v2831
  %v3090 = vmul.f32 %v1954, %v2834
  %v3091 = vmul.f32 %v1959, %v2839
  %v3092 = vmul.f32 %v1962, %v2842
  %v3093 = vmul.f32 %v1967, %v2847
  %v3094 = vmul.f32 %v1970, %v2850
  %v3095 = vmul.f32 %v1975, %v2855
  %v3096 = vmul.f32 %v1978, %v2858
  %v3097 = vmul.f32 %v1983, %v2863
  %v3098 = vmul.f32 %v1986, %v2866
  %v3099 = vmul.f32 %v1991, %v2871
  %v3100 = vmul.f32 %v1994, %v2874
  %v3101 = vmul.f32 %v1999, %v2879
  %v3102 = vmul.f32 %v2002, %v2882
  %v3103 = vmul.f32 %v2007, %v2887
  %v3104 = vmul.f32 %v2010, %v2890
  %v3105 = vmul.f32 %v2015, %v2895
  %v3106 = vmul.f32 %v2018, %v2898
  %v3107 = vmul.f32 %v2023, %v2903
  %v3108 = vmul.f32 %v2026, %v2906
  %v3109 = vmul.f32 %v2031, %v2831
  %v3110 = vmul.f32 %v2034, %v2834
  %v3111 = vmul.f32 %v2039, %v2839
  %v3112 = vmul.f32 %v2042, %v2842
  %v3113 = vmul.f32 %v2047, %v2847
  %v3114 = vmul.f32 %v2050, %v2850
  %v3115 = vmul.f32 %v2055, %v2855
  %v3116 = vmul.f32 %v2058, %v2858
  %v3117 = vmul.f32 %v2063, %v2863
  %v3118 = vmul.f32 %v2066, %v2866
  %v3119 = vmul.f32 %v2071, %v2871
  %v3120 = vmul.f32 %v2074, %v2874
  %v3121 = vmul.f32 %v2079, %v2879
  %v3122 = vmul.f32 %v2082, %v2882
  %v3123 = vmul.f32 %v2087, %v2887
  %v3124 = vmul.f32 %v2090, %v2890
  %v3125 = vmul.f32 %v2095, %v2895
  %v3126 = vmul.f32 %v2098, %v2898
  %v3127 = vmul.f32 %v2103, %v2903
  %v3128 = vmul.f32 %v2106, %v2906
  %v3129 = vmul.f32 %v2111, %v2831
  %v3130 = vmul.f32 %v2114, %v2834
  %v3131 = vmul.f32 %v2119, %v2839
  %v3132 = vmul.f32 %v2122, %v2842
  %v3133 = vmul.f32 %v2127, %v2847
  %v3134 = vmul.f32 %v2130, %v2850
  %v3135 = vmul.f32 %v2135, %v2855
  %v3136 = vmul.f32 %v2138, %v2858
  %v3137 = vmul.f32 %v2143, %v2863
  %v3138 = vmul.f32 %v2146, %v2866
  %v3139 = vmul.f32 %v2151, %v2871
  %v3140 = vmul.f32 %v2154, %v2874
  %v3141 = vmul.f32 %v2159, %v2879
  %v3142 = vmul.f32 %v2162, %v2882
  %v3143 = vmul.f32 %v2167, %v2887
  %v3144 = vmul.f32 %v2170, %v2890
  %v3145 = vmul.f32 %v2175, %v2895
  %v3146 = vmul.f32 %v2178, %v2898
  %v3147 = vmul.f32 %v2183, %v2903
  %v3148 = vmul.f32 %v2186, %v2906
  %v3149 = vmul.f32 %v2191, %v2831
  %v3150 = vmul.f32 %v2194, %v2834
  %v3151 = vmul.f32 %v2199, %v2839
  %v3152 = vmul.f32 %v2202, %v2842
  %v3153 = vmul.f32 %v2207, %v2847
  %v3154 = vmul.f32 %v2210, %v2850
  %v3155 = vmul.f32 %v2215, %v2855
  %v3156 = vmul.f32 %v2218, %v2858
  %v3157 = vmul.f32 %v2223, %v2863
  %v3158 = vmul.f32 %v2226, %v2866
  %v3159 = vmul.f32 %v2231, %v2871
  %v3160 = vmul.f32 %v2234, %v2874
  %v3161 = vmul.f32 %v2239, %v2879
  %v3162 = vmul.f32 %v2242, %v2882
  %v3163 = vmul.f32 %v2247, %v2887
  %v3164 = vmul.f32 %v2250, %v2890
  %v3165 = vmul.f32 %v2255, %v2895
  %v3166 = vmul.f32 %v2258, %v2898
  %v3167 = vmul.f32 %v2263, %v2903
  %v3168 = vmul.f32 %v2266, %v2906
  %v3169 = vmul.f32 %v2271, %v2831
  %v3170 = vmul.f32 %v2274, %v2834
  %v3171 = vmul.f32 %v2279, %v2839
  %v3172 = vmul.f32 %v2282, %v2842
  %v3173 = vmul.f32 %v2287, %v2847
  %v3174 = vmul.f32 %v2290, %v2850
  %v3175 = vmul.f32 %v2295, %v2855
  %v3176 = vmul.f32 %v2298, %v2858
  %v3177 = vmul.f32 %v2303, %v2863
  %v3178 = vmul.f32 %v2306, %v2866
  %v3179 = vmul.f32 %v2311, %v2871
  %v3180 = vmul.f32 %v2314, %v2874
  %v3181 = vmul.f32 %v2319, %v2879
  %v3182 = vmul.f32 %v2322, %v2882
  %v3183 = vmul.f32 %v2327, %v2887
  %v3184 = vmul.f32 %v2330, %v2890
  %v3185 = vmul.f32 %v2335, %v2895
  %v3186 = vmul.f32 %v2338, %v2898
  %v3187 = vmul.f32 %v2343, %v2903
  %v3188 = vmul.f32 %v2346, %v2906
  %v3189 = vmul.f32 %v2351, %v2831
  %v3190 = vmul.f32 %v2354, %v2834
  %v3191 = vmul.f32 %v2359, %v2839
  %v3192 = vmul.f32 %v2362, %v2842
  %v3193 = vmul.f32 %v2367, %v2847
  %v3194 = vmul.f32 %v2370, %v2850
  %v3195 = vmul.f32 %v2375, %v2855
  %v3196 = vmul.f32 %v2378, %v2858
  %v3197 = vmul.f32 %v2383, %v2863
  %v3198 = vmul.f32 %v2386, %v2866
  %v3199 = vmul.f32 %v2391, %v2871
  %v3200 = vmul.f32 %v2394, %v2874
  %v3201 = vmul.f32 %v2399, %v2879
  %v3202 = vmul.f32 %v2402, %v2882
  %v3203 = vmul.f32 %v2407, %v2887
  %v3204 = vmul.f32 %v2410, %v2890
  %v3205 = vmul.f32 %v2415, %v2895
  %v3206 = vmul.f32 %v2418, %v2898
  %v3207 = vmul.f32 %v2423, %v2903
  %v3208 = vmul.f32 %v2426, %v2906
  %v3209 = vmul.f32 %v2431, %v2831
  %v3210 = vmul.f32 %v2434, %v2834
  %v3211 = vmul.f32 %v2439, %v2839
  %v3212 = vmul.f32 %v2442, %v2842
  %v3213 = vmul.f32 %v2447, %v2847
  %v3214 = vmul.f32 %v2450, %v2850
  %v3215 = vmul.f32 %v2455, %v2855
  %v3216 = vmul.f32 %v2458, %v2858
  %v3217 = vmul.f32 %v2463, %v2863
  %v3218 = vmul.f32 %v2466, %v2866
  %v3219 = vmul.f32 %v2471, %v2871
  %v3220 = vmul.f32 %v2474, %v2874
  %v3221 = vmul.f32 %v2479, %v2879
  %v3222 = vmul.f32 %v2482, %v2882
  %v3223 = vmul.f32 %v2487, %v2887
  %v3224 = vmul.f32 %v2490, %v2890
  %v3225 = vmul.f32 %v2495, %v2895
  %v3226 = vmul.f32 %v2498, %v2898
  %v3227 = vmul.f32 %v2503, %v2903
  %v3228 = vmul.f32 %v2506, %v2906
  %v3229 = vmul.f32 %v2511, %v2831
  %v3230 = vmul.f32 %v2514, %v2834
  %v3231 = vmul.f32 %v2519, %v2839
  %v3232 = vmul.f32 %v2522, %v2842
  %v3233 = vmul.f32 %v2527, %v2847
  %v3234 = vmul.f32 %v2530, %v2850
  %v3235 = vmul.f32 %v2535, %v2855
  %v3236 = vmul.f32 %v2538, %v2858
  %v3237 = vmul.f32 %v2543, %v2863
  %v3238 = vmul.f32 %v2546, %v2866
  %v3239 = vmul.f32 %v2551, %v2871
  %v3240 = vmul.f32 %v2554, %v2874
  %v3241 = vmul.f32 %v2559, %v2879
  %v3242 = vmul.f32 %v2562, %v2882
  %v3243 = vmul.f32 %v2567, %v2887
  %v3244 = vmul.f32 %v2570, %v2890
  %v3245 = vmul.f32 %v2575, %v2895
  %v3246 = vmul.f32 %v2578, %v2898
  %v3247 = vmul.f32 %v2583, %v2903
  %v3248 = vmul.f32 %v2586, %v2906
  %v3249 = vmul.f32 %v2591, %v2831
  %v3250 = vmul.f32 %v2594, %v2834
  %v3251 = vmul.f32 %v2599, %v2839
  %v3252 = vmul.f32 %v2602, %v2842
  %v3253 = vmul.f32 %v2607, %v2847
  %v3254 = vmul.f32 %v2610, %v2850
  %v3255 = vmul.f32 %v2615, %v2855
  %v3256 = vmul.f32 %v2618, %v2858
  %v3257 = vmul.f32 %v2623, %v2863
  %v3258 = vmul.f32 %v2626, %v2866
  %v3259 = vmul.f32 %v2631, %v2871
  %v3260 = vmul.f32 %v2634, %v2874
  %v3261 = vmul.f32 %v2639, %v2879
  %v3262 = vmul.f32 %v2642, %v2882
  %v3263 = vmul.f32 %v2647, %v2887
  %v3264 = vmul.f32 %v2650, %v2890
  %v3265 = vmul.f32 %v2655, %v2895
  %v3266 = vmul.f32 %v2658, %v2898
  %v3267 = vmul.f32 %v2663, %v2903
  %v3268 = vmul.f32 %v2666, %v2906
  %v3269 = vmul.f32 %v2671, %v2831
  %v3270 = vmul.f32 %v2674, %v2834
  %v3271 = vmul.f32 %v2679, %v2839
  %v3272 = vmul.f32 %v2682, %v2842
  %v3273 = vmul.f32 %v2687, %v2847
  %v3274 = vmul.f32 %v2690, %v2850
  %v3275 = vmul.f32 %v2695, %v2855
  %v3276 = vmul.f32 %v2698, %v2858
  %v3277 = vmul.f32 %v2703, %v2863
  %v3278 = vmul.f32 %v2706, %v2866
  %v3279 = vmul.f32 %v2711, %v2871
  %v3280 = vmul.f32 %v2714, %v2874
  %v3281 = vmul.f32 %v2719, %v2879
  %v3282 = vmul.f32 %v2722, %v2882
  %v3283 = vmul.f32 %v2727, %v2887
  %v3284 = vmul.f32 %v2730, %v2890
  %v3285 = vmul.f32 %v2735, %v2895
  %v3286 = vmul.f32 %v2738, %v2898
  %v3287 = vmul.f32 %v2743, %v2903
  %v3288 = vmul.f32 %v2746, %v2906
  %v3289 = vmul.f32 %v2751, %v2831
  %v3290 = vmul.f32 %v2754, %v2834
  %v3291 = vmul.f32 %v2759, %v2839
  %v3292 = vmul.f32 %v2762, %v2842
  %v3293 = vmul.f32 %v2767, %v2847
  %v3294 = vmul.f32 %v2770, %v2850
  %v3295 = vmul.f32 %v2775, %v2855
  %v3296 = vmul.f32 %v2778, %v2858
  %v3297 = vmul.f32 %v2783, %v2863
  %v3298 = vmul.f32 %v2786, %v2866
  %v3299 = vmul.f32 %v2791, %v2871
  %v3300 = vmul.f32 %v2794, %v2874
  %v3301 = vmul.f32 %v2799, %v2879
  %v3302 = vmul.f32 %v2802, %v2882
  %v3303 = vmul.f32 %v2807, %v2887
  %v3304 = vmul.f32 %v2810, %v2890
  %v3305 = vmul.f32 %v2815, %v2895
  %v3306 = vmul.f32 %v2818, %v2898
  %v3307 = vmul.f32 %v2823, %v2903
  %v3308 = vmul.f32 %v2826, %v2906
  %v3309 = vadd.f32 %v2989, %v2990
  %v3310 = vrot.slane %v3309, 4
  %v3311 = vadd.f32 %v3309, %v3310
  %v3312 = vrot.slane %v3311, 2
  %v3313 = vadd.f32 %v3311, %v3312
  %v3314 = vrot.slane %v3313, 1
  %v3315 = vadd.f32 %v3313, %v3314
  %v3316 = vadd.f32 %v2991, %v2992
  %v3317 = vrot.slane %v3316, 4
  %v3318 = vadd.f32 %v3316, %v3317
  %v3319 = vrot.slane %v3318, 2
  %v3320 = vadd.f32 %v3318, %v3319
  %v3321 = vrot.slane %v3320, 1
  %v3322 = vadd.f32 %v3320, %v3321
  %v3323 = vadd.f32 %v2993, %v2994
  %v3324 = vrot.slane %v3323, 4
  %v3325 = vadd.f32 %v3323, %v3324
  %v3326 = vrot.slane %v3325, 2
  %v3327 = vadd.f32 %v3325, %v3326
  %v3328 = vrot.slane %v3327, 1
  %v3329 = vadd.f32 %v3327, %v3328
  %v3330 = vadd.f32 %v2995, %v2996
  %v3331 = vrot.slane %v3330, 4
  %v3332 = vadd.f32 %v3330, %v3331
  %v3333 = vrot.slane %v3332, 2
  %v3334 = vadd.f32 %v3332, %v3333
  %v3335 = vrot.slane %v3334, 1
  %v3336 = vadd.f32 %v3334, %v3335
  %v3337 = vadd.f32 %v2997, %v2998
  %v3338 = vrot.slane %v3337, 4
  %v3339 = vadd.f32 %v3337, %v3338
  %v3340 = vrot.slane %v3339, 2
  %v3341 = vadd.f32 %v3339, %v3340
  %v3342 = vrot.slane %v3341, 1
  %v3343 = vadd.f32 %v3341, %v3342
  %v3344 = vadd.f32 %v2999, %v3000
  %v3345 = vrot.slane %v3344, 4
  %v3346 = vadd.f32 %v3344, %v3345
  %v3347 = vrot.slane %v3346, 2
  %v3348 = vadd.f32 %v3346, %v3347
  %v3349 = vrot.slane %v3348, 1
  %v3350 = vadd.f32 %v3348, %v3349
  %v3351 = vadd.f32 %v3001, %v3002
  %v3352 = vrot.slane %v3351, 4
  %v3353 = vadd.f32 %v3351, %v3352
  %v3354 = vrot.slane %v3353, 2
  %v3355 = vadd.f32 %v3353, %v3354
  %v3356 = vrot.slane %v3355, 1
  %v3357 = vadd.f32 %v3355, %v3356
  %v3358 = vadd.f32 %v3003, %v3004
  %v3359 = vrot.slane %v3358, 4
  %v3360 = vadd.f32 %v3358, %v3359
  %v3361 = vrot.slane %v3360, 2
  %v3362 = vadd.f32 %v3360, %v3361
  %v3363 = vrot.slane %v3362, 1
  %v3364 = vadd.f32 %v3362, %v3363
  %v3365 = vadd.f32 %v3005, %v3006
  %v3366 = vrot.slane %v3365, 4
  %v3367 = vadd.f32 %v3365, %v3366
  %v3368 = vrot.slane %v3367, 2
  %v3369 = vadd.f32 %v3367, %v3368
  %v3370 = vrot.slane %v3369, 1
  %v3371 = vadd.f32 %v3369, %v3370
  %v3372 = vadd.f32 %v3007, %v3008
  %v3373 = vrot.slane %v3372, 4
  %v3374 = vadd.f32 %v3372, %v3373
  %v3375 = vrot.slane %v3374, 2
  %v3376 = vadd.f32 %v3374, %v3375
  %v3377 = vrot.slane %v3376, 1
  %v3378 = vadd.f32 %v3376, %v3377
  %v3379 = vadd.f32 %v3009, %v3010
  %v3380 = vrot.slane %v3379, 4
  %v3381 = vadd.f32 %v3379, %v3380
  %v3382 = vrot.slane %v3381, 2
  %v3383 = vadd.f32 %v3381, %v3382
  %v3384 = vrot.slane %v3383, 1
  %v3385 = vadd.f32 %v3383, %v3384
  %v3386 = vadd.f32 %v3011, %v3012
  %v3387 = vrot.slane %v3386, 4
  %v3388 = vadd.f32 %v3386, %v3387
  %v3389 = vrot.slane %v3388, 2
  %v3390 = vadd.f32 %v3388, %v3389
  %v3391 = vrot.slane %v3390, 1
  %v3392 = vadd.f32 %v3390, %v3391
  %v3393 = vadd.f32 %v3013, %v3014
  %v3394 = vrot.slane %v3393, 4
  %v3395 = vadd.f32 %v3393, %v3394
  %v3396 = vrot.slane %v3395, 2
  %v3397 = vadd.f32 %v3395, %v3396
  %v3398 = vrot.slane %v3397, 1
  %v3399 = vadd.f32 %v3397, %v3398
  %v3400 = vadd.f32 %v3015, %v3016
  %v3401 = vrot.slane %v3400, 4
  %v3402 = vadd.f32 %v3400, %v3401
  %v3403 = vrot.slane %v3402, 2
  %v3404 = vadd.f32 %v3402, %v3403
  %v3405 = vrot.slane %v3404, 1
  %v3406 = vadd.f32 %v3404, %v3405
  %v3407 = vadd.f32 %v3017, %v3018
  %v3408 = vrot.slane %v3407, 4
  %v3409 = vadd.f32 %v3407, %v3408
  %v3410 = vrot.slane %v3409, 2
  %v3411 = vadd.f32 %v3409, %v3410
  %v3412 = vrot.slane %v3411, 1
  %v3413 = vadd.f32 %v3411, %v3412
  %v3414 = vadd.f32 %v3019, %v3020
  %v3415 = vrot.slane %v3414, 4
  %v3416 = vadd.f32 %v3414, %v3415
  %v3417 = vrot.slane %v3416, 2
  %v3418 = vadd.f32 %v3416, %v3417
  %v3419 = vrot.slane %v3418, 1
  %v3420 = vadd.f32 %v3418, %v3419
  %v3421 = vadd.f32 %v3021, %v3022
  %v3422 = vrot.slane %v3421, 4
  %v3423 = vadd.f32 %v3421, %v3422
  %v3424 = vrot.slane %v3423, 2
  %v3425 = vadd.f32 %v3423, %v3424
  %v3426 = vrot.slane %v3425, 1
  %v3427 = vadd.f32 %v3425, %v3426
  %v3428 = vadd.f32 %v3023, %v3024
  %v3429 = vrot.slane %v3428, 4
  %v3430 = vadd.f32 %v3428, %v3429
  %v3431 = vrot.slane %v3430, 2
  %v3432 = vadd.f32 %v3430, %v3431
  %v3433 = vrot.slane %v3432, 1
  %v3434 = vadd.f32 %v3432, %v3433
  %v3435 = vadd.f32 %v3025, %v3026
  %v3436 = vrot.slane %v3435, 4
  %v3437 = vadd.f32 %v3435, %v3436
  %v3438 = vrot.slane %v3437, 2
  %v3439 = vadd.f32 %v3437, %v3438
  %v3440 = vrot.slane %v3439, 1
  %v3441 = vadd.f32 %v3439, %v3440
  %v3442 = vadd.f32 %v3027, %v3028
  %v3443 = vrot.slane %v3442, 4
  %v3444 = vadd.f32 %v3442, %v3443
  %v3445 = vrot.slane %v3444, 2
  %v3446 = vadd.f32 %v3444, %v3445
  %v3447 = vrot.slane %v3446, 1
  %v3448 = vadd.f32 %v3446, %v3447
  %v3449 = vadd.f32 %v3029, %v3030
  %v3450 = vrot.slane %v3449, 4
  %v3451 = vadd.f32 %v3449, %v3450
  %v3452 = vrot.slane %v3451, 2
  %v3453 = vadd.f32 %v3451, %v3452
  %v3454 = vrot.slane %v3453, 1
  %v3455 = vadd.f32 %v3453, %v3454
  %v3456 = vadd.f32 %v3031, %v3032
  %v3457 = vrot.slane %v3456, 4
  %v3458 = vadd.f32 %v3456, %v3457
  %v3459 = vrot.slane %v3458, 2
  %v3460 = vadd.f32 %v3458, %v3459
  %v3461 = vrot.slane %v3460, 1
  %v3462 = vadd.f32 %v3460, %v3461
  %v3463 = vadd.f32 %v3033, %v3034
  %v3464 = vrot.slane %v3463, 4
  %v3465 = vadd.f32 %v3463, %v3464
  %v3466 = vrot.slane %v3465, 2
  %v3467 = vadd.f32 %v3465, %v3466
  %v3468 = vrot.slane %v3467, 1
  %v3469 = vadd.f32 %v3467, %v3468
  %v3470 = vadd.f32 %v3035, %v3036
  %v3471 = vrot.slane %v3470, 4
  %v3472 = vadd.f32 %v3470, %v3471
  %v3473 = vrot.slane %v3472, 2
  %v3474 = vadd.f32 %v3472, %v3473
  %v3475 = vrot.slane %v3474, 1
  %v3476 = vadd.f32 %v3474, %v3475
  %v3477 = vadd.f32 %v3037, %v3038
  %v3478 = vrot.slane %v3477, 4
  %v3479 = vadd.f32 %v3477, %v3478
  %v3480 = vrot.slane %v3479, 2
  %v3481 = vadd.f32 %v3479, %v3480
  %v3482 = vrot.slane %v3481, 1
  %v3483 = vadd.f32 %v3481, %v3482
  %v3484 = vadd.f32 %v3039, %v3040
  %v3485 = vrot.slane %v3484, 4
  %v3486 = vadd.f32 %v3484, %v3485
  %v3487 = vrot.slane %v3486, 2
  %v3488 = vadd.f32 %v3486, %v3487
  %v3489 = vrot.slane %v3488, 1
  %v3490 = vadd.f32 %v3488, %v3489
  %v3491 = vadd.f32 %v3041, %v3042
  %v3492 = vrot.slane %v3491, 4
  %v3493 = vadd.f32 %v3491, %v3492
  %v3494 = vrot.slane %v3493, 2
  %v3495 = vadd.f32 %v3493, %v3494
  %v3496 = vrot.slane %v3495, 1
  %v3497 = vadd.f32 %v3495, %v3496
  %v3498 = vadd.f32 %v3043, %v3044
  %v3499 = vrot.slane %v3498, 4
  %v3500 = vadd.f32 %v3498, %v3499
  %v3501 = vrot.slane %v3500, 2
  %v3502 = vadd.f32 %v3500, %v3501
  %v3503 = vrot.slane %v3502, 1
  %v3504 = vadd.f32 %v3502, %v3503
  %v3505 = vadd.f32 %v3045, %v3046
  %v3506 = vrot.slane %v3505, 4
  %v3507 = vadd.f32 %v3505, %v3506
  %v3508 = vrot.slane %v3507, 2
  %v3509 = vadd.f32 %v3507, %v3508
  %v3510 = vrot.slane %v3509, 1
  %v3511 = vadd.f32 %v3509, %v3510
  %v3512 = vadd.f32 %v3047, %v3048
  %v3513 = vrot.slane %v3512, 4
  %v3514 = vadd.f32 %v3512, %v3513
  %v3515 = vrot.slane %v3514, 2
  %v3516 = vadd.f32 %v3514, %v3515
  %v3517 = vrot.slane %v3516, 1
  %v3518 = vadd.f32 %v3516, %v3517
  %v3519 = vadd.f32 %v3049, %v3050
  %v3520 = vrot.slane %v3519, 4
  %v3521 = vadd.f32 %v3519, %v3520
  %v3522 = vrot.slane %v3521, 2
  %v3523 = vadd.f32 %v3521, %v3522
  %v3524 = vrot.slane %v3523, 1
  %v3525 = vadd.f32 %v3523, %v3524
  %v3526 = vadd.f32 %v3051, %v3052
  %v3527 = vrot.slane %v3526, 4
  %v3528 = vadd.f32 %v3526, %v3527
  %v3529 = vrot.slane %v3528, 2
  %v3530 = vadd.f32 %v3528, %v3529
  %v3531 = vrot.slane %v3530, 1
  %v3532 = vadd.f32 %v3530, %v3531
  %v3533 = vadd.f32 %v3053, %v3054
  %v3534 = vrot.slane %v3533, 4
  %v3535 = vadd.f32 %v3533, %v3534
  %v3536 = vrot.slane %v3535, 2
  %v3537 = vadd.f32 %v3535, %v3536
  %v3538 = vrot.slane %v3537, 1
  %v3539 = vadd.f32 %v3537, %v3538
  %v3540 = vadd.f32 %v3055, %v3056
  %v3541 = vrot.slane %v3540, 4
  %v3542 = vadd.f32 %v3540, %v3541
  %v3543 = vrot.slane %v3542, 2
  %v3544 = vadd.f32 %v3542, %v3543
  %v3545 = vrot.slane %v3544, 1
  %v3546 = vadd.f32 %v3544, %v3545
  %v3547 = vadd.f32 %v3057, %v3058
  %v3548 = vrot.slane %v3547, 4
  %v3549 = vadd.f32 %v3547, %v3548
  %v3550 = vrot.slane %v3549, 2
  %v3551 = vadd.f32 %v3549, %v3550
  %v3552 = vrot.slane %v3551, 1
  %v3553 = vadd.f32 %v3551, %v3552
  %v3554 = vadd.f32 %v3059, %v3060
  %v3555 = vrot.slane %v3554, 4
  %v3556 = vadd.f32 %v3554, %v3555
  %v3557 = vrot.slane %v3556, 2
  %v3558 = vadd.f32 %v3556, %v3557
  %v3559 = vrot.slane %v3558, 1
  %v3560 = vadd.f32 %v3558, %v3559
  %v3561 = vadd.f32 %v3061, %v3062
  %v3562 = vrot.slane %v3561, 4
  %v3563 = vadd.f32 %v3561, %v3562
  %v3564 = vrot.slane %v3563, 2
  %v3565 = vadd.f32 %v3563, %v3564
  %v3566 = vrot.slane %v3565, 1
  %v3567 = vadd.f32 %v3565, %v3566
  %v3568 = vadd.f32 %v3063, %v3064
  %v3569 = vrot.slane %v3568, 4
  %v3570 = vadd.f32 %v3568, %v3569
  %v3571 = vrot.slane %v3570, 2
  %v3572 = vadd.f32 %v3570, %v3571
  %v3573 = vrot.slane %v3572, 1
  %v3574 = vadd.f32 %v3572, %v3573
  %v3575 = vadd.f32 %v3065, %v3066
  %v3576 = vrot.slane %v3575, 4
  %v3577 = vadd.f32 %v3575, %v3576
  %v3578 = vrot.slane %v3577, 2
  %v3579 = vadd.f32 %v3577, %v3578
  %v3580 = vrot.slane %v3579, 1
  %v3581 = vadd.f32 %v3579, %v3580
  %v3582 = vadd.f32 %v3067, %v3068
  %v3583 = vrot.slane %v3582, 4
  %v3584 = vadd.f32 %v3582, %v3583
  %v3585 = vrot.slane %v3584, 2
  %v3586 = vadd.f32 %v3584, %v3585
  %v3587 = vrot.slane %v3586, 1
  %v3588 = vadd.f32 %v3586, %v3587
  %v3589 = vadd.f32 %v3069, %v3070
  %v3590 = vrot.slane %v3589, 4
  %v3591 = vadd.f32 %v3589, %v3590
  %v3592 = vrot.slane %v3591, 2
  %v3593 = vadd.f32 %v3591, %v3592
  %v3594 = vrot.slane %v3593, 1
  %v3595 = vadd.f32 %v3593, %v3594
  %v3596 = vadd.f32 %v3071, %v3072
  %v3597 = vrot.slane %v3596, 4
  %v3598 = vadd.f32 %v3596, %v3597
  %v3599 = vrot.slane %v3598, 2
  %v3600 = vadd.f32 %v3598, %v3599
  %v3601 = vrot.slane %v3600, 1
  %v3602 = vadd.f32 %v3600, %v3601
  %v3603 = vadd.f32 %v3073, %v3074
  %v3604 = vrot.slane %v3603, 4
  %v3605 = vadd.f32 %v3603, %v3604
  %v3606 = vrot.slane %v3605, 2
  %v3607 = vadd.f32 %v3605, %v3606
  %v3608 = vrot.slane %v3607, 1
  %v3609 = vadd.f32 %v3607, %v3608
  %v3610 = vadd.f32 %v3075, %v3076
  %v3611 = vrot.slane %v3610, 4
  %v3612 = vadd.f32 %v3610, %v3611
  %v3613 = vrot.slane %v3612, 2
  %v3614 = vadd.f32 %v3612, %v3613
  %v3615 = vrot.slane %v3614, 1
  %v3616 = vadd.f32 %v3614, %v3615
  %v3617 = vadd.f32 %v3077, %v3078
  %v3618 = vrot.slane %v3617, 4
  %v3619 = vadd.f32 %v3617, %v3618
  %v3620 = vrot.slane %v3619, 2
  %v3621 = vadd.f32 %v3619, %v3620
  %v3622 = vrot.slane %v3621, 1
  %v3623 = vadd.f32 %v3621, %v3622
  %v3624 = vadd.f32 %v3079, %v3080
  %v3625 = vrot.slane %v3624, 4
  %v3626 = vadd.f32 %v3624, %v3625
  %v3627 = vrot.slane %v3626, 2
  %v3628 = vadd.f32 %v3626, %v3627
  %v3629 = vrot.slane %v3628, 1
  %v3630 = vadd.f32 %v3628, %v3629
  %v3631 = vadd.f32 %v3081, %v3082
  %v3632 = vrot.slane %v3631, 4
  %v3633 = vadd.f32 %v3631, %v3632
  %v3634 = vrot.slane %v3633, 2
  %v3635 = vadd.f32 %v3633, %v3634
  %v3636 = vrot.slane %v3635, 1
  %v3637 = vadd.f32 %v3635, %v3636
  %v3638 = vadd.f32 %v3083, %v3084
  %v3639 = vrot.slane %v3638, 4
  %v3640 = vadd.f32 %v3638, %v3639
  %v3641 = vrot.slane %v3640, 2
  %v3642 = vadd.f32 %v3640, %v3641
  %v3643 = vrot.slane %v3642, 1
  %v3644 = vadd.f32 %v3642, %v3643
  %v3645 = vadd.f32 %v3085, %v3086
  %v3646 = vrot.slane %v3645, 4
  %v3647 = vadd.f32 %v3645, %v3646
  %v3648 = vrot.slane %v3647, 2
  %v3649 = vadd.f32 %v3647, %v3648
  %v3650 = vrot.slane %v3649, 1
  %v3651 = vadd.f32 %v3649, %v3650
  %v3652 = vadd.f32 %v3087, %v3088
  %v3653 = vrot.slane %v3652, 4
  %v3654 = vadd.f32 %v3652, %v3653
  %v3655 = vrot.slane %v3654, 2
  %v3656 = vadd.f32 %v3654, %v3655
  %v3657 = vrot.slane %v3656, 1
  %v3658 = vadd.f32 %v3656, %v3657
  %v3659 = vadd.f32 %v3089, %v3090
  %v3660 = vrot.slane %v3659, 4
  %v3661 = vadd.f32 %v3659, %v3660
  %v3662 = vrot.slane %v3661, 2
  %v3663 = vadd.f32 %v3661, %v3662
  %v3664 = vrot.slane %v3663, 1
  %v3665 = vadd.f32 %v3663, %v3664
  %v3666 = vadd.f32 %v3091, %v3092
  %v3667 = vrot.slane %v3666, 4
  %v3668 = vadd.f32 %v3666, %v3667
  %v3669 = vrot.slane %v3668, 2
  %v3670 = vadd.f32 %v3668, %v3669
  %v3671 = vrot.slane %v3670, 1
  %v3672 = vadd.f32 %v3670, %v3671
  %v3673 = vadd.f32 %v3093, %v3094
  %v3674 = vrot.slane %v3673, 4
  %v3675 = vadd.f32 %v3673, %v3674
  %v3676 = vrot.slane %v3675, 2
  %v3677 = vadd.f32 %v3675, %v3676
  %v3678 = vrot.slane %v3677, 1
  %v3679 = vadd.f32 %v3677, %v3678
  %v3680 = vadd.f32 %v3095, %v3096
  %v3681 = vrot.slane %v3680, 4
  %v3682 = vadd.f32 %v3680, %v3681
  %v3683 = vrot.slane %v3682, 2
  %v3684 = vadd.f32 %v3682, %v3683
  %v3685 = vrot.slane %v3684, 1
  %v3686 = vadd.f32 %v3684, %v3685
  %v3687 = vadd.f32 %v3097, %v3098
  %v3688 = vrot.slane %v3687, 4
  %v3689 = vadd.f32 %v3687, %v3688
  %v3690 = vrot.slane %v3689, 2
  %v3691 = vadd.f32 %v3689, %v3690
  %v3692 = vrot.slane %v3691, 1
  %v3693 = vadd.f32 %v3691, %v3692
  %v3694 = vadd.f32 %v3099, %v3100
  %v3695 = vrot.slane %v3694, 4
  %v3696 = vadd.f32 %v3694, %v3695
  %v3697 = vrot.slane %v3696, 2
  %v3698 = vadd.f32 %v3696, %v3697
  %v3699 = vrot.slane %v3698, 1
  %v3700 = vadd.f32 %v3698, %v3699
  %v3701 = vadd.f32 %v3101, %v3102
  %v3702 = vrot.slane %v3701, 4
  %v3703 = vadd.f32 %v3701, %v3702
  %v3704 = vrot.slane %v3703, 2
  %v3705 = vadd.f32 %v3703, %v3704
  %v3706 = vrot.slane %v3705, 1
  %v3707 = vadd.f32 %v3705, %v3706
  %v3708 = vadd.f32 %v3103, %v3104
  %v3709 = vrot.slane %v3708, 4
  %v3710 = vadd.f32 %v3708, %v3709
  %v3711 = vrot.slane %v3710, 2
  %v3712 = vadd.f32 %v3710, %v3711
  %v3713 = vrot.slane %v3712, 1
  %v3714 = vadd.f32 %v3712, %v3713
  %v3715 = vadd.f32 %v3105, %v3106
  %v3716 = vrot.slane %v3715, 4
  %v3717 = vadd.f32 %v3715, %v3716
  %v3718 = vrot.slane %v3717, 2
  %v3719 = vadd.f32 %v3717, %v3718
  %v3720 = vrot.slane %v3719, 1
  %v3721 = vadd.f32 %v3719, %v3720
  %v3722 = vadd.f32 %v3107, %v3108
  %v3723 = vrot.slane %v3722, 4
  %v3724 = vadd.f32 %v3722, %v3723
  %v3725 = vrot.slane %v3724, 2
  %v3726 = vadd.f32 %v3724, %v3725
  %v3727 = vrot.slane %v3726, 1
  %v3728 = vadd.f32 %v3726, %v3727
  %v3729 = vadd.f32 %v3109, %v3110
  %v3730 = vrot.slane %v3729, 4
  %v3731 = vadd.f32 %v3729, %v3730
  %v3732 = vrot.slane %v3731, 2
  %v3733 = vadd.f32 %v3731, %v3732
  %v3734 = vrot.slane %v3733, 1
  %v3735 = vadd.f32 %v3733, %v3734
  %v3736 = vadd.f32 %v3111, %v3112
  %v3737 = vrot.slane %v3736, 4
  %v3738 = vadd.f32 %v3736, %v3737
  %v3739 = vrot.slane %v3738, 2
  %v3740 = vadd.f32 %v3738, %v3739
  %v3741 = vrot.slane %v3740, 1
  %v3742 = vadd.f32 %v3740, %v3741
  %v3743 = vadd.f32 %v3113, %v3114
  %v3744 = vrot.slane %v3743, 4
  %v3745 = vadd.f32 %v3743, %v3744
  %v3746 = vrot.slane %v3745, 2
  %v3747 = vadd.f32 %v3745, %v3746
  %v3748 = vrot.slane %v3747, 1
  %v3749 = vadd.f32 %v3747, %v3748
  %v3750 = vadd.f32 %v3115, %v3116
  %v3751 = vrot.slane %v3750, 4
  %v3752 = vadd.f32 %v3750, %v3751
  %v3753 = vrot.slane %v3752, 2
  %v3754 = vadd.f32 %v3752, %v3753
  %v3755 = vrot.slane %v3754, 1
  %v3756 = vadd.f32 %v3754, %v3755
  %v3757 = vadd.f32 %v3117, %v3118
  %v3758 = vrot.slane %v3757, 4
  %v3759 = vadd.f32 %v3757, %v3758
  %v3760 = vrot.slane %v3759, 2
  %v3761 = vadd.f32 %v3759, %v3760
  %v3762 = vrot.slane %v3761, 1
  %v3763 = vadd.f32 %v3761, %v3762
  %v3764 = vadd.f32 %v3119, %v3120
  %v3765 = vrot.slane %v3764, 4
  %v3766 = vadd.f32 %v3764, %v3765
  %v3767 = vrot.slane %v3766, 2
  %v3768 = vadd.f32 %v3766, %v3767
  %v3769 = vrot.slane %v3768, 1
  %v3770 = vadd.f32 %v3768, %v3769
  %v3771 = vadd.f32 %v3121, %v3122
  %v3772 = vrot.slane %v3771, 4
  %v3773 = vadd.f32 %v3771, %v3772
  %v3774 = vrot.slane %v3773, 2
  %v3775 = vadd.f32 %v3773, %v3774
  %v3776 = vrot.slane %v3775, 1
  %v3777 = vadd.f32 %v3775, %v3776
  %v3778 = vadd.f32 %v3123, %v3124
  %v3779 = vrot.slane %v3778, 4
  %v3780 = vadd.f32 %v3778, %v3779
  %v3781 = vrot.slane %v3780, 2
  %v3782 = vadd.f32 %v3780, %v3781
  %v3783 = vrot.slane %v3782, 1
  %v3784 = vadd.f32 %v3782, %v3783
  %v3785 = vadd.f32 %v3125, %v3126
  %v3786 = vrot.slane %v3785, 4
  %v3787 = vadd.f32 %v3785, %v3786
  %v3788 = vrot.slane %v3787, 2
  %v3789 = vadd.f32 %v3787, %v3788
  %v3790 = vrot.slane %v3789, 1
  %v3791 = vadd.f32 %v3789, %v3790
  %v3792 = vadd.f32 %v3127, %v3128
  %v3793 = vrot.slane %v3792, 4
  %v3794 = vadd.f32 %v3792, %v3793
  %v3795 = vrot.slane %v3794, 2
  %v3796 = vadd.f32 %v3794, %v3795
  %v3797 = vrot.slane %v3796, 1
  %v3798 = vadd.f32 %v3796, %v3797
  %v3799 = vadd.f32 %v3129, %v3130
  %v3800 = vrot.slane %v3799, 4
  %v3801 = vadd.f32 %v3799, %v3800
  %v3802 = vrot.slane %v3801, 2
  %v3803 = vadd.f32 %v3801, %v3802
  %v3804 = vrot.slane %v3803, 1
  %v3805 = vadd.f32 %v3803, %v3804
  %v3806 = vadd.f32 %v3131, %v3132
  %v3807 = vrot.slane %v3806, 4
  %v3808 = vadd.f32 %v3806, %v3807
  %v3809 = vrot.slane %v3808, 2
  %v3810 = vadd.f32 %v3808, %v3809
  %v3811 = vrot.slane %v3810, 1
  %v3812 = vadd.f32 %v3810, %v3811
  %v3813 = vadd.f32 %v3133, %v3134
  %v3814 = vrot.slane %v3813, 4
  %v3815 = vadd.f32 %v3813, %v3814
  %v3816 = vrot.slane %v3815, 2
  %v3817 = vadd.f32 %v3815, %v3816
  %v3818 = vrot.slane %v3817, 1
  %v3819 = vadd.f32 %v3817, %v3818
  %v3820 = vadd.f32 %v3135, %v3136
  %v3821 = vrot.slane %v3820, 4
  %v3822 = vadd.f32 %v3820, %v3821
  %v3823 = vrot.slane %v3822, 2
  %v3824 = vadd.f32 %v3822, %v3823
  %v3825 = vrot.slane %v3824, 1
  %v3826 = vadd.f32 %v3824, %v3825
  %v3827 = vadd.f32 %v3137, %v3138
  %v3828 = vrot.slane %v3827, 4
  %v3829 = vadd.f32 %v3827, %v3828
  %v3830 = vrot.slane %v3829, 2
  %v3831 = vadd.f32 %v3829, %v3830
  %v3832 = vrot.slane %v3831, 1
  %v3833 = vadd.f32 %v3831, %v3832
  %v3834 = vadd.f32 %v3139, %v3140
  %v3835 = vrot.slane %v3834, 4
  %v3836 = vadd.f32 %v3834, %v3835
  %v3837 = vrot.slane %v3836, 2
  %v3838 = vadd.f32 %v3836, %v3837
  %v3839 = vrot.slane %v3838, 1
  %v3840 = vadd.f32 %v3838, %v3839
  %v3841 = vadd.f32 %v3141, %v3142
  %v3842 = vrot.slane %v3841, 4
  %v3843 = vadd.f32 %v3841, %v3842
  %v3844 = vrot.slane %v3843, 2
  %v3845 = vadd.f32 %v3843, %v3844
  %v3846 = vrot.slane %v3845, 1
  %v3847 = vadd.f32 %v3845, %v3846
  %v3848 = vadd.f32 %v3143, %v3144
  %v3849 = vrot.slane %v3848, 4
  %v3850 = vadd.f32 %v3848, %v3849
  %v3851 = vrot.slane %v3850, 2
  %v3852 = vadd.f32 %v3850, %v3851
  %v3853 = vrot.slane %v3852, 1
  %v3854 = vadd.f32 %v3852, %v3853
  %v3855 = vadd.f32 %v3145, %v3146
  %v3856 = vrot.slane %v3855, 4
  %v3857 = vadd.f32 %v3855, %v3856
  %v3858 = vrot.slane %v3857, 2
  %v3859 = vadd.f32 %v3857, %v3858
  %v3860 = vrot.slane %v3859, 1
  %v3861 = vadd.f32 %v3859, %v3860
  %v3862 = vadd.f32 %v3147, %v3148
  %v3863 = vrot.slane %v3862, 4
  %v3864 = vadd.f32 %v3862, %v3863
  %v3865 = vrot.slane %v3864, 2
  %v3866 = vadd.f32 %v3864, %v3865
  %v3867 = vrot.slane %v3866, 1
  %v3868 = vadd.f32 %v3866, %v3867
  %v3869 = vadd.f32 %v3149, %v3150
  %v3870 = vrot.slane %v3869, 4
  %v3871 = vadd.f32 %v3869, %v3870
  %v3872 = vrot.slane %v3871, 2
  %v3873 = vadd.f32 %v3871, %v3872
  %v3874 = vrot.slane %v3873, 1
  %v3875 = vadd.f32 %v3873, %v3874
  %v3876 = vadd.f32 %v3151, %v3152
  %v3877 = vrot.slane %v3876, 4
  %v3878 = vadd.f32 %v3876, %v3877
  %v3879 = vrot.slane %v3878, 2
  %v3880 = vadd.f32 %v3878, %v3879
  %v3881 = vrot.slane %v3880, 1
  %v3882 = vadd.f32 %v3880, %v3881
  %v3883 = vadd.f32 %v3153, %v3154
  %v3884 = vrot.slane %v3883, 4
  %v3885 = vadd.f32 %v3883, %v3884
  %v3886 = vrot.slane %v3885, 2
  %v3887 = vadd.f32 %v3885, %v3886
  %v3888 = vrot.slane %v3887, 1
  %v3889 = vadd.f32 %v3887, %v3888
  %v3890 = vadd.f32 %v3155, %v3156
  %v3891 = vrot.slane %v3890, 4
  %v3892 = vadd.f32 %v3890, %v3891
  %v3893 = vrot.slane %v3892, 2
  %v3894 = vadd.f32 %v3892, %v3893
  %v3895 = vrot.slane %v3894, 1
  %v3896 = vadd.f32 %v3894, %v3895
  %v3897 = vadd.f32 %v3157, %v3158
  %v3898 = vrot.slane %v3897, 4
  %v3899 = vadd.f32 %v3897, %v3898
  %v3900 = vrot.slane %v3899, 2
  %v3901 = vadd.f32 %v3899, %v3900
  %v3902 = vrot.slane %v3901, 1
  %v3903 = vadd.f32 %v3901, %v3902
  %v3904 = vadd.f32 %v3159, %v3160
  %v3905 = vrot.slane %v3904, 4
  %v3906 = vadd.f32 %v3904, %v3905
  %v3907 = vrot.slane %v3906, 2
  %v3908 = vadd.f32 %v3906, %v3907
  %v3909 = vrot.slane %v3908, 1
  %v3910 = vadd.f32 %v3908, %v3909
  %v3911 = vadd.f32 %v3161, %v3162
  %v3912 = vrot.slane %v3911, 4
  %v3913 = vadd.f32 %v3911, %v3912
  %v3914 = vrot.slane %v3913, 2
  %v3915 = vadd.f32 %v3913, %v3914
  %v3916 = vrot.slane %v3915, 1
  %v3917 = vadd.f32 %v3915, %v3916
  %v3918 = vadd.f32 %v3163, %v3164
  %v3919 = vrot.slane %v3918, 4
  %v3920 = vadd.f32 %v3918, %v3919
  %v3921 = vrot.slane %v3920, 2
  %v3922 = vadd.f32 %v3920, %v3921
  %v3923 = vrot.slane %v3922, 1
  %v3924 = vadd.f32 %v3922, %v3923
  %v3925 = vadd.f32 %v3165, %v3166
  %v3926 = vrot.slane %v3925, 4
  %v3927 = vadd.f32 %v3925, %v3926
  %v3928 = vrot.slane %v3927, 2
  %v3929 = vadd.f32 %v3927, %v3928
  %v3930 = vrot.slane %v3929, 1
  %v3931 = vadd.f32 %v3929, %v3930
  %v3932 = vadd.f32 %v3167, %v3168
  %v3933 = vrot.slane %v3932, 4
  %v3934 = vadd.f32 %v3932, %v3933
  %v3935 = vrot.slane %v3934, 2
  %v3936 = vadd.f32 %v3934, %v3935
  %v3937 = vrot.slane %v3936, 1
  %v3938 = vadd.f32 %v3936, %v3937
  %v3939 = vadd.f32 %v3169, %v3170
  %v3940 = vrot.slane %v3939, 4
  %v3941 = vadd.f32 %v3939, %v3940
  %v3942 = vrot.slane %v3941, 2
  %v3943 = vadd.f32 %v3941, %v3942
  %v3944 = vrot.slane %v3943, 1
  %v3945 = vadd.f32 %v3943, %v3944
  %v3946 = vadd.f32 %v3171, %v3172
  %v3947 = vrot.slane %v3946, 4
  %v3948 = vadd.f32 %v3946, %v3947
  %v3949 = vrot.slane %v3948, 2
  %v3950 = vadd.f32 %v3948, %v3949
  %v3951 = vrot.slane %v3950, 1
  %v3952 = vadd.f32 %v3950, %v3951
  %v3953 = vadd.f32 %v3173, %v3174
  %v3954 = vrot.slane %v3953, 4
  %v3955 = vadd.f32 %v3953, %v3954
  %v3956 = vrot.slane %v3955, 2
  %v3957 = vadd.f32 %v3955, %v3956
  %v3958 = vrot.slane %v3957, 1
  %v3959 = vadd.f32 %v3957, %v3958
  %v3960 = vadd.f32 %v3175, %v3176
  %v3961 = vrot.slane %v3960, 4
  %v3962 = vadd.f32 %v3960, %v3961
  %v3963 = vrot.slane %v3962, 2
  %v3964 = vadd.f32 %v3962, %v3963
  %v3965 = vrot.slane %v3964, 1
  %v3966 = vadd.f32 %v3964, %v3965
  %v3967 = vadd.f32 %v3177, %v3178
  %v3968 = vrot.slane %v3967, 4
  %v3969 = vadd.f32 %v3967, %v3968
  %v3970 = vrot.slane %v3969, 2
  %v3971 = vadd.f32 %v3969, %v3970
  %v3972 = vrot.slane %v3971, 1
  %v3973 = vadd.f32 %v3971, %v3972
  %v3974 = vadd.f32 %v3179, %v3180
  %v3975 = vrot.slane %v3974, 4
  %v3976 = vadd.f32 %v3974, %v3975
  %v3977 = vrot.slane %v3976, 2
  %v3978 = vadd.f32 %v3976, %v3977
  %v3979 = vrot.slane %v3978, 1
  %v3980 = vadd.f32 %v3978, %v3979
  %v3981 = vadd.f32 %v3181, %v3182
  %v3982 = vrot.slane %v3981, 4
  %v3983 = vadd.f32 %v3981, %v3982
  %v3984 = vrot.slane %v3983, 2
  %v3985 = vadd.f32 %v3983, %v3984
  %v3986 = vrot.slane %v3985, 1
  %v3987 = vadd.f32 %v3985, %v3986
  %v3988 = vadd.f32 %v3183, %v3184
  %v3989 = vrot.slane %v3988, 4
  %v3990 = vadd.f32 %v3988, %v3989
  %v3991 = vrot.slane %v3990, 2
  %v3992 = vadd.f32 %v3990, %v3991
  %v3993 = vrot.slane %v3992, 1
  %v3994 = vadd.f32 %v3992, %v3993
  %v3995 = vadd.f32 %v3185, %v3186
  %v3996 = vrot.slane %v3995, 4
  %v3997 = vadd.f32 %v3995, %v3996
  %v3998 = vrot.slane %v3997, 2
  %v3999 = vadd.f32 %v3997, %v3998
  %v4000 = vrot.slane %v3999, 1
  %v4001 = vadd.f32 %v3999, %v4000
  %v4002 = vadd.f32 %v3187, %v3188
  %v4003 = vrot.slane %v4002, 4
  %v4004 = vadd.f32 %v4002, %v4003
  %v4005 = vrot.slane %v4004, 2
  %v4006 = vadd.f32 %v4004, %v4005
  %v4007 = vrot.slane %v4006, 1
  %v4008 = vadd.f32 %v4006, %v4007
  %v4009 = vadd.f32 %v3189, %v3190
  %v4010 = vrot.slane %v4009, 4
  %v4011 = vadd.f32 %v4009, %v4010
  %v4012 = vrot.slane %v4011, 2
  %v4013 = vadd.f32 %v4011, %v4012
  %v4014 = vrot.slane %v4013, 1
  %v4015 = vadd.f32 %v4013, %v4014
  %v4016 = vadd.f32 %v3191, %v3192
  %v4017 = vrot.slane %v4016, 4
  %v4018 = vadd.f32 %v4016, %v4017
  %v4019 = vrot.slane %v4018, 2
  %v4020 = vadd.f32 %v4018, %v4019
  %v4021 = vrot.slane %v4020, 1
  %v4022 = vadd.f32 %v4020, %v4021
  %v4023 = vadd.f32 %v3193, %v3194
  %v4024 = vrot.slane %v4023, 4
  %v4025 = vadd.f32 %v4023, %v4024
  %v4026 = vrot.slane %v4025, 2
  %v4027 = vadd.f32 %v4025, %v4026
  %v4028 = vrot.slane %v4027, 1
  %v4029 = vadd.f32 %v4027, %v4028
  %v4030 = vadd.f32 %v3195, %v3196
  %v4031 = vrot.slane %v4030, 4
  %v4032 = vadd.f32 %v4030, %v4031
  %v4033 = vrot.slane %v4032, 2
  %v4034 = vadd.f32 %v4032, %v4033
  %v4035 = vrot.slane %v4034, 1
  %v4036 = vadd.f32 %v4034, %v4035
  %v4037 = vadd.f32 %v3197, %v3198
  %v4038 = vrot.slane %v4037, 4
  %v4039 = vadd.f32 %v4037, %v4038
  %v4040 = vrot.slane %v4039, 2
  %v4041 = vadd.f32 %v4039, %v4040
  %v4042 = vrot.slane %v4041, 1
  %v4043 = vadd.f32 %v4041, %v4042
  %v4044 = vadd.f32 %v3199, %v3200
  %v4045 = vrot.slane %v4044, 4
  %v4046 = vadd.f32 %v4044, %v4045
  %v4047 = vrot.slane %v4046, 2
  %v4048 = vadd.f32 %v4046, %v4047
  %v4049 = vrot.slane %v4048, 1
  %v4050 = vadd.f32 %v4048, %v4049
  %v4051 = vadd.f32 %v3201, %v3202
  %v4052 = vrot.slane %v4051, 4
  %v4053 = vadd.f32 %v4051, %v4052
  %v4054 = vrot.slane %v4053, 2
  %v4055 = vadd.f32 %v4053, %v4054
  %v4056 = vrot.slane %v4055, 1
  %v4057 = vadd.f32 %v4055, %v4056
  %v4058 = vadd.f32 %v3203, %v3204
  %v4059 = vrot.slane %v4058, 4
  %v4060 = vadd.f32 %v4058, %v4059
  %v4061 = vrot.slane %v4060, 2
  %v4062 = vadd.f32 %v4060, %v4061
  %v4063 = vrot.slane %v4062, 1
  %v4064 = vadd.f32 %v4062, %v4063
  %v4065 = vadd.f32 %v3205, %v3206
  %v4066 = vrot.slane %v4065, 4
  %v4067 = vadd.f32 %v4065, %v4066
  %v4068 = vrot.slane %v4067, 2
  %v4069 = vadd.f32 %v4067, %v4068
  %v4070 = vrot.slane %v4069, 1
  %v4071 = vadd.f32 %v4069, %v4070
  %v4072 = vadd.f32 %v3207, %v3208
  %v4073 = vrot.slane %v4072, 4
  %v4074 = vadd.f32 %v4072, %v4073
  %v4075 = vrot.slane %v4074, 2
  %v4076 = vadd.f32 %v4074, %v4075
  %v4077 = vrot.slane %v4076, 1
  %v4078 = vadd.f32 %v4076, %v4077
  %v4079 = vadd.f32 %v3209, %v3210
  %v4080 = vrot.slane %v4079, 4
  %v4081 = vadd.f32 %v4079, %v4080
  %v4082 = vrot.slane %v4081, 2
  %v4083 = vadd.f32 %v4081, %v4082
  %v4084 = vrot.slane %v4083, 1
  %v4085 = vadd.f32 %v4083, %v4084
  %v4086 = vadd.f32 %v3211, %v3212
  %v4087 = vrot.slane %v4086, 4
  %v4088 = vadd.f32 %v4086, %v4087
  %v4089 = vrot.slane %v4088, 2
  %v4090 = vadd.f32 %v4088, %v4089
  %v4091 = vrot.slane %v4090, 1
  %v4092 = vadd.f32 %v4090, %v4091
  %v4093 = vadd.f32 %v3213, %v3214
  %v4094 = vrot.slane %v4093, 4
  %v4095 = vadd.f32 %v4093, %v4094
  %v4096 = vrot.slane %v4095, 2
  %v4097 = vadd.f32 %v4095, %v4096
  %v4098 = vrot.slane %v4097, 1
  %v4099 = vadd.f32 %v4097, %v4098
  %v4100 = vadd.f32 %v3215, %v3216
  %v4101 = vrot.slane %v4100, 4
  %v4102 = vadd.f32 %v4100, %v4101
  %v4103 = vrot.slane %v4102, 2
  %v4104 = vadd.f32 %v4102, %v4103
  %v4105 = vrot.slane %v4104, 1
  %v4106 = vadd.f32 %v4104, %v4105
  %v4107 = vadd.f32 %v3217, %v3218
  %v4108 = vrot.slane %v4107, 4
  %v4109 = vadd.f32 %v4107, %v4108
  %v4110 = vrot.slane %v4109, 2
  %v4111 = vadd.f32 %v4109, %v4110
  %v4112 = vrot.slane %v4111, 1
  %v4113 = vadd.f32 %v4111, %v4112
  %v4114 = vadd.f32 %v3219, %v3220
  %v4115 = vrot.slane %v4114, 4
  %v4116 = vadd.f32 %v4114, %v4115
  %v4117 = vrot.slane %v4116, 2
  %v4118 = vadd.f32 %v4116, %v4117
  %v4119 = vrot.slane %v4118, 1
  %v4120 = vadd.f32 %v4118, %v4119
  %v4121 = vadd.f32 %v3221, %v3222
  %v4122 = vrot.slane %v4121, 4
  %v4123 = vadd.f32 %v4121, %v4122
  %v4124 = vrot.slane %v4123, 2
  %v4125 = vadd.f32 %v4123, %v4124
  %v4126 = vrot.slane %v4125, 1
  %v4127 = vadd.f32 %v4125, %v4126
  %v4128 = vadd.f32 %v3223, %v3224
  %v4129 = vrot.slane %v4128, 4
  %v4130 = vadd.f32 %v4128, %v4129
  %v4131 = vrot.slane %v4130, 2
  %v4132 = vadd.f32 %v4130, %v4131
  %v4133 = vrot.slane %v4132, 1
  %v4134 = vadd.f32 %v4132, %v4133
  %v4135 = vadd.f32 %v3225, %v3226
  %v4136 = vrot.slane %v4135, 4
  %v4137 = vadd.f32 %v4135, %v4136
  %v4138 = vrot.slane %v4137, 2
  %v4139 = vadd.f32 %v4137, %v4138
  %v4140 = vrot.slane %v4139, 1
  %v4141 = vadd.f32 %v4139, %v4140
  %v4142 = vadd.f32 %v3227, %v3228
  %v4143 = vrot.slane %v4142, 4
  %v4144 = vadd.f32 %v4142, %v4143
  %v4145 = vrot.slane %v4144, 2
  %v4146 = vadd.f32 %v4144, %v4145
  %v4147 = vrot.slane %v4146, 1
  %v4148 = vadd.f32 %v4146, %v4147
  %v4149 = vadd.f32 %v3229, %v3230
  %v4150 = vrot.slane %v4149, 4
  %v4151 = vadd.f32 %v4149, %v4150
  %v4152 = vrot.slane %v4151, 2
  %v4153 = vadd.f32 %v4151, %v4152
  %v4154 = vrot.slane %v4153, 1
  %v4155 = vadd.f32 %v4153, %v4154
  %v4156 = vadd.f32 %v3231, %v3232
  %v4157 = vrot.slane %v4156, 4
  %v4158 = vadd.f32 %v4156, %v4157
  %v4159 = vrot.slane %v4158, 2
  %v4160 = vadd.f32 %v4158, %v4159
  %v4161 = vrot.slane %v4160, 1
  %v4162 = vadd.f32 %v4160, %v4161
  %v4163 = vadd.f32 %v3233, %v3234
  %v4164 = vrot.slane %v4163, 4
  %v4165 = vadd.f32 %v4163, %v4164
  %v4166 = vrot.slane %v4165, 2
  %v4167 = vadd.f32 %v4165, %v4166
  %v4168 = vrot.slane %v4167, 1
  %v4169 = vadd.f32 %v4167, %v4168
  %v4170 = vadd.f32 %v3235, %v3236
  %v4171 = vrot.slane %v4170, 4
  %v4172 = vadd.f32 %v4170, %v4171
  %v4173 = vrot.slane %v4172, 2
  %v4174 = vadd.f32 %v4172, %v4173
  %v4175 = vrot.slane %v4174, 1
  %v4176 = vadd.f32 %v4174, %v4175
  %v4177 = vadd.f32 %v3237, %v3238
  %v4178 = vrot.slane %v4177, 4
  %v4179 = vadd.f32 %v4177, %v4178
  %v4180 = vrot.slane %v4179, 2
  %v4181 = vadd.f32 %v4179, %v4180
  %v4182 = vrot.slane %v4181, 1
  %v4183 = vadd.f32 %v4181, %v4182
  %v4184 = vadd.f32 %v3239, %v3240
  %v4185 = vrot.slane %v4184, 4
  %v4186 = vadd.f32 %v4184, %v4185
  %v4187 = vrot.slane %v4186, 2
  %v4188 = vadd.f32 %v4186, %v4187
  %v4189 = vrot.slane %v4188, 1
  %v4190 = vadd.f32 %v4188, %v4189
  %v4191 = vadd.f32 %v3241, %v3242
  %v4192 = vrot.slane %v4191, 4
  %v4193 = vadd.f32 %v4191, %v4192
  %v4194 = vrot.slane %v4193, 2
  %v4195 = vadd.f32 %v4193, %v4194
  %v4196 = vrot.slane %v4195, 1
  %v4197 = vadd.f32 %v4195, %v4196
  %v4198 = vadd.f32 %v3243, %v3244
  %v4199 = vrot.slane %v4198, 4
  %v4200 = vadd.f32 %v4198, %v4199
  %v4201 = vrot.slane %v4200, 2
  %v4202 = vadd.f32 %v4200, %v4201
  %v4203 = vrot.slane %v4202, 1
  %v4204 = vadd.f32 %v4202, %v4203
  %v4205 = vadd.f32 %v3245, %v3246
  %v4206 = vrot.slane %v4205, 4
  %v4207 = vadd.f32 %v4205, %v4206
  %v4208 = vrot.slane %v4207, 2
  %v4209 = vadd.f32 %v4207, %v4208
  %v4210 = vrot.slane %v4209, 1
  %v4211 = vadd.f32 %v4209, %v4210
  %v4212 = vadd.f32 %v3247, %v3248
  %v4213 = vrot.slane %v4212, 4
  %v4214 = vadd.f32 %v4212, %v4213
  %v4215 = vrot.slane %v4214, 2
  %v4216 = vadd.f32 %v4214, %v4215
  %v4217 = vrot.slane %v4216, 1
  %v4218 = vadd.f32 %v4216, %v4217
  %v4219 = vadd.f32 %v3249, %v3250
  %v4220 = vrot.slane %v4219, 4
  %v4221 = vadd.f32 %v4219, %v4220
  %v4222 = vrot.slane %v4221, 2
  %v4223 = vadd.f32 %v4221, %v4222
  %v4224 = vrot.slane %v4223, 1
  %v4225 = vadd.f32 %v4223, %v4224
  %v4226 = vadd.f32 %v3251, %v3252
  %v4227 = vrot.slane %v4226, 4
  %v4228 = vadd.f32 %v4226, %v4227
  %v4229 = vrot.slane %v4228, 2
  %v4230 = vadd.f32 %v4228, %v4229
  %v4231 = vrot.slane %v4230, 1
  %v4232 = vadd.f32 %v4230, %v4231
  %v4233 = vadd.f32 %v3253, %v3254
  %v4234 = vrot.slane %v4233, 4
  %v4235 = vadd.f32 %v4233, %v4234
  %v4236 = vrot.slane %v4235, 2
  %v4237 = vadd.f32 %v4235, %v4236
  %v4238 = vrot.slane %v4237, 1
  %v4239 = vadd.f32 %v4237, %v4238
  %v4240 = vadd.f32 %v3255, %v3256
  %v4241 = vrot.slane %v4240, 4
  %v4242 = vadd.f32 %v4240, %v4241
  %v4243 = vrot.slane %v4242, 2
  %v4244 = vadd.f32 %v4242, %v4243
  %v4245 = vrot.slane %v4244, 1
  %v4246 = vadd.f32 %v4244, %v4245
  %v4247 = vadd.f32 %v3257, %v3258
  %v4248 = vrot.slane %v4247, 4
  %v4249 = vadd.f32 %v4247, %v4248
  %v4250 = vrot.slane %v4249, 2
  %v4251 = vadd.f32 %v4249, %v4250
  %v4252 = vrot.slane %v4251, 1
  %v4253 = vadd.f32 %v4251, %v4252
  %v4254 = vadd.f32 %v3259, %v3260
  %v4255 = vrot.slane %v4254, 4
  %v4256 = vadd.f32 %v4254, %v4255
  %v4257 = vrot.slane %v4256, 2
  %v4258 = vadd.f32 %v4256, %v4257
  %v4259 = vrot.slane %v4258, 1
  %v4260 = vadd.f32 %v4258, %v4259
  %v4261 = vadd.f32 %v3261, %v3262
  %v4262 = vrot.slane %v4261, 4
  %v4263 = vadd.f32 %v4261, %v4262
  %v4264 = vrot.slane %v4263, 2
  %v4265 = vadd.f32 %v4263, %v4264
  %v4266 = vrot.slane %v4265, 1
  %v4267 = vadd.f32 %v4265, %v4266
  %v4268 = vadd.f32 %v3263, %v3264
  %v4269 = vrot.slane %v4268, 4
  %v4270 = vadd.f32 %v4268, %v4269
  %v4271 = vrot.slane %v4270, 2
  %v4272 = vadd.f32 %v4270, %v4271
  %v4273 = vrot.slane %v4272, 1
  %v4274 = vadd.f32 %v4272, %v4273
  %v4275 = vadd.f32 %v3265, %v3266
  %v4276 = vrot.slane %v4275, 4
  %v4277 = vadd.f32 %v4275, %v4276
  %v4278 = vrot.slane %v4277, 2
  %v4279 = vadd.f32 %v4277, %v4278
  %v4280 = vrot.slane %v4279, 1
  %v4281 = vadd.f32 %v4279, %v4280
  %v4282 = vadd.f32 %v3267, %v3268
  %v4283 = vrot.slane %v4282, 4
  %v4284 = vadd.f32 %v4282, %v4283
  %v4285 = vrot.slane %v4284, 2
  %v4286 = vadd.f32 %v4284, %v4285
  %v4287 = vrot.slane %v4286, 1
  %v4288 = vadd.f32 %v4286, %v4287
  %v4289 = vadd.f32 %v3269, %v3270
  %v4290 = vrot.slane %v4289, 4
  %v4291 = vadd.f32 %v4289, %v4290
  %v4292 = vrot.slane %v4291, 2
  %v4293 = vadd.f32 %v4291, %v4292
  %v4294 = vrot.slane %v4293, 1
  %v4295 = vadd.f32 %v4293, %v4294
  %v4296 = vadd.f32 %v3271, %v3272
  %v4297 = vrot.slane %v4296, 4
  %v4298 = vadd.f32 %v4296, %v4297
  %v4299 = vrot.slane %v4298, 2
  %v4300 = vadd.f32 %v4298, %v4299
  %v4301 = vrot.slane %v4300, 1
  %v4302 = vadd.f32 %v4300, %v4301
  %v4303 = vadd.f32 %v3273, %v3274
  %v4304 = vrot.slane %v4303, 4
  %v4305 = vadd.f32 %v4303, %v4304
  %v4306 = vrot.slane %v4305, 2
  %v4307 = vadd.f32 %v4305, %v4306
  %v4308 = vrot.slane %v4307, 1
  %v4309 = vadd.f32 %v4307, %v4308
  %v4310 = vadd.f32 %v3275, %v3276
  %v4311 = vrot.slane %v4310, 4
  %v4312 = vadd.f32 %v4310, %v4311
  %v4313 = vrot.slane %v4312, 2
  %v4314 = vadd.f32 %v4312, %v4313
  %v4315 = vrot.slane %v4314, 1
  %v4316 = vadd.f32 %v4314, %v4315
  %v4317 = vadd.f32 %v3277, %v3278
  %v4318 = vrot.slane %v4317, 4
  %v4319 = vadd.f32 %v4317, %v4318
  %v4320 = vrot.slane %v4319, 2
  %v4321 = vadd.f32 %v4319, %v4320
  %v4322 = vrot.slane %v4321, 1
  %v4323 = vadd.f32 %v4321, %v4322
  %v4324 = vadd.f32 %v3279, %v3280
  %v4325 = vrot.slane %v4324, 4
  %v4326 = vadd.f32 %v4324, %v4325
  %v4327 = vrot.slane %v4326, 2
  %v4328 = vadd.f32 %v4326, %v4327
  %v4329 = vrot.slane %v4328, 1
  %v4330 = vadd.f32 %v4328, %v4329
  %v4331 = vadd.f32 %v3281, %v3282
  %v4332 = vrot.slane %v4331, 4
  %v4333 = vadd.f32 %v4331, %v4332
  %v4334 = vrot.slane %v4333, 2
  %v4335 = vadd.f32 %v4333, %v4334
  %v4336 = vrot.slane %v4335, 1
  %v4337 = vadd.f32 %v4335, %v4336
  %v4338 = vadd.f32 %v3283, %v3284
  %v4339 = vrot.slane %v4338, 4
  %v4340 = vadd.f32 %v4338, %v4339
  %v4341 = vrot.slane %v4340, 2
  %v4342 = vadd.f32 %v4340, %v4341
  %v4343 = vrot.slane %v4342, 1
  %v4344 = vadd.f32 %v4342, %v4343
  %v4345 = vadd.f32 %v3285, %v3286
  %v4346 = vrot.slane %v4345, 4
  %v4347 = vadd.f32 %v4345, %v4346
  %v4348 = vrot.slane %v4347, 2
  %v4349 = vadd.f32 %v4347, %v4348
  %v4350 = vrot.slane %v4349, 1
  %v4351 = vadd.f32 %v4349, %v4350
  %v4352 = vadd.f32 %v3287, %v3288
  %v4353 = vrot.slane %v4352, 4
  %v4354 = vadd.f32 %v4352, %v4353
  %v4355 = vrot.slane %v4354, 2
  %v4356 = vadd.f32 %v4354, %v4355
  %v4357 = vrot.slane %v4356, 1
  %v4358 = vadd.f32 %v4356, %v4357
  %v4359 = vadd.f32 %v3289, %v3290
  %v4360 = vrot.slane %v4359, 4
  %v4361 = vadd.f32 %v4359, %v4360
  %v4362 = vrot.slane %v4361, 2
  %v4363 = vadd.f32 %v4361, %v4362
  %v4364 = vrot.slane %v4363, 1
  %v4365 = vadd.f32 %v4363, %v4364
  %v4366 = vadd.f32 %v3291, %v3292
  %v4367 = vrot.slane %v4366, 4
  %v4368 = vadd.f32 %v4366, %v4367
  %v4369 = vrot.slane %v4368, 2
  %v4370 = vadd.f32 %v4368, %v4369
  %v4371 = vrot.slane %v4370, 1
  %v4372 = vadd.f32 %v4370, %v4371
  %v4373 = vadd.f32 %v3293, %v3294
  %v4374 = vrot.slane %v4373, 4
  %v4375 = vadd.f32 %v4373, %v4374
  %v4376 = vrot.slane %v4375, 2
  %v4377 = vadd.f32 %v4375, %v4376
  %v4378 = vrot.slane %v4377, 1
  %v4379 = vadd.f32 %v4377, %v4378
  %v4380 = vadd.f32 %v3295, %v3296
  %v4381 = vrot.slane %v4380, 4
  %v4382 = vadd.f32 %v4380, %v4381
  %v4383 = vrot.slane %v4382, 2
  %v4384 = vadd.f32 %v4382, %v4383
  %v4385 = vrot.slane %v4384, 1
  %v4386 = vadd.f32 %v4384, %v4385
  %v4387 = vadd.f32 %v3297, %v3298
  %v4388 = vrot.slane %v4387, 4
  %v4389 = vadd.f32 %v4387, %v4388
  %v4390 = vrot.slane %v4389, 2
  %v4391 = vadd.f32 %v4389, %v4390
  %v4392 = vrot.slane %v4391, 1
  %v4393 = vadd.f32 %v4391, %v4392
  %v4394 = vadd.f32 %v3299, %v3300
  %v4395 = vrot.slane %v4394, 4
  %v4396 = vadd.f32 %v4394, %v4395
  %v4397 = vrot.slane %v4396, 2
  %v4398 = vadd.f32 %v4396, %v4397
  %v4399 = vrot.slane %v4398, 1
  %v4400 = vadd.f32 %v4398, %v4399
  %v4401 = vadd.f32 %v3301, %v3302
  %v4402 = vrot.slane %v4401, 4
  %v4403 = vadd.f32 %v4401, %v4402
  %v4404 = vrot.slane %v4403, 2
  %v4405 = vadd.f32 %v4403, %v4404
  %v4406 = vrot.slane %v4405, 1
  %v4407 = vadd.f32 %v4405, %v4406
  %v4408 = vadd.f32 %v3303, %v3304
  %v4409 = vrot.slane %v4408, 4
  %v4410 = vadd.f32 %v4408, %v4409
  %v4411 = vrot.slane %v4410, 2
  %v4412 = vadd.f32 %v4410, %v4411
  %v4413 = vrot.slane %v4412, 1
  %v4414 = vadd.f32 %v4412, %v4413
  %v4415 = vadd.f32 %v3305, %v3306
  %v4416 = vrot.slane %v4415, 4
  %v4417 = vadd.f32 %v4415, %v4416
  %v4418 = vrot.slane %v4417, 2
  %v4419 = vadd.f32 %v4417, %v4418
  %v4420 = vrot.slane %v4419, 1
  %v4421 = vadd.f32 %v4419, %v4420
  %v4422 = vadd.f32 %v3307, %v3308
  %v4423 = vrot.slane %v4422, 4
  %v4424 = vadd.f32 %v4422, %v4423
  %v4425 = vrot.slane %v4424, 2
  %v4426 = vadd.f32 %v4424, %v4425
  %v4427 = vrot.slane %v4426, 1
  %v4428 = vadd.f32 %v4426, %v4427
  %v4429 = vmax.f32 %v3315, %v3322
  %v4430 = vmax.f32 %v4429, %v3329
  %v4431 = vmax.f32 %v4430, %v3336
  %v4432 = vmax.f32 %v4431, %v3343
  %v4433 = vmax.f32 %v4432, %v3350
  %v4434 = vmax.f32 %v4433, %v3357
  %v4435 = vmax.f32 %v4434, %v3364
  %v4436 = vmax.f32 %v4435, %v3371
  %v4437 = vmax.f32 %v4436, %v3378
  %v4438 = vmax.f32 %v3385, %v3392
  %v4439 = vmax.f32 %v4438, %v3399
  %v4440 = vmax.f32 %v4439, %v3406
  %v4441 = vmax.f32 %v4440, %v3413
  %v4442 = vmax.f32 %v4441, %v3420
  %v4443 = vmax.f32 %v4442, %v3427
  %v4444 = vmax.f32 %v4443, %v3434
  %v4445 = vmax.f32 %v4444, %v3441
  %v4446 = vmax.f32 %v4445, %v3448
  %v4447 = vmax.f32 %v3455, %v3462
  %v4448 = vmax.f32 %v4447, %v3469
  %v4449 = vmax.f32 %v4448, %v3476
  %v4450 = vmax.f32 %v4449, %v3483
  %v4451 = vmax.f32 %v4450, %v3490
  %v4452 = vmax.f32 %v4451, %v3497
  %v4453 = vmax.f32 %v4452, %v3504
  %v4454 = vmax.f32 %v4453, %v3511
  %v4455 = vmax.f32 %v4454, %v3518
  %v4456 = vmax.f32 %v3525, %v3532
  %v4457 = vmax.f32 %v4456, %v3539
  %v4458 = vmax.f32 %v4457, %v3546
  %v4459 = vmax.f32 %v4458, %v3553
  %v4460 = vmax.f32 %v4459, %v3560
  %v4461 = vmax.f32 %v4460, %v3567
  %v4462 = vmax.f32 %v4461, %v3574
  %v4463 = vmax.f32 %v4462, %v3581
  %v4464 = vmax.f32 %v4463, %v3588
  %v4465 = vmax.f32 %v3595, %v3602
  %v4466 = vmax.f32 %v4465, %v3609
  %v4467 = vmax.f32 %v4466, %v3616
  %v4468 = vmax.f32 %v4467, %v3623
  %v4469 = vmax.f32 %v4468, %v3630
  %v4470 = vmax.f32 %v4469, %v3637
  %v4471 = vmax.f32 %v4470, %v3644
  %v4472 = vmax.f32 %v4471, %v3651
  %v4473 = vmax.f32 %v4472, %v3658
  %v4474 = vmax.f32 %v3665, %v3672
  %v4475 = vmax.f32 %v4474, %v3679
  %v4476 = vmax.f32 %v4475, %v3686
  %v4477 = vmax.f32 %v4476, %v3693
  %v4478 = vmax.f32 %v4477, %v3700
  %v4479 = vmax.f32 %v4478, %v3707
  %v4480 = vmax.f32 %v4479, %v3714
  %v4481 = vmax.f32 %v4480, %v3721
  %v4482 = vmax.f32 %v4481, %v3728
  %v4483 = vmax.f32 %v3735, %v3742
  %v4484 = vmax.f32 %v4483, %v3749
  %v4485 = vmax.f32 %v4484, %v3756
  %v4486 = vmax.f32 %v4485, %v3763
  %v4487 = vmax.f32 %v4486, %v3770
  %v4488 = vmax.f32 %v4487, %v3777
  %v4489 = vmax.f32 %v4488, %v3784
  %v4490 = vmax.f32 %v4489, %v3791
  %v4491 = vmax.f32 %v4490, %v3798
  %v4492 = vmax.f32 %v3805, %v3812
  %v4493 = vmax.f32 %v4492, %v3819
  %v4494 = vmax.f32 %v4493, %v3826
  %v4495 = vmax.f32 %v4494, %v3833
  %v4496 = vmax.f32 %v4495, %v3840
  %v4497 = vmax.f32 %v4496, %v3847
  %v4498 = vmax.f32 %v4497, %v3854
  %v4499 = vmax.f32 %v4498, %v3861
  %v4500 = vmax.f32 %v4499, %v3868
  %v4501 = vmax.f32 %v3875, %v3882
  %v4502 = vmax.f32 %v4501, %v3889
  %v4503 = vmax.f32 %v4502, %v3896
  %v4504 = vmax.f32 %v4503, %v3903
  %v4505 = vmax.f32 %v4504, %v3910
  %v4506 = vmax.f32 %v4505, %v3917
  %v4507 = vmax.f32 %v4506, %v3924
  %v4508 = vmax.f32 %v4507, %v3931
  %v4509 = vmax.f32 %v4508, %v3938
  %v4510 = vmax.f32 %v3945, %v3952
  %v4511 = vmax.f32 %v4510, %v3959
  %v4512 = vmax.f32 %v4511, %v3966
  %v4513 = vmax.f32 %v4512, %v3973
  %v4514 = vmax.f32 %v4513, %v3980
  %v4515 = vmax.f32 %v4514, %v3987
  %v4516 = vmax.f32 %v4515, %v3994
  %v4517 = vmax.f32 %v4516, %v4001
  %v4518 = vmax.f32 %v4517, %v4008
  %v4519 = vmax.f32 %v4015, %v4022
  %v4520 = vmax.f32 %v4519, %v4029
  %v4521 = vmax.f32 %v4520, %v4036
  %v4522 = vmax.f32 %v4521, %v4043
  %v4523 = vmax.f32 %v4522, %v4050
  %v4524 = vmax.f32 %v4523, %v4057
  %v4525 = vmax.f32 %v4524, %v4064
  %v4526 = vmax.f32 %v4525, %v4071
  %v4527 = vmax.f32 %v4526, %v4078
  %v4528 = vmax.f32 %v4085, %v4092
  %v4529 = vmax.f32 %v4528, %v4099
  %v4530 = vmax.f32 %v4529, %v4106
  %v4531 = vmax.f32 %v4530, %v4113
  %v4532 = vmax.f32 %v4531, %v4120
  %v4533 = vmax.f32 %v4532, %v4127
  %v4534 = vmax.f32 %v4533, %v4134
  %v4535 = vmax.f32 %v4534, %v4141
  %v4536 = vmax.f32 %v4535, %v4148
  %v4537 = vmax.f32 %v4155, %v4162
  %v4538 = vmax.f32 %v4537, %v4169
  %v4539 = vmax.f32 %v4538, %v4176
  %v4540 = vmax.f32 %v4539, %v4183
  %v4541 = vmax.f32 %v4540, %v4190
  %v4542 = vmax.f32 %v4541, %v4197
  %v4543 = vmax.f32 %v4542, %v4204
  %v4544 = vmax.f32 %v4543, %v4211
  %v4545 = vmax.f32 %v4544, %v4218
  %v4546 = vmax.f32 %v4225, %v4232
  %v4547 = vmax.f32 %v4546, %v4239
  %v4548 = vmax.f32 %v4547, %v4246
  %v4549 = vmax.f32 %v4548, %v4253
  %v4550 = vmax.f32 %v4549, %v4260
  %v4551 = vmax.f32 %v4550, %v4267
  %v4552 = vmax.f32 %v4551, %v4274
  %v4553 = vmax.f32 %v4552, %v4281
  %v4554 = vmax.f32 %v4553, %v4288
  %v4555 = vmax.f32 %v4295, %v4302
  %v4556 = vmax.f32 %v4555, %v4309
  %v4557 = vmax.f32 %v4556, %v4316
  %v4558 = vmax.f32 %v4557, %v4323
  %v4559 = vmax.f32 %v4558, %v4330
  %v4560 = vmax.f32 %v4559, %v4337
  %v4561 = vmax.f32 %v4560, %v4344
  %v4562 = vmax.f32 %v4561, %v4351
  %v4563 = vmax.f32 %v4562, %v4358
  %v4564 = vmax.f32 %v4365, %v4372
  %v4565 = vmax.f32 %v4564, %v4379
  %v4566 = vmax.f32 %v4565, %v4386
  %v4567 = vmax.f32 %v4566, %v4393
  %v4568 = vmax.f32 %v4567, %v4400
  %v4569 = vmax.f32 %v4568, %v4407
  %v4570 = vmax.f32 %v4569, %v4414
  %v4571 = vmax.f32 %v4570, %v4421
  %v4572 = vmax.f32 %v4571, %v4428
  %v4573 = vsub.f32 %v3315, %v4437
  %v4574 = vsub.f32 %v3322, %v4437
  %v4575 = vsub.f32 %v3329, %v4437
  %v4576 = vsub.f32 %v3336, %v4437
  %v4577 = vsub.f32 %v3343, %v4437
  %v4578 = vsub.f32 %v3350, %v4437
  %v4579 = vsub.f32 %v3357, %v4437
  %v4580 = vsub.f32 %v3364, %v4437
  %v4581 = vsub.f32 %v3371, %v4437
  %v4582 = vsub.f32 %v3378, %v4437
  %v4583 = vsub.f32 %v3385, %v4446
  %v4584 = vsub.f32 %v3392, %v4446
  %v4585 = vsub.f32 %v3399, %v4446
  %v4586 = vsub.f32 %v3406, %v4446
  %v4587 = vsub.f32 %v3413, %v4446
  %v4588 = vsub.f32 %v3420, %v4446
  %v4589 = vsub.f32 %v3427, %v4446
  %v4590 = vsub.f32 %v3434, %v4446
  %v4591 = vsub.f32 %v3441, %v4446
  %v4592 = vsub.f32 %v3448, %v4446
  %v4593 = vsub.f32 %v3455, %v4455
  %v4594 = vsub.f32 %v3462, %v4455
  %v4595 = vsub.f32 %v3469, %v4455
  %v4596 = vsub.f32 %v3476, %v4455
  %v4597 = vsub.f32 %v3483, %v4455
  %v4598 = vsub.f32 %v3490, %v4455
  %v4599 = vsub.f32 %v3497, %v4455
  %v4600 = vsub.f32 %v3504, %v4455
  %v4601 = vsub.f32 %v3511, %v4455
  %v4602 = vsub.f32 %v3518, %v4455
  %v4603 = vsub.f32 %v3525, %v4464
  %v4604 = vsub.f32 %v3532, %v4464
  %v4605 = vsub.f32 %v3539, %v4464
  %v4606 = vsub.f32 %v3546, %v4464
  %v4607 = vsub.f32 %v3553, %v4464
  %v4608 = vsub.f32 %v3560, %v4464
  %v4609 = vsub.f32 %v3567, %v4464
  %v4610 = vsub.f32 %v3574, %v4464
  %v4611 = vsub.f32 %v3581, %v4464
  %v4612 = vsub.f32 %v3588, %v4464
  %v4613 = vsub.f32 %v3595, %v4473
  %v4614 = vsub.f32 %v3602, %v4473
  %v4615 = vsub.f32 %v3609, %v4473
  %v4616 = vsub.f32 %v3616, %v4473
  %v4617 = vsub.f32 %v3623, %v4473
  %v4618 = vsub.f32 %v3630, %v4473
  %v4619 = vsub.f32 %v3637, %v4473
  %v4620 = vsub.f32 %v3644, %v4473
  %v4621 = vsub.f32 %v3651, %v4473
  %v4622 = vsub.f32 %v3658, %v4473
  %v4623 = vsub.f32 %v3665, %v4482
  %v4624 = vsub.f32 %v3672, %v4482
  %v4625 = vsub.f32 %v3679, %v4482
  %v4626 = vsub.f32 %v3686, %v4482
  %v4627 = vsub.f32 %v3693, %v4482
  %v4628 = vsub.f32 %v3700, %v4482
  %v4629 = vsub.f32 %v3707, %v4482
  %v4630 = vsub.f32 %v3714, %v4482
  %v4631 = vsub.f32 %v3721, %v4482
  %v4632 = vsub.f32 %v3728, %v4482
  %v4633 = vsub.f32 %v3735, %v4491
  %v4634 = vsub.f32 %v3742, %v4491
  %v4635 = vsub.f32 %v3749, %v4491
  %v4636 = vsub.f32 %v3756, %v4491
  %v4637 = vsub.f32 %v3763, %v4491
  %v4638 = vsub.f32 %v3770, %v4491
  %v4639 = vsub.f32 %v3777, %v4491
  %v4640 = vsub.f32 %v3784, %v4491
  %v4641 = vsub.f32 %v3791, %v4491
  %v4642 = vsub.f32 %v3798, %v4491
  %v4643 = vsub.f32 %v3805, %v4500
  %v4644 = vsub.f32 %v3812, %v4500
  %v4645 = vsub.f32 %v3819, %v4500
  %v4646 = vsub.f32 %v3826, %v4500
  %v4647 = vsub.f32 %v3833, %v4500
  %v4648 = vsub.f32 %v3840, %v4500
  %v4649 = vsub.f32 %v3847, %v4500
  %v4650 = vsub.f32 %v3854, %v4500
  %v4651 = vsub.f32 %v3861, %v4500
  %v4652 = vsub.f32 %v3868, %v4500
  %v4653 = vsub.f32 %v3875, %v4509
  %v4654 = vsub.f32 %v3882, %v4509
  %v4655 = vsub.f32 %v3889, %v4509
  %v4656 = vsub.f32 %v3896, %v4509
  %v4657 = vsub.f32 %v3903, %v4509
  %v4658 = vsub.f32 %v3910, %v4509
  %v4659 = vsub.f32 %v3917, %v4509
  %v4660 = vsub.f32 %v3924, %v4509
  %v4661 = vsub.f32 %v3931, %v4509
  %v4662 = vsub.f32 %v3938, %v4509
  %v4663 = vsub.f32 %v3945, %v4518
  %v4664 = vsub.f32 %v3952, %v4518
  %v4665 = vsub.f32 %v3959, %v4518
  %v4666 = vsub.f32 %v3966, %v4518
  %v4667 = vsub.f32 %v3973, %v4518
  %v4668 = vsub.f32 %v3980, %v4518
  %v4669 = vsub.f32 %v3987, %v4518
  %v4670 = vsub.f32 %v3994, %v4518
  %v4671 = vsub.f32 %v4001, %v4518
  %v4672 = vsub.f32 %v4008, %v4518
  %v4673 = vsub.f32 %v4015, %v4527
  %v4674 = vsub.f32 %v4022, %v4527
  %v4675 = vsub.f32 %v4029, %v4527
  %v4676 = vsub.f32 %v4036, %v4527
  %v4677 = vsub.f32 %v4043, %v4527
  %v4678 = vsub.f32 %v4050, %v4527
  %v4679 = vsub.f32 %v4057, %v4527
  %v4680 = vsub.f32 %v4064, %v4527
  %v4681 = vsub.f32 %v4071, %v4527
  %v4682 = vsub.f32 %v4078, %v4527
  %v4683 = vsub.f32 %v4085, %v4536
  %v4684 = vsub.f32 %v4092, %v4536
  %v4685 = vsub.f32 %v4099, %v4536
  %v4686 = vsub.f32 %v4106, %v4536
  %v4687 = vsub.f32 %v4113, %v4536
  %v4688 = vsub.f32 %v4120, %v4536
  %v4689 = vsub.f32 %v4127, %v4536
  %v4690 = vsub.f32 %v4134, %v4536
  %v4691 = vsub.f32 %v4141, %v4536
  %v4692 = vsub.f32 %v4148, %v4536
  %v4693 = vsub.f32 %v4155, %v4545
  %v4694 = vsub.f32 %v4162, %v4545
  %v4695 = vsub.f32 %v4169, %v4545
  %v4696 = vsub.f32 %v4176, %v4545
  %v4697 = vsub.f32 %v4183, %v4545
  %v4698 = vsub.f32 %v4190, %v4545
  %v4699 = vsub.f32 %v4197, %v4545
  %v4700 = vsub.f32 %v4204, %v4545
  %v4701 = vsub.f32 %v4211, %v4545
  %v4702 = vsub.f32 %v4218, %v4545
  %v4703 = vsub.f32 %v4225, %v4554
  %v4704 = vsub.f32 %v4232, %v4554
  %v4705 = vsub.f32 %v4239, %v4554
  %v4706 = vsub.f32 %v4246, %v4554
  %v4707 = vsub.f32 %v4253, %v4554
  %v4708 = vsub.f32 %v4260, %v4554
  %v4709 = vsub.f32 %v4267, %v4554
  %v4710 = vsub.f32 %v4274, %v4554
  %v4711 = vsub.f32 %v4281, %v4554
  %v4712 = vsub.f32 %v4288, %v4554
  %v4713 = vsub.f32 %v4295, %v4563
  %v4714 = vsub.f32 %v4302, %v4563
  %v4715 = vsub.f32 %v4309, %v4563
  %v4716 = vsub.f32 %v4316, %v4563
  %v4717 = vsub.f32 %v4323, %v4563
  %v4718 = vsub.f32 %v4330, %v4563
  %v4719 = vsub.f32 %v4337, %v4563
  %v4720 = vsub.f32 %v4344, %v4563
  %v4721 = vsub.f32 %v4351, %v4563
  %v4722 = vsub.f32 %v4358, %v4563
  %v4723 = vsub.f32 %v4365, %v4572
  %v4724 = vsub.f32 %v4372, %v4572
  %v4725 = vsub.f32 %v4379, %v4572
  %v4726 = vsub.f32 %v4386, %v4572
  %v4727 = vsub.f32 %v4393, %v4572
  %v4728 = vsub.f32 %v4400, %v4572
  %v4729 = vsub.f32 %v4407, %v4572
  %v4730 = vsub.f32 %v4414, %v4572
  %v4731 = vsub.f32 %v4421, %v4572
  %v4732 = vsub.f32 %v4428, %v4572
  %v4733 = vmul.f32 %v4573, 1.442695
  %v4734 = vpow.pop %v4733
  %v4735 = vmul.f32 %v4574, 1.442695
  %v4736 = vpow.pop %v4735
  %v4737 = vmul.f32 %v4575, 1.442695
  %v4738 = vpow.pop %v4737
  %v4739 = vmul.f32 %v4576, 1.442695
  %v4740 = vpow.pop %v4739
  %v4741 = vmul.f32 %v4577, 1.442695
  %v4742 = vpow.pop %v4741
  %v4743 = vmul.f32 %v4578, 1.442695
  %v4744 = vpow.pop %v4743
  %v4745 = vmul.f32 %v4579, 1.442695
  %v4746 = vpow.pop %v4745
  %v4747 = vmul.f32 %v4580, 1.442695
  %v4748 = vpow.pop %v4747
  %v4749 = vmul.f32 %v4581, 1.442695
  %v4750 = vpow.pop %v4749
  %v4751 = vmul.f32 %v4582, 1.442695
  %v4752 = vpow.pop %v4751
  %v4753 = vmul.f32 %v4583, 1.442695
  %v4754 = vpow.pop %v4753
  %v4755 = vmul.f32 %v4584, 1.442695
  %v4756 = vpow.pop %v4755
  %v4757 = vmul.f32 %v4585, 1.442695
  %v4758 = vpow.pop %v4757
  %v4759 = vmul.f32 %v4586, 1.442695
  %v4760 = vpow.pop %v4759
  %v4761 = vmul.f32 %v4587, 1.442695
  %v4762 = vpow.pop %v4761
  %v4763 = vmul.f32 %v4588, 1.442695
  %v4764 = vpow.pop %v4763
  %v4765 = vmul.f32 %v4589, 1.442695
  %v4766 = vpow.pop %v4765
  %v4767 = vmul.f32 %v4590, 1.442695
  %v4768 = vpow.pop %v4767
  %v4769 = vmul.f32 %v4591, 1.442695
  %v4770 = vpow.pop %v4769
  %v4771 = vmul.f32 %v4592, 1.442695
  %v4772 = vpow.pop %v4771
  %v4773 = vmul.f32 %v4593, 1.442695
  %v4774 = vpow.pop %v4773
  %v4775 = vmul.f32 %v4594, 1.442695
  %v4776 = vpow.pop %v4775
  %v4777 = vmul.f32 %v4595, 1.442695
  %v4778 = vpow.pop %v4777
  %v4779 = vmul.f32 %v4596, 1.442695
  %v4780 = vpow.pop %v4779
  %v4781 = vmul.f32 %v4597, 1.442695
  %v4782 = vpow.pop %v4781
  %v4783 = vmul.f32 %v4598, 1.442695
  %v4784 = vpow.pop %v4783
  %v4785 = vmul.f32 %v4599, 1.442695
  %v4786 = vpow.pop %v4785
  %v4787 = vmul.f32 %v4600, 1.442695
  %v4788 = vpow.pop %v4787
  %v4789 = vmul.f32 %v4601, 1.442695
  %v4790 = vpow.pop %v4789
  %v4791 = vmul.f32 %v4602, 1.442695
  %v4792 = vpow.pop %v4791
  %v4793 = vmul.f32 %v4603, 1.442695
  %v4794 = vpow.pop %v4793
  %v4795 = vmul.f32 %v4604, 1.442695
  %v4796 = vpow.pop %v4795
  %v4797 = vmul.f32 %v4605, 1.442695
  %v4798 = vpow.pop %v4797
  %v4799 = vmul.f32 %v4606, 1.442695
  %v4800 = vpow.pop %v4799
  %v4801 = vmul.f32 %v4607, 1.442695
  %v4802 = vpow.pop %v4801
  %v4803 = vmul.f32 %v4608, 1.442695
  %v4804 = vpow.pop %v4803
  %v4805 = vmul.f32 %v4609, 1.442695
  %v4806 = vpow.pop %v4805
  %v4807 = vmul.f32 %v4610, 1.442695
  %v4808 = vpow.pop %v4807
  %v4809 = vmul.f32 %v4611, 1.442695
  %v4810 = vpow.pop %v4809
  %v4811 = vmul.f32 %v4612, 1.442695
  %v4812 = vpow.pop %v4811
  %v4813 = vmul.f32 %v4613, 1.442695
  %v4814 = vpow.pop %v4813
  %v4815 = vmul.f32 %v4614, 1.442695
  %v4816 = vpow.pop %v4815
  %v4817 = vmul.f32 %v4615, 1.442695
  %v4818 = vpow.pop %v4817
  %v4819 = vmul.f32 %v4616, 1.442695
  %v4820 = vpow.pop %v4819
  %v4821 = vmul.f32 %v4617, 1.442695
  %v4822 = vpow.pop %v4821
  %v4823 = vmul.f32 %v4618, 1.442695
  %v4824 = vpow.pop %v4823
  %v4825 = vmul.f32 %v4619, 1.442695
  %v4826 = vpow.pop %v4825
  %v4827 = vmul.f32 %v4620, 1.442695
  %v4828 = vpow.pop %v4827
  %v4829 = vmul.f32 %v4621, 1.442695
  %v4830 = vpow.pop %v4829
  %v4831 = vmul.f32 %v4622, 1.442695
  %v4832 = vpow.pop %v4831
  %v4833 = vmul.f32 %v4623, 1.442695
  %v4834 = vpow.pop %v4833
  %v4835 = vmul.f32 %v4624, 1.442695
  %v4836 = vpow.pop %v4835
  %v4837 = vmul.f32 %v4625, 1.442695
  %v4838 = vpow.pop %v4837
  %v4839 = vmul.f32 %v4626, 1.442695
  %v4840 = vpow.pop %v4839
  %v4841 = vmul.f32 %v4627, 1.442695
  %v4842 = vpow.pop %v4841
  %v4843 = vmul.f32 %v4628, 1.442695
  %v4844 = vpow.pop %v4843
  %v4845 = vmul.f32 %v4629, 1.442695
  %v4846 = vpow.pop %v4845
  %v4847 = vmul.f32 %v4630, 1.442695
  %v4848 = vpow.pop %v4847
  %v4849 = vmul.f32 %v4631, 1.442695
  %v4850 = vpow.pop %v4849
  %v4851 = vmul.f32 %v4632, 1.442695
  %v4852 = vpow.pop %v4851
  %v4853 = vmul.f32 %v4633, 1.442695
  %v4854 = vpow.pop %v4853
  %v4855 = vmul.f32 %v4634, 1.442695
  %v4856 = vpow.pop %v4855
  %v4857 = vmul.f32 %v4635, 1.442695
  %v4858 = vpow.pop %v4857
  %v4859 = vmul.f32 %v4636, 1.442695
  %v4860 = vpow.pop %v4859
  %v4861 = vmul.f32 %v4637, 1.442695
  %v4862 = vpow.pop %v4861
  %v4863 = vmul.f32 %v4638, 1.442695
  %v4864 = vpow.pop %v4863
  %v4865 = vmul.f32 %v4639, 1.442695
  %v4866 = vpow.pop %v4865
  %v4867 = vmul.f32 %v4640, 1.442695
  %v4868 = vpow.pop %v4867
  %v4869 = vmul.f32 %v4641, 1.442695
  %v4870 = vpow.pop %v4869
  %v4871 = vmul.f32 %v4642, 1.442695
  %v4872 = vpow.pop %v4871
  %v4873 = vmul.f32 %v4643, 1.442695
  %v4874 = vpow.pop %v4873
  %v4875 = vmul.f32 %v4644, 1.442695
  %v4876 = vpow.pop %v4875
  %v4877 = vmul.f32 %v4645, 1.442695
  %v4878 = vpow.pop %v4877
  %v4879 = vmul.f32 %v4646, 1.442695
  %v4880 = vpow.pop %v4879
  %v4881 = vmul.f32 %v4647, 1.442695
  %v4882 = vpow.pop %v4881
  %v4883 = vmul.f32 %v4648, 1.442695
  %v4884 = vpow.pop %v4883
  %v4885 = vmul.f32 %v4649, 1.442695
  %v4886 = vpow.pop %v4885
  %v4887 = vmul.f32 %v4650, 1.442695
  %v4888 = vpow.pop %v4887
  %v4889 = vmul.f32 %v4651, 1.442695
  %v4890 = vpow.pop %v4889
  %v4891 = vmul.f32 %v4652, 1.442695
  %v4892 = vpow.pop %v4891
  %v4893 = vmul.f32 %v4653, 1.442695
  %v4894 = vpow.pop %v4893
  %v4895 = vmul.f32 %v4654, 1.442695
  %v4896 = vpow.pop %v4895
  %v4897 = vmul.f32 %v4655, 1.442695
  %v4898 = vpow.pop %v4897
  %v4899 = vmul.f32 %v4656, 1.442695
  %v4900 = vpow.pop %v4899
  %v4901 = vmul.f32 %v4657, 1.442695
  %v4902 = vpow.pop %v4901
  %v4903 = vmul.f32 %v4658, 1.442695
  %v4904 = vpow.pop %v4903
  %v4905 = vmul.f32 %v4659, 1.442695
  %v4906 = vpow.pop %v4905
  %v4907 = vmul.f32 %v4660, 1.442695
  %v4908 = vpow.pop %v4907
  %v4909 = vmul.f32 %v4661, 1.442695
  %v4910 = vpow.pop %v4909
  %v4911 = vmul.f32 %v4662, 1.442695
  %v4912 = vpow.pop %v4911
  %v4913 = vmul.f32 %v4663, 1.442695
  %v4914 = vpow.pop %v4913
  %v4915 = vmul.f32 %v4664, 1.442695
  %v4916 = vpow.pop %v4915
  %v4917 = vmul.f32 %v4665, 1.442695
  %v4918 = vpow.pop %v4917
  %v4919 = vmul.f32 %v4666, 1.442695
  %v4920 = vpow.pop %v4919
  %v4921 = vmul.f32 %v4667, 1.442695
  %v4922 = vpow.pop %v4921
  %v4923 = vmul.f32 %v4668, 1.442695
  %v4924 = vpow.pop %v4923
  %v4925 = vmul.f32 %v4669, 1.442695
  %v4926 = vpow.pop %v4925
  %v4927 = vmul.f32 %v4670, 1.442695
  %v4928 = vpow.pop %v4927
  %v4929 = vmul.f32 %v4671, 1.442695
  %v4930 = vpow.pop %v4929
  %v4931 = vmul.f32 %v4672, 1.442695
  %v4932 = vpow.pop %v4931
  %v4933 = vmul.f32 %v4673, 1.442695
  %v4934 = vpow.pop %v4933
  %v4935 = vmul.f32 %v4674, 1.442695
  %v4936 = vpow.pop %v4935
  %v4937 = vmul.f32 %v4675, 1.442695
  %v4938 = vpow.pop %v4937
  %v4939 = vmul.f32 %v4676, 1.442695
  %v4940 = vpow.pop %v4939
  %v4941 = vmul.f32 %v4677, 1.442695
  %v4942 = vpow.pop %v4941
  %v4943 = vmul.f32 %v4678, 1.442695
  %v4944 = vpow.pop %v4943
  %v4945 = vmul.f32 %v4679, 1.442695
  %v4946 = vpow.pop %v4945
  %v4947 = vmul.f32 %v4680, 1.442695
  %v4948 = vpow.pop %v4947
  %v4949 = vmul.f32 %v4681, 1.442695
  %v4950 = vpow.pop %v4949
  %v4951 = vmul.f32 %v4682, 1.442695
  %v4952 = vpow.pop %v4951
  %v4953 = vmul.f32 %v4683, 1.442695
  %v4954 = vpow.pop %v4953
  %v4955 = vmul.f32 %v4684, 1.442695
  %v4956 = vpow.pop %v4955
  %v4957 = vmul.f32 %v4685, 1.442695
  %v4958 = vpow.pop %v4957
  %v4959 = vmul.f32 %v4686, 1.442695
  %v4960 = vpow.pop %v4959
  %v4961 = vmul.f32 %v4687, 1.442695
  %v4962 = vpow.pop %v4961
  %v4963 = vmul.f32 %v4688, 1.442695
  %v4964 = vpow.pop %v4963
  %v4965 = vmul.f32 %v4689, 1.442695
  %v4966 = vpow.pop %v4965
  %v4967 = vmul.f32 %v4690, 1.442695
  %v4968 = vpow.pop %v4967
  %v4969 = vmul.f32 %v4691, 1.442695
  %v4970 = vpow.pop %v4969
  %v4971 = vmul.f32 %v4692, 1.442695
  %v4972 = vpow.pop %v4971
  %v4973 = vmul.f32 %v4693, 1.442695
  %v4974 = vpow.pop %v4973
  %v4975 = vmul.f32 %v4694, 1.442695
  %v4976 = vpow.pop %v4975
  %v4977 = vmul.f32 %v4695, 1.442695
  %v4978 = vpow.pop %v4977
  %v4979 = vmul.f32 %v4696, 1.442695
  %v4980 = vpow.pop %v4979
  %v4981 = vmul.f32 %v4697, 1.442695
  %v4982 = vpow.pop %v4981
  %v4983 = vmul.f32 %v4698, 1.442695
  %v4984 = vpow.pop %v4983
  %v4985 = vmul.f32 %v4699, 1.442695
  %v4986 = vpow.pop %v4985
  %v4987 = vmul.f32 %v4700, 1.442695
  %v4988 = vpow.pop %v4987
  %v4989 = vmul.f32 %v4701, 1.442695
  %v4990 = vpow.pop %v4989
  %v4991 = vmul.f32 %v4702, 1.442695
  %v4992 = vpow.pop %v4991
  %v4993 = vmul.f32 %v4703, 1.442695
  %v4994 = vpow.pop %v4993
  %v4995 = vmul.f32 %v4704, 1.442695
  %v4996 = vpow.pop %v4995
  %v4997 = vmul.f32 %v4705, 1.442695
  %v4998 = vpow.pop %v4997
  %v4999 = vmul.f32 %v4706, 1.442695
  %v5000 = vpow.pop %v4999
  %v5001 = vmul.f32 %v4707, 1.442695
  %v5002 = vpow.pop %v5001
  %v5003 = vmul.f32 %v4708, 1.442695
  %v5004 = vpow.pop %v5003
  %v5005 = vmul.f32 %v4709, 1.442695
  %v5006 = vpow.pop %v5005
  %v5007 = vmul.f32 %v4710, 1.442695
  %v5008 = vpow.pop %v5007
  %v5009 = vmul.f32 %v4711, 1.442695
  %v5010 = vpow.pop %v5009
  %v5011 = vmul.f32 %v4712, 1.442695
  %v5012 = vpow.pop %v5011
  %v5013 = vmul.f32 %v4713, 1.442695
  %v5014 = vpow.pop %v5013
  %v5015 = vmul.f32 %v4714, 1.442695
  %v5016 = vpow.pop %v5015
  %v5017 = vmul.f32 %v4715, 1.442695
  %v5018 = vpow.pop %v5017
  %v5019 = vmul.f32 %v4716, 1.442695
  %v5020 = vpow.pop %v5019
  %v5021 = vmul.f32 %v4717, 1.442695
  %v5022 = vpow.pop %v5021
  %v5023 = vmul.f32 %v4718, 1.442695
  %v5024 = vpow.pop %v5023
  %v5025 = vmul.f32 %v4719, 1.442695
  %v5026 = vpow.pop %v5025
  %v5027 = vmul.f32 %v4720, 1.442695
  %v5028 = vpow.pop %v5027
  %v5029 = vmul.f32 %v4721, 1.442695
  %v5030 = vpow.pop %v5029
  %v5031 = vmul.f32 %v4722, 1.442695
  %v5032 = vpow.pop %v5031
  %v5033 = vmul.f32 %v4723, 1.442695
  %v5034 = vpow.pop %v5033
  %v5035 = vmul.f32 %v4724, 1.442695
  %v5036 = vpow.pop %v5035
  %v5037 = vmul.f32 %v4725, 1.442695
  %v5038 = vpow.pop %v5037
  %v5039 = vmul.f32 %v4726, 1.442695
  %v5040 = vpow.pop %v5039
  %v5041 = vmul.f32 %v4727, 1.442695
  %v5042 = vpow.pop %v5041
  %v5043 = vmul.f32 %v4728, 1.442695
  %v5044 = vpow.pop %v5043
  %v5045 = vmul.f32 %v4729, 1.442695
  %v5046 = vpow.pop %v5045
  %v5047 = vmul.f32 %v4730, 1.442695
  %v5048 = vpow.pop %v5047
  %v5049 = vmul.f32 %v4731, 1.442695
  %v5050 = vpow.pop %v5049
  %v5051 = vmul.f32 %v4732, 1.442695
  %v5052 = vpow.pop %v5051
  %v5053 = vadd.f32 %v4734, %v4736
  %v5054 = vadd.f32 %v5053, %v4738
  %v5055 = vadd.f32 %v5054, %v4740
  %v5056 = vadd.f32 %v5055, %v4742
  %v5057 = vadd.f32 %v5056, %v4744
  %v5058 = vadd.f32 %v5057, %v4746
  %v5059 = vadd.f32 %v5058, %v4748
  %v5060 = vadd.f32 %v5059, %v4750
  %v5061 = vadd.f32 %v5060, %v4752
  %v5062 = vadd.f32 %v4754, %v4756
  %v5063 = vadd.f32 %v5062, %v4758
  %v5064 = vadd.f32 %v5063, %v4760
  %v5065 = vadd.f32 %v5064, %v4762
  %v5066 = vadd.f32 %v5065, %v4764
  %v5067 = vadd.f32 %v5066, %v4766
  %v5068 = vadd.f32 %v5067, %v4768
  %v5069 = vadd.f32 %v5068, %v4770
  %v5070 = vadd.f32 %v5069, %v4772
  %v5071 = vadd.f32 %v4774, %v4776
  %v5072 = vadd.f32 %v5071, %v4778
  %v5073 = vadd.f32 %v5072, %v4780
  %v5074 = vadd.f32 %v5073, %v4782
  %v5075 = vadd.f32 %v5074, %v4784
  %v5076 = vadd.f32 %v5075, %v4786
  %v5077 = vadd.f32 %v5076, %v4788
  %v5078 = vadd.f32 %v5077, %v4790
  %v5079 = vadd.f32 %v5078, %v4792
  %v5080 = vadd.f32 %v4794, %v4796
  %v5081 = vadd.f32 %v5080, %v4798
  %v5082 = vadd.f32 %v5081, %v4800
  %v5083 = vadd.f32 %v5082, %v4802
  %v5084 = vadd.f32 %v5083, %v4804
  %v5085 = vadd.f32 %v5084, %v4806
  %v5086 = vadd.f32 %v5085, %v4808
  %v5087 = vadd.f32 %v5086, %v4810
  %v5088 = vadd.f32 %v5087, %v4812
  %v5089 = vadd.f32 %v4814, %v4816
  %v5090 = vadd.f32 %v5089, %v4818
  %v5091 = vadd.f32 %v5090, %v4820
  %v5092 = vadd.f32 %v5091, %v4822
  %v5093 = vadd.f32 %v5092, %v4824
  %v5094 = vadd.f32 %v5093, %v4826
  %v5095 = vadd.f32 %v5094, %v4828
  %v5096 = vadd.f32 %v5095, %v4830
  %v5097 = vadd.f32 %v5096, %v4832
  %v5098 = vadd.f32 %v4834, %v4836
  %v5099 = vadd.f32 %v5098, %v4838
  %v5100 = vadd.f32 %v5099, %v4840
  %v5101 = vadd.f32 %v5100, %v4842
  %v5102 = vadd.f32 %v5101, %v4844
  %v5103 = vadd.f32 %v5102, %v4846
  %v5104 = vadd.f32 %v5103, %v4848
  %v5105 = vadd.f32 %v5104, %v4850
  %v5106 = vadd.f32 %v5105, %v4852
  %v5107 = vadd.f32 %v4854, %v4856
  %v5108 = vadd.f32 %v5107, %v4858
  %v5109 = vadd.f32 %v5108, %v4860
  %v5110 = vadd.f32 %v5109, %v4862
  %v5111 = vadd.f32 %v5110, %v4864
  %v5112 = vadd.f32 %v5111, %v4866
  %v5113 = vadd.f32 %v5112, %v4868
  %v5114 = vadd.f32 %v5113, %v4870
  %v5115 = vadd.f32 %v5114, %v4872
  %v5116 = vadd.f32 %v4874, %v4876
  %v5117 = vadd.f32 %v5116, %v4878
  %v5118 = vadd.f32 %v5117, %v4880
  %v5119 = vadd.f32 %v5118, %v4882
  %v5120 = vadd.f32 %v5119, %v4884
  %v5121 = vadd.f32 %v5120, %v4886
  %v5122 = vadd.f32 %v5121, %v4888
  %v5123 = vadd.f32 %v5122, %v4890
  %v5124 = vadd.f32 %v5123, %v4892
  %v5125 = vadd.f32 %v4894, %v4896
  %v5126 = vadd.f32 %v5125, %v4898
  %v5127 = vadd.f32 %v5126, %v4900
  %v5128 = vadd.f32 %v5127, %v4902
  %v5129 = vadd.f32 %v5128, %v4904
  %v5130 = vadd.f32 %v5129, %v4906
  %v5131 = vadd.f32 %v5130, %v4908
  %v5132 = vadd.f32 %v5131, %v4910
  %v5133 = vadd.f32 %v5132, %v4912
  %v5134 = vadd.f32 %v4914, %v4916
  %v5135 = vadd.f32 %v5134, %v4918
  %v5136 = vadd.f32 %v5135, %v4920
  %v5137 = vadd.f32 %v5136, %v4922
  %v5138 = vadd.f32 %v5137, %v4924
  %v5139 = vadd.f32 %v5138, %v4926
  %v5140 = vadd.f32 %v5139, %v4928
  %v5141 = vadd.f32 %v5140, %v4930
  %v5142 = vadd.f32 %v5141, %v4932
  %v5143 = vadd.f32 %v4934, %v4936
  %v5144 = vadd.f32 %v5143, %v4938
  %v5145 = vadd.f32 %v5144, %v4940
  %v5146 = vadd.f32 %v5145, %v4942
  %v5147 = vadd.f32 %v5146, %v4944
  %v5148 = vadd.f32 %v5147, %v4946
  %v5149 = vadd.f32 %v5148, %v4948
  %v5150 = vadd.f32 %v5149, %v4950
  %v5151 = vadd.f32 %v5150, %v4952
  %v5152 = vadd.f32 %v4954, %v4956
  %v5153 = vadd.f32 %v5152, %v4958
  %v5154 = vadd.f32 %v5153, %v4960
  %v5155 = vadd.f32 %v5154, %v4962
  %v5156 = vadd.f32 %v5155, %v4964
  %v5157 = vadd.f32 %v5156, %v4966
  %v5158 = vadd.f32 %v5157, %v4968
  %v5159 = vadd.f32 %v5158, %v4970
  %v5160 = vadd.f32 %v5159, %v4972
  %v5161 = vadd.f32 %v4974, %v4976
  %v5162 = vadd.f32 %v5161, %v4978
  %v5163 = vadd.f32 %v5162, %v4980
  %v5164 = vadd.f32 %v5163, %v4982
  %v5165 = vadd.f32 %v5164, %v4984
  %v5166 = vadd.f32 %v5165, %v4986
  %v5167 = vadd.f32 %v5166, %v4988
  %v5168 = vadd.f32 %v5167, %v4990
  %v5169 = vadd.f32 %v5168, %v4992
  %v5170 = vadd.f32 %v4994, %v4996
  %v5171 = vadd.f32 %v5170, %v4998
  %v5172 = vadd.f32 %v5171, %v5000
  %v5173 = vadd.f32 %v5172, %v5002
  %v5174 = vadd.f32 %v5173, %v5004
  %v5175 = vadd.f32 %v5174, %v5006
  %v5176 = vadd.f32 %v5175, %v5008
  %v5177 = vadd.f32 %v5176, %v5010
  %v5178 = vadd.f32 %v5177, %v5012
  %v5179 = vadd.f32 %v5014, %v5016
  %v5180 = vadd.f32 %v5179, %v5018
  %v5181 = vadd.f32 %v5180, %v5020
  %v5182 = vadd.f32 %v5181, %v5022
  %v5183 = vadd.f32 %v5182, %v5024
  %v5184 = vadd.f32 %v5183, %v5026
  %v5185 = vadd.f32 %v5184, %v5028
  %v5186 = vadd.f32 %v5185, %v5030
  %v5187 = vadd.f32 %v5186, %v5032
  %v5188 = vadd.f32 %v5034, %v5036
  %v5189 = vadd.f32 %v5188, %v5038
  %v5190 = vadd.f32 %v5189, %v5040
  %v5191 = vadd.f32 %v5190, %v5042
  %v5192 = vadd.f32 %v5191, %v5044
  %v5193 = vadd.f32 %v5192, %v5046
  %v5194 = vadd.f32 %v5193, %v5048
  %v5195 = vadd.f32 %v5194, %v5050
  %v5196 = vadd.f32 %v5195, %v5052
  %v5197 = vrcp.pop %v5061
  %v5198 = vrcp.pop %v5070
  %v5199 = vrcp.pop %v5079
  %v5200 = vrcp.pop %v5088
  %v5201 = vrcp.pop %v5097
  %v5202 = vrcp.pop %v5106
  %v5203 = vrcp.pop %v5115
  %v5204 = vrcp.pop %v5124
  %v5205 = vrcp.pop %v5133
  %v5206 = vrcp.pop %v5142
  %v5207 = vrcp.pop %v5151
  %v5208 = vrcp.pop %v5160
  %v5209 = vrcp.pop %v5169
  %v5210 = vrcp.pop %v5178
  %v5211 = vrcp.pop %v5187
  %v5212 = vrcp.pop %v5196
  %v5213 = vmul.f32 %v4734, %v5197
  %v5214 = vmul.f32 %v4736, %v5197
  %v5215 = vmul.f32 %v4738, %v5197
  %v5216 = vmul.f32 %v4740, %v5197
  %v5217 = vmul.f32 %v4742, %v5197
  %v5218 = vmul.f32 %v4744, %v5197
  %v5219 = vmul.f32 %v4746, %v5197
  %v5220 = vmul.f32 %v4748, %v5197
  %v5221 = vmul.f32 %v4750, %v5197
  %v5222 = vmul.f32 %v4752, %v5197
  %v5223 = vmul.f32 %v4754, %v5198
  %v5224 = vmul.f32 %v4756, %v5198
  %v5225 = vmul.f32 %v4758, %v5198
  %v5226 = vmul.f32 %v4760, %v5198
  %v5227 = vmul.f32 %v4762, %v5198
  %v5228 = vmul.f32 %v4764, %v5198
  %v5229 = vmul.f32 %v4766, %v5198
  %v5230 = vmul.f32 %v4768, %v5198
  %v5231 = vmul.f32 %v4770, %v5198
  %v5232 = vmul.f32 %v4772, %v5198
  %v5233 = vmul.f32 %v4774, %v5199
  %v5234 = vmul.f32 %v4776, %v5199
  %v5235 = vmul.f32 %v4778, %v5199
  %v5236 = vmul.f32 %v4780, %v5199
  %v5237 = vmul.f32 %v4782, %v5199
  %v5238 = vmul.f32 %v4784, %v5199
  %v5239 = vmul.f32 %v4786, %v5199
  %v5240 = vmul.f32 %v4788, %v5199
  %v5241 = vmul.f32 %v4790, %v5199
  %v5242 = vmul.f32 %v4792, %v5199
  %v5243 = vmul.f32 %v4794, %v5200
  %v5244 = vmul.f32 %v4796, %v5200
  %v5245 = vmul.f32 %v4798, %v5200
  %v5246 = vmul.f32 %v4800, %v5200
  %v5247 = vmul.f32 %v4802, %v5200
  %v5248 = vmul.f32 %v4804, %v5200
  %v5249 = vmul.f32 %v4806, %v5200
  %v5250 = vmul.f32 %v4808, %v5200
  %v5251 = vmul.f32 %v4810, %v5200
  %v5252 = vmul.f32 %v4812, %v5200
  %v5253 = vmul.f32 %v4814, %v5201
  %v5254 = vmul.f32 %v4816, %v5201
  %v5255 = vmul.f32 %v4818, %v5201
  %v5256 = vmul.f32 %v4820, %v5201
  %v5257 = vmul.f32 %v4822, %v5201
  %v5258 = vmul.f32 %v4824, %v5201
  %v5259 = vmul.f32 %v4826, %v5201
  %v5260 = vmul.f32 %v4828, %v5201
  %v5261 = vmul.f32 %v4830, %v5201
  %v5262 = vmul.f32 %v4832, %v5201
  %v5263 = vmul.f32 %v4834, %v5202
  %v5264 = vmul.f32 %v4836, %v5202
  %v5265 = vmul.f32 %v4838, %v5202
  %v5266 = vmul.f32 %v4840, %v5202
  %v5267 = vmul.f32 %v4842, %v5202
  %v5268 = vmul.f32 %v4844, %v5202
  %v5269 = vmul.f32 %v4846, %v5202
  %v5270 = vmul.f32 %v4848, %v5202
  %v5271 = vmul.f32 %v4850, %v5202
  %v5272 = vmul.f32 %v4852, %v5202
  %v5273 = vmul.f32 %v4854, %v5203
  %v5274 = vmul.f32 %v4856, %v5203
  %v5275 = vmul.f32 %v4858, %v5203
  %v5276 = vmul.f32 %v4860, %v5203
  %v5277 = vmul.f32 %v4862, %v5203
  %v5278 = vmul.f32 %v4864, %v5203
  %v5279 = vmul.f32 %v4866, %v5203
  %v5280 = vmul.f32 %v4868, %v5203
  %v5281 = vmul.f32 %v4870, %v5203
  %v5282 = vmul.f32 %v4872, %v5203
  %v5283 = vmul.f32 %v4874, %v5204
  %v5284 = vmul.f32 %v4876, %v5204
  %v5285 = vmul.f32 %v4878, %v5204
  %v5286 = vmul.f32 %v4880, %v5204
  %v5287 = vmul.f32 %v4882, %v5204
  %v5288 = vmul.f32 %v4884, %v5204
  %v5289 = vmul.f32 %v4886, %v5204
  %v5290 = vmul.f32 %v4888, %v5204
  %v5291 = vmul.f32 %v4890, %v5204
  %v5292 = vmul.f32 %v4892, %v5204
  %v5293 = vmul.f32 %v4894, %v5205
  %v5294 = vmul.f32 %v4896, %v5205
  %v5295 = vmul.f32 %v4898, %v5205
  %v5296 = vmul.f32 %v4900, %v5205
  %v5297 = vmul.f32 %v4902, %v5205
  %v5298 = vmul.f32 %v4904, %v5205
  %v5299 = vmul.f32 %v4906, %v5205
  %v5300 = vmul.f32 %v4908, %v5205
  %v5301 = vmul.f32 %v4910, %v5205
  %v5302 = vmul.f32 %v4912, %v5205
  %v5303 = vmul.f32 %v4914, %v5206
  %v5304 = vmul.f32 %v4916, %v5206
  %v5305 = vmul.f32 %v4918, %v5206
  %v5306 = vmul.f32 %v4920, %v5206
  %v5307 = vmul.f32 %v4922, %v5206
  %v5308 = vmul.f32 %v4924, %v5206
  %v5309 = vmul.f32 %v4926, %v5206
  %v5310 = vmul.f32 %v4928, %v5206
  %v5311 = vmul.f32 %v4930, %v5206
  %v5312 = vmul.f32 %v4932, %v5206
  %v5313 = vmul.f32 %v4934, %v5207
  %v5314 = vmul.f32 %v4936, %v5207
  %v5315 = vmul.f32 %v4938, %v5207
  %v5316 = vmul.f32 %v4940, %v5207
  %v5317 = vmul.f32 %v4942, %v5207
  %v5318 = vmul.f32 %v4944, %v5207
  %v5319 = vmul.f32 %v4946, %v5207
  %v5320 = vmul.f32 %v4948, %v5207
  %v5321 = vmul.f32 %v4950, %v5207
  %v5322 = vmul.f32 %v4952, %v5207
  %v5323 = vmul.f32 %v4954, %v5208
  %v5324 = vmul.f32 %v4956, %v5208
  %v5325 = vmul.f32 %v4958, %v5208
  %v5326 = vmul.f32 %v4960, %v5208
  %v5327 = vmul.f32 %v4962, %v5208
  %v5328 = vmul.f32 %v4964, %v5208
  %v5329 = vmul.f32 %v4966, %v5208
  %v5330 = vmul.f32 %v4968, %v5208
  %v5331 = vmul.f32 %v4970, %v5208
  %v5332 = vmul.f32 %v4972, %v5208
  %v5333 = vmul.f32 %v4974, %v5209
  %v5334 = vmul.f32 %v4976, %v5209
  %v5335 = vmul.f32 %v4978, %v5209
  %v5336 = vmul.f32 %v4980, %v5209
  %v5337 = vmul.f32 %v4982, %v5209
  %v5338 = vmul.f32 %v4984, %v5209
  %v5339 = vmul.f32 %v4986, %v5209
  %v5340 = vmul.f32 %v4988, %v5209
  %v5341 = vmul.f32 %v4990, %v5209
  %v5342 = vmul.f32 %v4992, %v5209
  %v5343 = vmul.f32 %v4994, %v5210
  %v5344 = vmul.f32 %v4996, %v5210
  %v5345 = vmul.f32 %v4998, %v5210
  %v5346 = vmul.f32 %v5000, %v5210
  %v5347 = vmul.f32 %v5002, %v5210
  %v5348 = vmul.f32 %v5004, %v5210
  %v5349 = vmul.f32 %v5006, %v5210
  %v5350 = vmul.f32 %v5008, %v5210
  %v5351 = vmul.f32 %v5010, %v5210
  %v5352 = vmul.f32 %v5012, %v5210
  %v5353 = vmul.f32 %v5014, %v5211
  %v5354 = vmul.f32 %v5016, %v5211
  %v5355 = vmul.f32 %v5018, %v5211
  %v5356 = vmul.f32 %v5020, %v5211
  %v5357 = vmul.f32 %v5022, %v5211
  %v5358 = vmul.f32 %v5024, %v5211
  %v5359 = vmul.f32 %v5026, %v5211
  %v5360 = vmul.f32 %v5028, %v5211
  %v5361 = vmul.f32 %v5030, %v5211
  %v5362 = vmul.f32 %v5032, %v5211
  %v5363 = vmul.f32 %v5034, %v5212
  %v5364 = vmul.f32 %v5036, %v5212
  %v5365 = vmul.f32 %v5038, %v5212
  %v5366 = vmul.f32 %v5040, %v5212
  %v5367 = vmul.f32 %v5042, %v5212
  %v5368 = vmul.f32 %v5044, %v5212
  %v5369 = vmul.f32 %v5046, %v5212
  %v5370 = vmul.f32 %v5048, %v5212
  %v5371 = vmul.f32 %v5050, %v5212
  %v5372 = vmul.f32 %v5052, %v5212
  %v5373 = vmul.f32 %v1551, %v5213
  %v5374 = vmul.f32 %v1554, %v5213
  %v5375 = vmul.f32 %v1559, %v5214
  %v5376 = vmul.f32 %v1562, %v5214
  %v5377 = vmul.f32 %v1567, %v5215
  %v5378 = vmul.f32 %v1570, %v5215
  %v5379 = vmul.f32 %v1575, %v5216
  %v5380 = vmul.f32 %v1578, %v5216
  %v5381 = vmul.f32 %v1583, %v5217
  %v5382 = vmul.f32 %v1586, %v5217
  %v5383 = vmul.f32 %v1591, %v5218
  %v5384 = vmul.f32 %v1594, %v5218
  %v5385 = vmul.f32 %v1599, %v5219
  %v5386 = vmul.f32 %v1602, %v5219
  %v5387 = vmul.f32 %v1607, %v5220
  %v5388 = vmul.f32 %v1610, %v5220
  %v5389 = vmul.f32 %v1615, %v5221
  %v5390 = vmul.f32 %v1618, %v5221
  %v5391 = vmul.f32 %v1623, %v5222
  %v5392 = vmul.f32 %v1626, %v5222
  %v5393 = vmul.f32 %v1631, %v5223
  %v5394 = vmul.f32 %v1634, %v5223
  %v5395 = vmul.f32 %v1639, %v5224
  %v5396 = vmul.f32 %v1642, %v5224
  %v5397 = vmul.f32 %v1647, %v5225
  %v5398 = vmul.f32 %v1650, %v5225
  %v5399 = vmul.f32 %v1655, %v5226
  %v5400 = vmul.f32 %v1658, %v5226
  %v5401 = vmul.f32 %v1663, %v5227
  %v5402 = vmul.f32 %v1666, %v5227
  %v5403 = vmul.f32 %v1671, %v5228
  %v5404 = vmul.f32 %v1674, %v5228
  %v5405 = vmul.f32 %v1679, %v5229
  %v5406 = vmul.f32 %v1682, %v5229
  %v5407 = vmul.f32 %v1687, %v5230
  %v5408 = vmul.f32 %v1690, %v5230
  %v5409 = vmul.f32 %v1695, %v5231
  %v5410 = vmul.f32 %v1698, %v5231
  %v5411 = vmul.f32 %v1703, %v5232
  %v5412 = vmul.f32 %v1706, %v5232
  %v5413 = vmul.f32 %v1711, %v5233
  %v5414 = vmul.f32 %v1714, %v5233
  %v5415 = vmul.f32 %v1719, %v5234
  %v5416 = vmul.f32 %v1722, %v5234
  %v5417 = vmul.f32 %v1727, %v5235
  %v5418 = vmul.f32 %v1730, %v5235
  %v5419 = vmul.f32 %v1735, %v5236
  %v5420 = vmul.f32 %v1738, %v5236
  %v5421 = vmul.f32 %v1743, %v5237
  %v5422 = vmul.f32 %v1746, %v5237
  %v5423 = vmul.f32 %v1751, %v5238
  %v5424 = vmul.f32 %v1754, %v5238
  %v5425 = vmul.f32 %v1759, %v5239
  %v5426 = vmul.f32 %v1762, %v5239
  %v5427 = vmul.f32 %v1767, %v5240
  %v5428 = vmul.f32 %v1770, %v5240
  %v5429 = vmul.f32 %v1775, %v5241
  %v5430 = vmul.f32 %v1778, %v5241
  %v5431 = vmul.f32 %v1783, %v5242
  %v5432 = vmul.f32 %v1786, %v5242
  %v5433 = vmul.f32 %v1791, %v5243
  %v5434 = vmul.f32 %v1794, %v5243
  %v5435 = vmul.f32 %v1799, %v5244
  %v5436 = vmul.f32 %v1802, %v5244
  %v5437 = vmul.f32 %v1807, %v5245
  %v5438 = vmul.f32 %v1810, %v5245
  %v5439 = vmul.f32 %v1815, %v5246
  %v5440 = vmul.f32 %v1818, %v5246
  %v5441 = vmul.f32 %v1823, %v5247
  %v5442 = vmul.f32 %v1826, %v5247
  %v5443 = vmul.f32 %v1831, %v5248
  %v5444 = vmul.f32 %v1834, %v5248
  %v5445 = vmul.f32 %v1839, %v5249
  %v5446 = vmul.f32 %v1842, %v5249
  %v5447 = vmul.f32 %v1847, %v5250
  %v5448 = vmul.f32 %v1850, %v5250
  %v5449 = vmul.f32 %v1855, %v5251
  %v5450 = vmul.f32 %v1858, %v5251
  %v5451 = vmul.f32 %v1863, %v5252
  %v5452 = vmul.f32 %v1866, %v5252
  %v5453 = vmul.f32 %v1871, %v5253
  %v5454 = vmul.f32 %v1874, %v5253
  %v5455 = vmul.f32 %v1879, %v5254
  %v5456 = vmul.f32 %v1882, %v5254
  %v5457 = vmul.f32 %v1887, %v5255
  %v5458 = vmul.f32 %v1890, %v5255
  %v5459 = vmul.f32 %v1895, %v5256
  %v5460 = vmul.f32 %v1898, %v5256
  %v5461 = vmul.f32 %v1903, %v5257
  %v5462 = vmul.f32 %v1906, %v5257
  %v5463 = vmul.f32 %v1911, %v5258
  %v5464 = vmul.f32 %v1914, %v5258
  %v5465 = vmul.f32 %v1919, %v5259
  %v5466 = vmul.f32 %v1922, %v5259
  %v5467 = vmul.f32 %v1927, %v5260
  %v5468 = vmul.f32 %v1930, %v5260
  %v5469 = vmul.f32 %v1935, %v5261
  %v5470 = vmul.f32 %v1938, %v5261
  %v5471 = vmul.f32 %v1943, %v5262
  %v5472 = vmul.f32 %v1946, %v5262
  %v5473 = vmul.f32 %v1951, %v5263
  %v5474 = vmul.f32 %v1954, %v5263
  %v5475 = vmul.f32 %v1959, %v5264
  %v5476 = vmul.f32 %v1962, %v5264
  %v5477 = vmul.f32 %v1967, %v5265
  %v5478 = vmul.f32 %v1970, %v5265
  %v5479 = vmul.f32 %v1975, %v5266
  %v5480 = vmul.f32 %v1978, %v5266
  %v5481 = vmul.f32 %v1983, %v5267
  %v5482 = vmul.f32 %v1986, %v5267
  %v5483 = vmul.f32 %v1991, %v5268
  %v5484 = vmul.f32 %v1994, %v5268
  %v5485 = vmul.f32 %v1999, %v5269
  %v5486 = vmul.f32 %v2002, %v5269
  %v5487 = vmul.f32 %v2007, %v5270
  %v5488 = vmul.f32 %v2010, %v5270
  %v5489 = vmul.f32 %v2015, %v5271
  %v5490 = vmul.f32 %v2018, %v5271
  %v5491 = vmul.f32 %v2023, %v5272
  %v5492 = vmul.f32 %v2026, %v5272
  %v5493 = vmul.f32 %v2031, %v5273
  %v5494 = vmul.f32 %v2034, %v5273
  %v5495 = vmul.f32 %v2039, %v5274
  %v5496 = vmul.f32 %v2042, %v5274
  %v5497 = vmul.f32 %v2047, %v5275
  %v5498 = vmul.f32 %v2050, %v5275
  %v5499 = vmul.f32 %v2055, %v5276
  %v5500 = vmul.f32 %v2058, %v5276
  %v5501 = vmul.f32 %v2063, %v5277
  %v5502 = vmul.f32 %v2066, %v5277
  %v5503 = vmul.f32 %v2071, %v5278
  %v5504 = vmul.f32 %v2074, %v5278
  %v5505 = vmul.f32 %v2079, %v5279
  %v5506 = vmul.f32 %v2082, %v5279
  %v5507 = vmul.f32 %v2087, %v5280
  %v5508 = vmul.f32 %v2090, %v5280
  %v5509 = vmul.f32 %v2095, %v5281
  %v5510 = vmul.f32 %v2098, %v5281
  %v5511 = vmul.f32 %v2103, %v5282
  %v5512 = vmul.f32 %v2106, %v5282
  %v5513 = vmul.f32 %v2111, %v5283
  %v5514 = vmul.f32 %v2114, %v5283
  %v5515 = vmul.f32 %v2119, %v5284
  %v5516 = vmul.f32 %v2122, %v5284
  %v5517 = vmul.f32 %v2127, %v5285
  %v5518 = vmul.f32 %v2130, %v5285
  %v5519 = vmul.f32 %v2135, %v5286
  %v5520 = vmul.f32 %v2138, %v5286
  %v5521 = vmul.f32 %v2143, %v5287
  %v5522 = vmul.f32 %v2146, %v5287
  %v5523 = vmul.f32 %v2151, %v5288
  %v5524 = vmul.f32 %v2154, %v5288
  %v5525 = vmul.f32 %v2159, %v5289
  %v5526 = vmul.f32 %v2162, %v5289
  %v5527 = vmul.f32 %v2167, %v5290
  %v5528 = vmul.f32 %v2170, %v5290
  %v5529 = vmul.f32 %v2175, %v5291
  %v5530 = vmul.f32 %v2178, %v5291
  %v5531 = vmul.f32 %v2183, %v5292
  %v5532 = vmul.f32 %v2186, %v5292
  %v5533 = vmul.f32 %v2191, %v5293
  %v5534 = vmul.f32 %v2194, %v5293
  %v5535 = vmul.f32 %v2199, %v5294
  %v5536 = vmul.f32 %v2202, %v5294
  %v5537 = vmul.f32 %v2207, %v5295
  %v5538 = vmul.f32 %v2210, %v5295
  %v5539 = vmul.f32 %v2215, %v5296
  %v5540 = vmul.f32 %v2218, %v5296
  %v5541 = vmul.f32 %v2223, %v5297
  %v5542 = vmul.f32 %v2226, %v5297
  %v5543 = vmul.f32 %v2231, %v5298
  %v5544 = vmul.f32 %v2234, %v5298
  %v5545 = vmul.f32 %v2239, %v5299
  %v5546 = vmul.f32 %v2242, %v5299
  %v5547 = vmul.f32 %v2247, %v5300
  %v5548 = vmul.f32 %v2250, %v5300
  %v5549 = vmul.f32 %v2255, %v5301
  %v5550 = vmul.f32 %v2258, %v5301
  %v5551 = vmul.f32 %v2263, %v5302
  %v5552 = vmul.f32 %v2266, %v5302
  %v5553 = vmul.f32 %v2271, %v5303
  %v5554 = vmul.f32 %v2274, %v5303
  %v5555 = vmul.f32 %v2279, %v5304
  %v5556 = vmul.f32 %v2282, %v5304
  %v5557 = vmul.f32 %v2287, %v5305
  %v5558 = vmul.f32 %v2290, %v5305
  %v5559 = vmul.f32 %v2295, %v5306
  %v5560 = vmul.f32 %v2298, %v5306
  %v5561 = vmul.f32 %v2303, %v5307
  %v5562 = vmul.f32 %v2306, %v5307
  %v5563 = vmul.f32 %v2311, %v5308
  %v5564 = vmul.f32 %v2314, %v5308
  %v5565 = vmul.f32 %v2319, %v5309
  %v5566 = vmul.f32 %v2322, %v5309
  %v5567 = vmul.f32 %v2327, %v5310
  %v5568 = vmul.f32 %v2330, %v5310
  %v5569 = vmul.f32 %v2335, %v5311
  %v5570 = vmul.f32 %v2338, %v5311
  %v5571 = vmul.f32 %v2343, %v5312
  %v5572 = vmul.f32 %v2346, %v5312
  %v5573 = vmul.f32 %v2351, %v5313
  %v5574 = vmul.f32 %v2354, %v5313
  %v5575 = vmul.f32 %v2359, %v5314
  %v5576 = vmul.f32 %v2362, %v5314
  %v5577 = vmul.f32 %v2367, %v5315
  %v5578 = vmul.f32 %v2370, %v5315
  %v5579 = vmul.f32 %v2375, %v5316
  %v5580 = vmul.f32 %v2378, %v5316
  %v5581 = vmul.f32 %v2383, %v5317
  %v5582 = vmul.f32 %v2386, %v5317
  %v5583 = vmul.f32 %v2391, %v5318
  %v5584 = vmul.f32 %v2394, %v5318
  %v5585 = vmul.f32 %v2399, %v5319
  %v5586 = vmul.f32 %v2402, %v5319
  %v5587 = vmul.f32 %v2407, %v5320
  %v5588 = vmul.f32 %v2410, %v5320
  %v5589 = vmul.f32 %v2415, %v5321
  %v5590 = vmul.f32 %v2418, %v5321
  %v5591 = vmul.f32 %v2423, %v5322
  %v5592 = vmul.f32 %v2426, %v5322
  %v5593 = vmul.f32 %v2431, %v5323
  %v5594 = vmul.f32 %v2434, %v5323
  %v5595 = vmul.f32 %v2439, %v5324
  %v5596 = vmul.f32 %v2442, %v5324
  %v5597 = vmul.f32 %v2447, %v5325
  %v5598 = vmul.f32 %v2450, %v5325
  %v5599 = vmul.f32 %v2455, %v5326
  %v5600 = vmul.f32 %v2458, %v5326
  %v5601 = vmul.f32 %v2463, %v5327
  %v5602 = vmul.f32 %v2466, %v5327
  %v5603 = vmul.f32 %v2471, %v5328
  %v5604 = vmul.f32 %v2474, %v5328
  %v5605 = vmul.f32 %v2479, %v5329
  %v5606 = vmul.f32 %v2482, %v5329
  %v5607 = vmul.f32 %v2487, %v5330
  %v5608 = vmul.f32 %v2490, %v5330
  %v5609 = vmul.f32 %v2495, %v5331
  %v5610 = vmul.f32 %v2498, %v5331
  %v5611 = vmul.f32 %v2503, %v5332
  %v5612 = vmul.f32 %v2506, %v5332
  %v5613 = vmul.f32 %v2511, %v5333
  %v5614 = vmul.f32 %v2514, %v5333
  %v5615 = vmul.f32 %v2519, %v5334
  %v5616 = vmul.f32 %v2522, %v5334
  %v5617 = vmul.f32 %v2527, %v5335
  %v5618 = vmul.f32 %v2530, %v5335
  %v5619 = vmul.f32 %v2535, %v5336
  %v5620 = vmul.f32 %v2538, %v5336
  %v5621 = vmul.f32 %v2543, %v5337
  %v5622 = vmul.f32 %v2546, %v5337
  %v5623 = vmul.f32 %v2551, %v5338
  %v5624 = vmul.f32 %v2554, %v5338
  %v5625 = vmul.f32 %v2559, %v5339
  %v5626 = vmul.f32 %v2562, %v5339
  %v5627 = vmul.f32 %v2567, %v5340
  %v5628 = vmul.f32 %v2570, %v5340
  %v5629 = vmul.f32 %v2575, %v5341
  %v5630 = vmul.f32 %v2578, %v5341
  %v5631 = vmul.f32 %v2583, %v5342
  %v5632 = vmul.f32 %v2586, %v5342
  %v5633 = vmul.f32 %v2591, %v5343
  %v5634 = vmul.f32 %v2594, %v5343
  %v5635 = vmul.f32 %v2599, %v5344
  %v5636 = vmul.f32 %v2602, %v5344
  %v5637 = vmul.f32 %v2607, %v5345
  %v5638 = vmul.f32 %v2610, %v5345
  %v5639 = vmul.f32 %v2615, %v5346
  %v5640 = vmul.f32 %v2618, %v5346
  %v5641 = vmul.f32 %v2623, %v5347
  %v5642 = vmul.f32 %v2626, %v5347
  %v5643 = vmul.f32 %v2631, %v5348
  %v5644 = vmul.f32 %v2634, %v5348
  %v5645 = vmul.f32 %v2639, %v5349
  %v5646 = vmul.f32 %v2642, %v5349
  %v5647 = vmul.f32 %v2647, %v5350
  %v5648 = vmul.f32 %v2650, %v5350
  %v5649 = vmul.f32 %v2655, %v5351
  %v5650 = vmul.f32 %v2658, %v5351
  %v5651 = vmul.f32 %v2663, %v5352
  %v5652 = vmul.f32 %v2666, %v5352
  %v5653 = vmul.f32 %v2671, %v5353
  %v5654 = vmul.f32 %v2674, %v5353
  %v5655 = vmul.f32 %v2679, %v5354
  %v5656 = vmul.f32 %v2682, %v5354
  %v5657 = vmul.f32 %v2687, %v5355
  %v5658 = vmul.f32 %v2690, %v5355
  %v5659 = vmul.f32 %v2695, %v5356
  %v5660 = vmul.f32 %v2698, %v5356
  %v5661 = vmul.f32 %v2703, %v5357
  %v5662 = vmul.f32 %v2706, %v5357
  %v5663 = vmul.f32 %v2711, %v5358
  %v5664 = vmul.f32 %v2714, %v5358
  %v5665 = vmul.f32 %v2719, %v5359
  %v5666 = vmul.f32 %v2722, %v5359
  %v5667 = vmul.f32 %v2727, %v5360
  %v5668 = vmul.f32 %v2730, %v5360
  %v5669 = vmul.f32 %v2735, %v5361
  %v5670 = vmul.f32 %v2738, %v5361
  %v5671 = vmul.f32 %v2743, %v5362
  %v5672 = vmul.f32 %v2746, %v5362
  %v5673 = vmul.f32 %v2751, %v5363
  %v5674 = vmul.f32 %v2754, %v5363
  %v5675 = vmul.f32 %v2759, %v5364
  %v5676 = vmul.f32 %v2762, %v5364
  %v5677 = vmul.f32 %v2767, %v5365
  %v5678 = vmul.f32 %v2770, %v5365
  %v5679 = vmul.f32 %v2775, %v5366
  %v5680 = vmul.f32 %v2778, %v5366
  %v5681 = vmul.f32 %v2783, %v5367
  %v5682 = vmul.f32 %v2786, %v5367
  %v5683 = vmul.f32 %v2791, %v5368
  %v5684 = vmul.f32 %v2794, %v5368
  %v5685 = vmul.f32 %v2799, %v5369
  %v5686 = vmul.f32 %v2802, %v5369
  %v5687 = vmul.f32 %v2807, %v5370
  %v5688 = vmul.f32 %v2810, %v5370
  %v5689 = vmul.f32 %v2815, %v5371
  %v5690 = vmul.f32 %v2818, %v5371
  %v5691 = vmul.f32 %v2823, %v5372
  %v5692 = vmul.f32 %v2826, %v5372
  %v5693 = vadd.f32 %v5373, %v5393
  %v5694 = vadd.f32 %v5693, %v5413
  %v5695 = vadd.f32 %v5694, %v5433
  %v5696 = vadd.f32 %v5695, %v5453
  %v5697 = vadd.f32 %v5696, %v5473
  %v5698 = vadd.f32 %v5697, %v5493
  %v5699 = vadd.f32 %v5698, %v5513
  %v5700 = vadd.f32 %v5699, %v5533
  %v5701 = vadd.f32 %v5700, %v5553
  %v5702 = vadd.f32 %v5701, %v5573
  %v5703 = vadd.f32 %v5702, %v5593
  %v5704 = vadd.f32 %v5703, %v5613
  %v5705 = vadd.f32 %v5704, %v5633
  %v5706 = vadd.f32 %v5705, %v5653
  %v5707 = vadd.f32 %v5706, %v5673
  %v5708 = vadd.f32 %v5374, %v5394
  %v5709 = vadd.f32 %v5708, %v5414
  %v5710 = vadd.f32 %v5709, %v5434
  %v5711 = vadd.f32 %v5710, %v5454
  %v5712 = vadd.f32 %v5711, %v5474
  %v5713 = vadd.f32 %v5712, %v5494
  %v5714 = vadd.f32 %v5713, %v5514
  %v5715 = vadd.f32 %v5714, %v5534
  %v5716 = vadd.f32 %v5715, %v5554
  %v5717 = vadd.f32 %v5716, %v5574
  %v5718 = vadd.f32 %v5717, %v5594
  %v5719 = vadd.f32 %v5718, %v5614
  %v5720 = vadd.f32 %v5719, %v5634
  %v5721 = vadd.f32 %v5720, %v5654
  %v5722 = vadd.f32 %v5721, %v5674
  %v5723 = vadd.f32 %v5375, %v5395
  %v5724 = vadd.f32 %v5723, %v5415
  %v5725 = vadd.f32 %v5724, %v5435
  %v5726 = vadd.f32 %v5725, %v5455
  %v5727 = vadd.f32 %v5726, %v5475
  %v5728 = vadd.f32 %v5727, %v5495
  %v5729 = vadd.f32 %v5728, %v5515
  %v5730 = vadd.f32 %v5729, %v5535
  %v5731 = vadd.f32 %v5730, %v5555
  %v5732 = vadd.f32 %v5731, %v5575
  %v5733 = vadd.f32 %v5732, %v5595
  %v5734 = vadd.f32 %v5733, %v5615
  %v5735 = vadd.f32 %v5734, %v5635
  %v5736 = vadd.f32 %v5735, %v5655
  %v5737 = vadd.f32 %v5736, %v5675
  %v5738 = vadd.f32 %v5376, %v5396
  %v5739 = vadd.f32 %v5738, %v5416
  %v5740 = vadd.f32 %v5739, %v5436
  %v5741 = vadd.f32 %v5740, %v5456
  %v5742 = vadd.f32 %v5741, %v5476
  %v5743 = vadd.f32 %v5742, %v5496
  %v5744 = vadd.f32 %v5743, %v5516
  %v5745 = vadd.f32 %v5744, %v5536
  %v5746 = vadd.f32 %v5745, %v5556
  %v5747 = vadd.f32 %v5746, %v5576
  %v5748 = vadd.f32 %v5747, %v5596
  %v5749 = vadd.f32 %v5748, %v5616
  %v5750 = vadd.f32 %v5749, %v5636
  %v5751 = vadd.f32 %v5750, %v5656
  %v5752 = vadd.f32 %v5751, %v5676
  %v5753 = vadd.f32 %v5377, %v5397
  %v5754 = vadd.f32 %v5753, %v5417
  %v5755 = vadd.f32 %v5754, %v5437
  %v5756 = vadd.f32 %v5755, %v5457
  %v5757 = vadd.f32 %v5756, %v5477
  %v5758 = vadd.f32 %v5757, %v5497
  %v5759 = vadd.f32 %v5758, %v5517
  %v5760 = vadd.f32 %v5759, %v5537
  %v5761 = vadd.f32 %v5760, %v5557
  %v5762 = vadd.f32 %v5761, %v5577
  %v5763 = vadd.f32 %v5762, %v5597
  %v5764 = vadd.f32 %v5763, %v5617
  %v5765 = vadd.f32 %v5764, %v5637
  %v5766 = vadd.f32 %v5765, %v5657
  %v5767 = vadd.f32 %v5766, %v5677
  %v5768 = vadd.f32 %v5378, %v5398
  %v5769 = vadd.f32 %v5768, %v5418
  %v5770 = vadd.f32 %v5769, %v5438
  %v5771 = vadd.f32 %v5770, %v5458
  %v5772 = vadd.f32 %v5771, %v5478
  %v5773 = vadd.f32 %v5772, %v5498
  %v5774 = vadd.f32 %v5773, %v5518
  %v5775 = vadd.f32 %v5774, %v5538
  %v5776 = vadd.f32 %v5775, %v5558
  %v5777 = vadd.f32 %v5776, %v5578
  %v5778 = vadd.f32 %v5777, %v5598
  %v5779 = vadd.f32 %v5778, %v5618
  %v5780 = vadd.f32 %v5779, %v5638
  %v5781 = vadd.f32 %v5780, %v5658
  %v5782 = vadd.f32 %v5781, %v5678
  %v5783 = vadd.f32 %v5379, %v5399
  %v5784 = vadd.f32 %v5783, %v5419
  %v5785 = vadd.f32 %v5784, %v5439
  %v5786 = vadd.f32 %v5785, %v5459
  %v5787 = vadd.f32 %v5786, %v5479
  %v5788 = vadd.f32 %v5787, %v5499
  %v5789 = vadd.f32 %v5788, %v5519
  %v5790 = vadd.f32 %v5789, %v5539
  %v5791 = vadd.f32 %v5790, %v5559
  %v5792 = vadd.f32 %v5791, %v5579
  %v5793 = vadd.f32 %v5792, %v5599
  %v5794 = vadd.f32 %v5793, %v5619
  %v5795 = vadd.f32 %v5794, %v5639
  %v5796 = vadd.f32 %v5795, %v5659
  %v5797 = vadd.f32 %v5796, %v5679
  %v5798 = vadd.f32 %v5380, %v5400
  %v5799 = vadd.f32 %v5798, %v5420
  %v5800 = vadd.f32 %v5799, %v5440
  %v5801 = vadd.f32 %v5800, %v5460
  %v5802 = vadd.f32 %v5801, %v5480
  %v5803 = vadd.f32 %v5802, %v5500
  %v5804 = vadd.f32 %v5803, %v5520
  %v5805 = vadd.f32 %v5804, %v5540
  %v5806 = vadd.f32 %v5805, %v5560
  %v5807 = vadd.f32 %v5806, %v5580
  %v5808 = vadd.f32 %v5807, %v5600
  %v5809 = vadd.f32 %v5808, %v5620
  %v5810 = vadd.f32 %v5809, %v5640
  %v5811 = vadd.f32 %v5810, %v5660
  %v5812 = vadd.f32 %v5811, %v5680
  %v5813 = vadd.f32 %v5381, %v5401
  %v5814 = vadd.f32 %v5813, %v5421
  %v5815 = vadd.f32 %v5814, %v5441
  %v5816 = vadd.f32 %v5815, %v5461
  %v5817 = vadd.f32 %v5816, %v5481
  %v5818 = vadd.f32 %v5817, %v5501
  %v5819 = vadd.f32 %v5818, %v5521
  %v5820 = vadd.f32 %v5819, %v5541
  %v5821 = vadd.f32 %v5820, %v5561
  %v5822 = vadd.f32 %v5821, %v5581
  %v5823 = vadd.f32 %v5822, %v5601
  %v5824 = vadd.f32 %v5823, %v5621
  %v5825 = vadd.f32 %v5824, %v5641
  %v5826 = vadd.f32 %v5825, %v5661
  %v5827 = vadd.f32 %v5826, %v5681
  %v5828 = vadd.f32 %v5382, %v5402
  %v5829 = vadd.f32 %v5828, %v5422
  %v5830 = vadd.f32 %v5829, %v5442
  %v5831 = vadd.f32 %v5830, %v5462
  %v5832 = vadd.f32 %v5831, %v5482
  %v5833 = vadd.f32 %v5832, %v5502
  %v5834 = vadd.f32 %v5833, %v5522
  %v5835 = vadd.f32 %v5834, %v5542
  %v5836 = vadd.f32 %v5835, %v5562
  %v5837 = vadd.f32 %v5836, %v5582
  %v5838 = vadd.f32 %v5837, %v5602
  %v5839 = vadd.f32 %v5838, %v5622
  %v5840 = vadd.f32 %v5839, %v5642
  %v5841 = vadd.f32 %v5840, %v5662
  %v5842 = vadd.f32 %v5841, %v5682
  %v5843 = vadd.f32 %v5383, %v5403
  %v5844 = vadd.f32 %v5843, %v5423
  %v5845 = vadd.f32 %v5844, %v5443
  %v5846 = vadd.f32 %v5845, %v5463
  %v5847 = vadd.f32 %v5846, %v5483
  %v5848 = vadd.f32 %v5847, %v5503
  %v5849 = vadd.f32 %v5848, %v5523
  %v5850 = vadd.f32 %v5849, %v5543
  %v5851 = vadd.f32 %v5850, %v5563
  %v5852 = vadd.f32 %v5851, %v5583
  %v5853 = vadd.f32 %v5852, %v5603
  %v5854 = vadd.f32 %v5853, %v5623
  %v5855 = vadd.f32 %v5854, %v5643
  %v5856 = vadd.f32 %v5855, %v5663
  %v5857 = vadd.f32 %v5856, %v5683
  %v5858 = vadd.f32 %v5384, %v5404
  %v5859 = vadd.f32 %v5858, %v5424
  %v5860 = vadd.f32 %v5859, %v5444
  %v5861 = vadd.f32 %v5860, %v5464
  %v5862 = vadd.f32 %v5861, %v5484
  %v5863 = vadd.f32 %v5862, %v5504
  %v5864 = vadd.f32 %v5863, %v5524
  %v5865 = vadd.f32 %v5864, %v5544
  %v5866 = vadd.f32 %v5865, %v5564
  %v5867 = vadd.f32 %v5866, %v5584
  %v5868 = vadd.f32 %v5867, %v5604
  %v5869 = vadd.f32 %v5868, %v5624
  %v5870 = vadd.f32 %v5869, %v5644
  %v5871 = vadd.f32 %v5870, %v5664
  %v5872 = vadd.f32 %v5871, %v5684
  %v5873 = vadd.f32 %v5385, %v5405
  %v5874 = vadd.f32 %v5873, %v5425
  %v5875 = vadd.f32 %v5874, %v5445
  %v5876 = vadd.f32 %v5875, %v5465
  %v5877 = vadd.f32 %v5876, %v5485
  %v5878 = vadd.f32 %v5877, %v5505
  %v5879 = vadd.f32 %v5878, %v5525
  %v5880 = vadd.f32 %v5879, %v5545
  %v5881 = vadd.f32 %v5880, %v5565
  %v5882 = vadd.f32 %v5881, %v5585
  %v5883 = vadd.f32 %v5882, %v5605
  %v5884 = vadd.f32 %v5883, %v5625
  %v5885 = vadd.f32 %v5884, %v5645
  %v5886 = vadd.f32 %v5885, %v5665
  %v5887 = vadd.f32 %v5886, %v5685
  %v5888 = vadd.f32 %v5386, %v5406
  %v5889 = vadd.f32 %v5888, %v5426
  %v5890 = vadd.f32 %v5889, %v5446
  %v5891 = vadd.f32 %v5890, %v5466
  %v5892 = vadd.f32 %v5891, %v5486
  %v5893 = vadd.f32 %v5892, %v5506
  %v5894 = vadd.f32 %v5893, %v5526
  %v5895 = vadd.f32 %v5894, %v5546
  %v5896 = vadd.f32 %v5895, %v5566
  %v5897 = vadd.f32 %v5896, %v5586
  %v5898 = vadd.f32 %v5897, %v5606
  %v5899 = vadd.f32 %v5898, %v5626
  %v5900 = vadd.f32 %v5899, %v5646
  %v5901 = vadd.f32 %v5900, %v5666
  %v5902 = vadd.f32 %v5901, %v5686
  %v5903 = vadd.f32 %v5387, %v5407
  %v5904 = vadd.f32 %v5903, %v5427
  %v5905 = vadd.f32 %v5904, %v5447
  %v5906 = vadd.f32 %v5905, %v5467
  %v5907 = vadd.f32 %v5906, %v5487
  %v5908 = vadd.f32 %v5907, %v5507
  %v5909 = vadd.f32 %v5908, %v5527
  %v5910 = vadd.f32 %v5909, %v5547
  %v5911 = vadd.f32 %v5910, %v5567
  %v5912 = vadd.f32 %v5911, %v5587
  %v5913 = vadd.f32 %v5912, %v5607
  %v5914 = vadd.f32 %v5913, %v5627
  %v5915 = vadd.f32 %v5914, %v5647
  %v5916 = vadd.f32 %v5915, %v5667
  %v5917 = vadd.f32 %v5916, %v5687
  %v5918 = vadd.f32 %v5388, %v5408
  %v5919 = vadd.f32 %v5918, %v5428
  %v5920 = vadd.f32 %v5919, %v5448
  %v5921 = vadd.f32 %v5920, %v5468
  %v5922 = vadd.f32 %v5921, %v5488
  %v5923 = vadd.f32 %v5922, %v5508
  %v5924 = vadd.f32 %v5923, %v5528
  %v5925 = vadd.f32 %v5924, %v5548
  %v5926 = vadd.f32 %v5925, %v5568
  %v5927 = vadd.f32 %v5926, %v5588
  %v5928 = vadd.f32 %v5927, %v5608
  %v5929 = vadd.f32 %v5928, %v5628
  %v5930 = vadd.f32 %v5929, %v5648
  %v5931 = vadd.f32 %v5930, %v5668
  %v5932 = vadd.f32 %v5931, %v5688
  %v5933 = vadd.f32 %v5389, %v5409
  %v5934 = vadd.f32 %v5933, %v5429
  %v5935 = vadd.f32 %v5934, %v5449
  %v5936 = vadd.f32 %v5935, %v5469
  %v5937 = vadd.f32 %v5936, %v5489
  %v5938 = vadd.f32 %v5937, %v5509
  %v5939 = vadd.f32 %v5938, %v5529
  %v5940 = vadd.f32 %v5939, %v5549
  %v5941 = vadd.f32 %v5940, %v5569
  %v5942 = vadd.f32 %v5941, %v5589
  %v5943 = vadd.f32 %v5942, %v5609
  %v5944 = vadd.f32 %v5943, %v5629
  %v5945 = vadd.f32 %v5944, %v5649
  %v5946 = vadd.f32 %v5945, %v5669
  %v5947 = vadd.f32 %v5946, %v5689
  %v5948 = vadd.f32 %v5390, %v5410
  %v5949 = vadd.f32 %v5948, %v5430
  %v5950 = vadd.f32 %v5949, %v5450
  %v5951 = vadd.f32 %v5950, %v5470
  %v5952 = vadd.f32 %v5951, %v5490
  %v5953 = vadd.f32 %v5952, %v5510
  %v5954 = vadd.f32 %v5953, %v5530
  %v5955 = vadd.f32 %v5954, %v5550
  %v5956 = vadd.f32 %v5955, %v5570
  %v5957 = vadd.f32 %v5956, %v5590
  %v5958 = vadd.f32 %v5957, %v5610
  %v5959 = vadd.f32 %v5958, %v5630
  %v5960 = vadd.f32 %v5959, %v5650
  %v5961 = vadd.f32 %v5960, %v5670
  %v5962 = vadd.f32 %v5961, %v5690
  %v5963 = vadd.f32 %v5391, %v5411
  %v5964 = vadd.f32 %v5963, %v5431
  %v5965 = vadd.f32 %v5964, %v5451
  %v5966 = vadd.f32 %v5965, %v5471
  %v5967 = vadd.f32 %v5966, %v5491
  %v5968 = vadd.f32 %v5967, %v5511
  %v5969 = vadd.f32 %v5968, %v5531
  %v5970 = vadd.f32 %v5969, %v5551
  %v5971 = vadd.f32 %v5970, %v5571
  %v5972 = vadd.f32 %v5971, %v5591
  %v5973 = vadd.f32 %v5972, %v5611
  %v5974 = vadd.f32 %v5973, %v5631
  %v5975 = vadd.f32 %v5974, %v5651
  %v5976 = vadd.f32 %v5975, %v5671
  %v5977 = vadd.f32 %v5976, %v5691
  %v5978 = vadd.f32 %v5392, %v5412
  %v5979 = vadd.f32 %v5978, %v5432
  %v5980 = vadd.f32 %v5979, %v5452
  %v5981 = vadd.f32 %v5980, %v5472
  %v5982 = vadd.f32 %v5981, %v5492
  %v5983 = vadd.f32 %v5982, %v5512
  %v5984 = vadd.f32 %v5983, %v5532
  %v5985 = vadd.f32 %v5984, %v5552
  %v5986 = vadd.f32 %v5985, %v5572
  %v5987 = vadd.f32 %v5986, %v5592
  %v5988 = vadd.f32 %v5987, %v5612
  %v5989 = vadd.f32 %v5988, %v5632
  %v5990 = vadd.f32 %v5989, %v5652
  %v5991 = vadd.f32 %v5990, %v5672
  %v5992 = vadd.f32 %v5991, %v5692
  %v5993 = vadd.f32 %v5707, %v2911
  %v5994 = vadd.f32 %v5722, %v2914
  %v5995 = vadd.f32 %v5737, %v2919
  %v5996 = vadd.f32 %v5752, %v2922
  %v5997 = vadd.f32 %v5767, %v2927
  %v5998 = vadd.f32 %v5782, %v2930
  %v5999 = vadd.f32 %v5797, %v2935
  %v6000 = vadd.f32 %v5812, %v2938
  %v6001 = vadd.f32 %v5827, %v2943
  %v6002 = vadd.f32 %v5842, %v2946
  %v6003 = vadd.f32 %v5857, %v2951
  %v6004 = vadd.f32 %v5872, %v2954
  %v6005 = vadd.f32 %v5887, %v2959
  %v6006 = vadd.f32 %v5902, %v2962
  %v6007 = vadd.f32 %v5917, %v2967
  %v6008 = vadd.f32 %v5932, %v2970
  %v6009 = vadd.f32 %v5947, %v2975
  %v6010 = vadd.f32 %v5962, %v2978
  %v6011 = vadd.f32 %v5977, %v2983
  %v6012 = vadd.f32 %v5992, %v2986
  %v6013 = vmul.f32 %v5993, %v5993
  %v6014 = vmul.f32 %v5994, %v5994
  %v6015 = vmul.f32 %v5995, %v5995
  %v6016 = vmul.f32 %v5996, %v5996
  %v6017 = vmul.f32 %v5997, %v5997
  %v6018 = vmul.f32 %v5998, %v5998
  %v6019 = vmul.f32 %v5999, %v5999
  %v6020 = vmul.f32 %v6000, %v6000
  %v6021 = vmul.f32 %v6001, %v6001
  %v6022 = vmul.f32 %v6002, %v6002
  %v6023 = vmul.f32 %v6003, %v6003
  %v6024 = vmul.f32 %v6004, %v6004
  %v6025 = vmul.f32 %v6005, %v6005
  %v6026 = vmul.f32 %v6006, %v6006
  %v6027 = vmul.f32 %v6007, %v6007
  %v6028 = vmul.f32 %v6008, %v6008
  %v6029 = vmul.f32 %v6009, %v6009
  %v6030 = vmul.f32 %v6010, %v6010
  %v6031 = vmul.f32 %v6011, %v6011
  %v6032 = vmul.f32 %v6012, %v6012
  %v6033 = vadd.f32 %v6013, %v6014
  %v6034 = vrot.slane %v6033, 4
  %v6035 = vadd.f32 %v6033, %v6034
  %v6036 = vrot.slane %v6035, 2
  %v6037 = vadd.f32 %v6035, %v6036
  %v6038 = vrot.slane %v6037, 1
  %v6039 = vadd.f32 %v6037, %v6038
  %v6040 = vadd.f32 %v6015, %v6016
  %v6041 = vrot.slane %v6040, 4
  %v6042 = vadd.f32 %v6040, %v6041
  %v6043 = vrot.slane %v6042, 2
  %v6044 = vadd.f32 %v6042, %v6043
  %v6045 = vrot.slane %v6044, 1
  %v6046 = vadd.f32 %v6044, %v6045
  %v6047 = vadd.f32 %v6017, %v6018
  %v6048 = vrot.slane %v6047, 4
  %v6049 = vadd.f32 %v6047, %v6048
  %v6050 = vrot.slane %v6049, 2
  %v6051 = vadd.f32 %v6049, %v6050
  %v6052 = vrot.slane %v6051, 1
  %v6053 = vadd.f32 %v6051, %v6052
  %v6054 = vadd.f32 %v6019, %v6020
  %v6055 = vrot.slane %v6054, 4
  %v6056 = vadd.f32 %v6054, %v6055
  %v6057 = vrot.slane %v6056, 2
  %v6058 = vadd.f32 %v6056, %v6057
  %v6059 = vrot.slane %v6058, 1
  %v6060 = vadd.f32 %v6058, %v6059
  %v6061 = vadd.f32 %v6021, %v6022
  %v6062 = vrot.slane %v6061, 4
  %v6063 = vadd.f32 %v6061, %v6062
  %v6064 = vrot.slane %v6063, 2
  %v6065 = vadd.f32 %v6063, %v6064
  %v6066 = vrot.slane %v6065, 1
  %v6067 = vadd.f32 %v6065, %v6066
  %v6068 = vadd.f32 %v6023, %v6024
  %v6069 = vrot.slane %v6068, 4
  %v6070 = vadd.f32 %v6068, %v6069
  %v6071 = vrot.slane %v6070, 2
  %v6072 = vadd.f32 %v6070, %v6071
  %v6073 = vrot.slane %v6072, 1
  %v6074 = vadd.f32 %v6072, %v6073
  %v6075 = vadd.f32 %v6025, %v6026
  %v6076 = vrot.slane %v6075, 4
  %v6077 = vadd.f32 %v6075, %v6076
  %v6078 = vrot.slane %v6077, 2
  %v6079 = vadd.f32 %v6077, %v6078
  %v6080 = vrot.slane %v6079, 1
  %v6081 = vadd.f32 %v6079, %v6080
  %v6082 = vadd.f32 %v6027, %v6028
  %v6083 = vrot.slane %v6082, 4
  %v6084 = vadd.f32 %v6082, %v6083
  %v6085 = vrot.slane %v6084, 2
  %v6086 = vadd.f32 %v6084, %v6085
  %v6087 = vrot.slane %v6086, 1
  %v6088 = vadd.f32 %v6086, %v6087
  %v6089 = vadd.f32 %v6029, %v6030
  %v6090 = vrot.slane %v6089, 4
  %v6091 = vadd.f32 %v6089, %v6090
  %v6092 = vrot.slane %v6091, 2
  %v6093 = vadd.f32 %v6091, %v6092
  %v6094 = vrot.slane %v6093, 1
  %v6095 = vadd.f32 %v6093, %v6094
  %v6096 = vadd.f32 %v6031, %v6032
  %v6097 = vrot.slane %v6096, 4
  %v6098 = vadd.f32 %v6096, %v6097
  %v6099 = vrot.slane %v6098, 2
  %v6100 = vadd.f32 %v6098, %v6099
  %v6101 = vrot.slane %v6100, 1
  %v6102 = vadd.f32 %v6100, %v6101
  %v6103 = vrsqrt.pop %v6039
  %v6104 = vmul.f32 %v6039, %v6103
  %vm6105 = vcmp.eq.f32.partialorder %v6039, inf
  %v6106 = vsel %vm6105, %v6039, %v6104
  %vm6107 = vcmp.eq.f32.partialorder %v6039, 0.0
  %v6108 = vand.u32 %v6039, 2147483648
  %v6109 = vsel %vm6107, %v6108, %v6106
  %v6110 = vrsqrt.pop %v6046
  %v6111 = vmul.f32 %v6046, %v6110
  %vm6112 = vcmp.eq.f32.partialorder %v6046, inf
  %v6113 = vsel %vm6112, %v6046, %v6111
  %vm6114 = vcmp.eq.f32.partialorder %v6046, 0.0
  %v6115 = vand.u32 %v6046, 2147483648
  %v6116 = vsel %vm6114, %v6115, %v6113
  %v6117 = vrsqrt.pop %v6053
  %v6118 = vmul.f32 %v6053, %v6117
  %vm6119 = vcmp.eq.f32.partialorder %v6053, inf
  %v6120 = vsel %vm6119, %v6053, %v6118
  %vm6121 = vcmp.eq.f32.partialorder %v6053, 0.0
  %v6122 = vand.u32 %v6053, 2147483648
  %v6123 = vsel %vm6121, %v6122, %v6120
  %v6124 = vrsqrt.pop %v6060
  %v6125 = vmul.f32 %v6060, %v6124
  %vm6126 = vcmp.eq.f32.partialorder %v6060, inf
  %v6127 = vsel %vm6126, %v6060, %v6125
  %vm6128 = vcmp.eq.f32.partialorder %v6060, 0.0
  %v6129 = vand.u32 %v6060, 2147483648
  %v6130 = vsel %vm6128, %v6129, %v6127
  %v6131 = vrsqrt.pop %v6067
  %v6132 = vmul.f32 %v6067, %v6131
  %vm6133 = vcmp.eq.f32.partialorder %v6067, inf
  %v6134 = vsel %vm6133, %v6067, %v6132
  %vm6135 = vcmp.eq.f32.partialorder %v6067, 0.0
  %v6136 = vand.u32 %v6067, 2147483648
  %v6137 = vsel %vm6135, %v6136, %v6134
  %v6138 = vrsqrt.pop %v6074
  %v6139 = vmul.f32 %v6074, %v6138
  %vm6140 = vcmp.eq.f32.partialorder %v6074, inf
  %v6141 = vsel %vm6140, %v6074, %v6139
  %vm6142 = vcmp.eq.f32.partialorder %v6074, 0.0
  %v6143 = vand.u32 %v6074, 2147483648
  %v6144 = vsel %vm6142, %v6143, %v6141
  %v6145 = vrsqrt.pop %v6081
  %v6146 = vmul.f32 %v6081, %v6145
  %vm6147 = vcmp.eq.f32.partialorder %v6081, inf
  %v6148 = vsel %vm6147, %v6081, %v6146
  %vm6149 = vcmp.eq.f32.partialorder %v6081, 0.0
  %v6150 = vand.u32 %v6081, 2147483648
  %v6151 = vsel %vm6149, %v6150, %v6148
  %v6152 = vrsqrt.pop %v6088
  %v6153 = vmul.f32 %v6088, %v6152
  %vm6154 = vcmp.eq.f32.partialorder %v6088, inf
  %v6155 = vsel %vm6154, %v6088, %v6153
  %vm6156 = vcmp.eq.f32.partialorder %v6088, 0.0
  %v6157 = vand.u32 %v6088, 2147483648
  %v6158 = vsel %vm6156, %v6157, %v6155
  %v6159 = vrsqrt.pop %v6095
  %v6160 = vmul.f32 %v6095, %v6159
  %vm6161 = vcmp.eq.f32.partialorder %v6095, inf
  %v6162 = vsel %vm6161, %v6095, %v6160
  %vm6163 = vcmp.eq.f32.partialorder %v6095, 0.0
  %v6164 = vand.u32 %v6095, 2147483648
  %v6165 = vsel %vm6163, %v6164, %v6162
  %v6166 = vrsqrt.pop %v6102
  %v6167 = vmul.f32 %v6102, %v6166
  %vm6168 = vcmp.eq.f32.partialorder %v6102, inf
  %v6169 = vsel %vm6168, %v6102, %v6167
  %vm6170 = vcmp.eq.f32.partialorder %v6102, 0.0
  %v6171 = vand.u32 %v6102, 2147483648
  %v6172 = vsel %vm6170, %v6171, %v6169
  %v6173 = vmul.f32 %v6109, 1.442695
  %v6174 = vpow.pop %v6173
  %v6175 = vmul.f32 %v6116, 1.442695
  %v6176 = vpow.pop %v6175
  %v6177 = vmul.f32 %v6123, 1.442695
  %v6178 = vpow.pop %v6177
  %v6179 = vmul.f32 %v6130, 1.442695
  %v6180 = vpow.pop %v6179
  %v6181 = vmul.f32 %v6137, 1.442695
  %v6182 = vpow.pop %v6181
  %v6183 = vmul.f32 %v6144, 1.442695
  %v6184 = vpow.pop %v6183
  %v6185 = vmul.f32 %v6151, 1.442695
  %v6186 = vpow.pop %v6185
  %v6187 = vmul.f32 %v6158, 1.442695
  %v6188 = vpow.pop %v6187
  %v6189 = vmul.f32 %v6165, 1.442695
  %v6190 = vpow.pop %v6189
  %v6191 = vmul.f32 %v6172, 1.442695
  %v6192 = vpow.pop %v6191
  %v6193 = vadd.f32 %v6174, 1e-20
  %v6194 = vadd.f32 %v6176, 1e-20
  %v6195 = vadd.f32 %v6178, 1e-20
  %v6196 = vadd.f32 %v6180, 1e-20
  %v6197 = vadd.f32 %v6182, 1e-20
  %v6198 = vadd.f32 %v6184, 1e-20
  %v6199 = vadd.f32 %v6186, 1e-20
  %v6200 = vadd.f32 %v6188, 1e-20
  %v6201 = vadd.f32 %v6190, 1e-20
  %v6202 = vadd.f32 %v6192, 1e-20
  %v6203 = vrcp.pop %v6193
  %v6204 = vrcp.pop %v6194
  %v6205 = vrcp.pop %v6195
  %v6206 = vrcp.pop %v6196
  %v6207 = vrcp.pop %v6197
  %v6208 = vrcp.pop %v6198
  %v6209 = vrcp.pop %v6199
  %v6210 = vrcp.pop %v6200
  %v6211 = vrcp.pop %v6201
  %v6212 = vrcp.pop %v6202
  %v6213 = vsub.f32 1.0, %v6203
  %v6214 = vsub.f32 1.0, %v6204
  %v6215 = vsub.f32 1.0, %v6205
  %v6216 = vsub.f32 1.0, %v6206
  %v6217 = vsub.f32 1.0, %v6207
  %v6218 = vsub.f32 1.0, %v6208
  %v6219 = vsub.f32 1.0, %v6209
  %v6220 = vsub.f32 1.0, %v6210
  %v6221 = vsub.f32 1.0, %v6211
  %v6222 = vsub.f32 1.0, %v6212
  %v6223 = vadd.f32 %v6109, 1e-20
  %v6224 = vadd.f32 %v6116, 1e-20
  %v6225 = vadd.f32 %v6123, 1e-20
  %v6226 = vadd.f32 %v6130, 1e-20
  %v6227 = vadd.f32 %v6137, 1e-20
  %v6228 = vadd.f32 %v6144, 1e-20
  %v6229 = vadd.f32 %v6151, 1e-20
  %v6230 = vadd.f32 %v6158, 1e-20
  %v6231 = vadd.f32 %v6165, 1e-20
  %v6232 = vadd.f32 %v6172, 1e-20
  %v6233 = vrcp.pop %v6223
  %v6234 = vrcp.pop %v6224
  %v6235 = vrcp.pop %v6225
  %v6236 = vrcp.pop %v6226
  %v6237 = vrcp.pop %v6227
  %v6238 = vrcp.pop %v6228
  %v6239 = vrcp.pop %v6229
  %v6240 = vrcp.pop %v6230
  %v6241 = vrcp.pop %v6231
  %v6242 = vrcp.pop %v6232
  %v6243 = vmul.f32 %v6213, %v6233
  %v6244 = vmul.f32 %v6214, %v6234
  %v6245 = vmul.f32 %v6215, %v6235
  %v6246 = vmul.f32 %v6216, %v6236
  %v6247 = vmul.f32 %v6217, %v6237
  %v6248 = vmul.f32 %v6218, %v6238
  %v6249 = vmul.f32 %v6219, %v6239
  %v6250 = vmul.f32 %v6220, %v6240
  %v6251 = vmul.f32 %v6221, %v6241
  %v6252 = vmul.f32 %v6222, %v6242
  %v6253 = vmul.f32 %v5993, %v6243
  %v6254 = vmul.f32 %v5994, %v6243
  %v6255 = vmul.f32 %v5995, %v6244
  %v6256 = vmul.f32 %v5996, %v6244
  %v6257 = vmul.f32 %v5997, %v6245
  %v6258 = vmul.f32 %v5998, %v6245
  %v6259 = vmul.f32 %v5999, %v6246
  %v6260 = vmul.f32 %v6000, %v6246
  %v6261 = vmul.f32 %v6001, %v6247
  %v6262 = vmul.f32 %v6002, %v6247
  %v6263 = vmul.f32 %v6003, %v6248
  %v6264 = vmul.f32 %v6004, %v6248
  %v6265 = vmul.f32 %v6005, %v6249
  %v6266 = vmul.f32 %v6006, %v6249
  %v6267 = vmul.f32 %v6007, %v6250
  %v6268 = vmul.f32 %v6008, %v6250
  %v6269 = vmul.f32 %v6009, %v6251
  %v6270 = vmul.f32 %v6010, %v6251
  %v6271 = vmul.f32 %v6011, %v6252
  %v6272 = vmul.f32 %v6012, %v6252
  %6273 = vst [vmem:[%s2] sm:$0xff] %v6253
  %6274 = vst [vmem:[%s2 + $0x8] sm:$0xff] %v6254
  %6275 = vst [vmem:[%s2 + $0x10] sm:$0xff] %v6255
  %6276 = vst [vmem:[%s2 + $0x18] sm:$0xff] %v6256
  %6277 = vst [vmem:[%s2 + $0x20] sm:$0xff] %v6257
  %6278 = vst [vmem:[%s2 + $0x28] sm:$0xff] %v6258
  %6279 = vst [vmem:[%s2 + $0x30] sm:$0xff] %v6259
  %6280 = vst [vmem:[%s2 + $0x38] sm:$0xff] %v6260
  %6281 = vst [vmem:[%s2 + $0x40] sm:$0xff] %v6261
  %6282 = vst [vmem:[%s2 + $0x48] sm:$0xff] %v6262
  %6283 = vst [vmem:[%s2 + $0x50] sm:$0xff] %v6263
  %6284 = vst [vmem:[%s2 + $0x58] sm:$0xff] %v6264
  %6285 = vst [vmem:[%s2 + $0x60] sm:$0xff] %v6265
  %6286 = vst [vmem:[%s2 + $0x68] sm:$0xff] %v6266
  %6287 = vst [vmem:[%s2 + $0x70] sm:$0xff] %v6267
  %6288 = vst [vmem:[%s2 + $0x78] sm:$0xff] %v6268
  %6289 = vst [vmem:[%s2 + $0x80] sm:$0xff] %v6269
  %6290 = vst [vmem:[%s2 + $0x88] sm:$0xff] %v6270
  %6291 = vst [vmem:[%s2 + $0x90] sm:$0xff] %v6271
  %6292 = vst [vmem:[%s2 + $0x98] sm:$0xff] %v6272
  // Predicated region
  $region10: #{_lambda_.1} parent=0 // pred_check
    _
  $region11: #{_lambda_.1} parent=0 // pred_check_branch
    %6294 = sbr.rel (0) target = $region13
  $region12: #{_lambda_.1} parent=0 // pred_region
    _
  $region13: #{_lambda_.1} parent=0 // pred_fallthru
    _
  // Predicated region
  $region14: #{_lambda_.1} parent=0 // pred_check
    _
  $region15: #{_lambda_.1} parent=0 // pred_check_branch
    %6296 = sbr.rel (0) target = $region17
  $region16: #{_lambda_.1} parent=0 // pred_region
    _
  $region17: #{_lambda_.1} parent=0 // pred_fallthru
    _

</llo_original>
